<compile_context>
chip_gen: v7x
topology: tpu7x:2x2x1
jax: 0.10.0
libtpu: 0.0.40
codegen_flags: <defaults>
</compile_context>

<pallas_src>
import functools
import numpy as np
import jax
import jax.numpy as jnp
from jax.experimental import pallas as pl
from jax.experimental.pallas import tpu as pltpu

INPUT_SIZE = 1
HIDDEN_SIZE = 10
LATENT_SIZE = 20
NUM_LAYERS = 2
DECODER_SIZES = [(LATENT_SIZE, 32), (32, 32), (32, 64), (64, 128), (128, 256), (256, 400)]
N_DECODER = len(DECODER_SIZES)
DEC_OUT = DECODER_SIZES[-1][1]     # 400
DEC_OUT_PAD = 512                  # lane-dense padded width of the final output
ENC_PAD = 128                      # lane-dense padded width of `encoded`
GATE_PITCH = 128                   # each LSTM gate block starts at a 128-lane boundary
DEC_ANY_IDX = (4, 5)               # decoder weights that are DMA'd manually (pl.ANY)

_VMEM = functools.partial(pl.BlockSpec, memory_space=pltpu.MemorySpace.VMEM)


# ------------------------- Fused forward kernel -------------------------------

def fused_forward_kernel(*refs):
    (x_ref, wih0_ref, whh0_ref, b0_ref,
     wih1_ref, whh1_ref, b1_ref, wlat_ref, blat_ref) = refs[:9]
    dec_refs = refs[9:9 + 2 * N_DECODER]
    enc_ref, dec_ref, w4_scr, w5_scr, dma_sems = refs[9 + 2 * N_DECODER:]

    B, T = x_ref.shape
    H = whh0_ref.shape[0]
    GP = GATE_PITCH

    # ---- kick off the big decoder-weight DMAs; they overlap the LSTM ---------
    cp4 = pltpu.make_async_copy(dec_refs[2 * DEC_ANY_IDX[0]], w4_scr, dma_sems.at[0])
    cp5 = pltpu.make_async_copy(dec_refs[2 * DEC_ANY_IDX[1]], w5_scr, dma_sems.at[1])
    cp4.start()
    cp5.start()

    # ---- small hoisted loads --------------------------------------------------
    x_all = x_ref[...]                                      # (B, T), 1 vreg-ish
    wih0 = wih0_ref[...]                                    # (1, 4*GP)
    b0 = b0_ref[...]                                        # (1, 4*GP)

    def split_gates(gates):
        # gate g lives at lanes [g*GP, g*GP + H): every slice start is lane-aligned.
        i = jax.nn.sigmoid(gates[:, 0 * GP:0 * GP + H])
        f = jax.nn.sigmoid(gates[:, 1 * GP:1 * GP + H])
        g = jnp.tanh(gates[:, 2 * GP:2 * GP + H])
        o = jax.nn.sigmoid(gates[:, 3 * GP:3 * GP + H])
        return i, f, g, o

    # ---- time loop: fully unrolled (T is static), state stays in vregs -------
    # Gate weights are re-loaded per step (bounded live ranges; vld slots are idle).
    zeros = jnp.zeros((B, H), jnp.float32)
    h0, c0, h1, c1 = zeros, zeros, zeros, zeros
    for t in range(T):
        # layer 0: input contribution is a per-step broadcast (input_size == 1)
        x_col = x_all[:, t:t + 1]                            # (B, 1), static slice
        gates0 = (x_col * wih0 + b0
                  + jnp.dot(h0, whh0_ref[...], preferred_element_type=jnp.float32))
        i0, f0, g0, o0 = split_gates(gates0)
        c0 = f0 * c0 + i0 * g0
        h0 = o0 * jnp.tanh(c0)
        # layer 1: two lane-aligned dots (no concatenate / lane-shift)
        gates1 = (jnp.dot(h0, wih1_ref[...], preferred_element_type=jnp.float32)
                  + jnp.dot(h1, whh1_ref[...], preferred_element_type=jnp.float32)
                  + b1_ref[...])
        i1, f1, g1, o1 = split_gates(gates1)
        c1 = f1 * c1 + i1 * g1
        h1 = o1 * jnp.tanh(c1)

    # ---- fc_latent (padded to 128 lanes; padded lanes are exactly zero) ------
    encoded = (jnp.dot(h1, wlat_ref[...], preferred_element_type=jnp.float32)
               + blat_ref[...])                              # (B, ENC_PAD)
    enc_ref[...] = encoded

    # ---- MLP decoder (ReLU between layers, none after the last) --------------
    h = encoded
    for idx in range(N_DECODER):
        if idx == DEC_ANY_IDX[0]:
            cp4.wait()
            w = w4_scr[...]
        elif idx == DEC_ANY_IDX[1]:
            cp5.wait()
            w = w5_scr[...]
        else:
            w = dec_refs[2 * idx][...]
        b = dec_refs[2 * idx + 1][...]
        h = jnp.dot(h, w, preferred_element_type=jnp.float32) + b
        if idx < N_DECODER - 1:
            h = jnp.maximum(h, 0.0)
    dec_ref[...] = h                                         # (B, DEC_OUT_PAD), lane-dense


# ------------------------- Weight layout preparation (one-time) ---------------

def _pad_gate_blocks(w):
    """(in, 4H) gate matrix -> (in, 4*GATE_PITCH) with gate g at lanes [g*128, g*128+H)."""
    in_dim = w.shape[0]
    H = w.shape[1] // 4
    out = jnp.zeros((in_dim, 4 * GATE_PITCH), jnp.float32)
    for g in range(4):
        out = out.at[:, g * GATE_PITCH:g * GATE_PITCH + H].set(w[:, g * H:(g + 1) * H])
    return out


def _pad_cols(a, n):
    return jnp.pad(a, ((0, 0), (0, n - a.shape[1])))


def _pad_rows(a, n):
    return jnp.pad(a, ((0, n - a.shape[0]), (0, 0)))


def prepare_kernel_params(params):
    """One-time conversion of logical params to the fused-kernel layout."""
    (wih0, whh0, b0), (wih1, whh1, b1) = params["lstm"]
    kp = {
        "wih0": _pad_gate_blocks(wih0),
        "whh0": _pad_gate_blocks(whh0),
        "b0": _pad_gate_blocks(b0),
        "wih1": _pad_gate_blocks(wih1),
        "whh1": _pad_gate_blocks(whh1),
        "b1": _pad_gate_blocks(b1),
        # fc_latent padded to 128 output lanes (padded lanes produce exact zeros)
        "wlat": _pad_cols(params["fc_latent"][0], ENC_PAD),
        "blat": _pad_cols(params["fc_latent"][1], ENC_PAD),
    }
    dec = []
    for idx, (w, b) in enumerate(params["decoder"]):
        if idx == 0:
            w = _pad_rows(w, ENC_PAD)          # zero rows: padded `encoded` lanes ignored
        if idx == N_DECODER - 1:
            w = _pad_cols(w, DEC_OUT_PAD)      # zero cols: exact result after slicing
            b = _pad_cols(b, DEC_OUT_PAD)
        dec.append((w, b))
    kp["decoder"] = dec
    return kp


# ------------------------- Full forward pass (single pallas_call) -------------

# Advisory cost estimate (tiny model; numbers are order-of-magnitude).
_COST = pl.CostEstimate(flops=2_510_000, transcendentals=6_400, bytes_accessed=810_000)


@jax.jit
def autoencoder_lstm_forward(x, kparams):
    B, T, I = x.shape
    # input_size == 1: squeeze trailing dim (contiguous, effectively free)
    x2d = x[..., 0]                                          # (B, T)
    pad_b = (-B) % 8
    Bp = B + pad_b
    x2d = jnp.pad(x2d, ((0, pad_b), (0, 0)))                 # sublane-dense batch

    flat_dec = [a for wb in kparams["decoder"] for a in wb]
    dec_specs = []
    for i in range(N_DECODER):
        dec_specs.append(pl.BlockSpec(memory_space=pl.ANY) if i in DEC_ANY_IDX else _VMEM())
        dec_specs.append(_VMEM())

    encoded_pad, dec_padded = pl.pallas_call(
        fused_forward_kernel,
        out_shape=(jax.ShapeDtypeStruct((Bp, ENC_PAD), jnp.float32),
                   jax.ShapeDtypeStruct((Bp, DEC_OUT_PAD), jnp.float32)),
        in_specs=[_VMEM()] * 9 + dec_specs,
        out_specs=(_VMEM(), _VMEM()),
        scratch_shapes=[
            pltpu.VMEM(DECODER_SIZES[DEC_ANY_IDX[0]], jnp.float32),                  # (128, 256)
            pltpu.VMEM((DECODER_SIZES[DEC_ANY_IDX[1]][0], DEC_OUT_PAD), jnp.float32),  # (256, 512)
            pltpu.SemaphoreType.DMA((2,)),
        ],
        cost_estimate=_COST,
    )(x2d, kparams["wih0"], kparams["whh0"], kparams["b0"],
      kparams["wih1"], kparams["whh1"], kparams["b1"],
      kparams["wlat"], kparams["blat"], *flat_dec)
    return encoded_pad[:B, :LATENT_SIZE], dec_padded[:B, :DEC_OUT]


# ------------------------- Deterministic parameter init -----------------------

def init_params(key):
    keys = iter(jax.random.split(key, 32))

    def unif(k, shape, bound):
        return jax.random.uniform(k, shape, jnp.float32, -bound, bound)

    params = {}
    H = HIDDEN_SIZE
    bound = 1.0 / np.sqrt(H)
    lstm = []
    in_sizes = [INPUT_SIZE, H]
    for l in range(NUM_LAYERS):
        wih = unif(next(keys), (in_sizes[l], 4 * H), bound)
        whh = unif(next(keys), (H, 4 * H), bound)
        b_ih = unif(next(keys), (1, 4 * H), bound)
        b_hh = unif(next(keys), (1, 4 * H), bound)
        lstm.append((wih, whh, b_ih + b_hh))                 # fold both biases
    params["lstm"] = tuple(lstm)

    bound = 1.0 / np.sqrt(HIDDEN_SIZE)
    params["fc_latent"] = (unif(next(keys), (HIDDEN_SIZE, LATENT_SIZE), bound),
                           unif(next(keys), (1, LATENT_SIZE), bound))

    dec = []
    for fin, fout in DECODER_SIZES:
        bound = 1.0 / np.sqrt(fin)
        dec.append((unif(next(keys), (fin, fout), bound),
                    unif(next(keys), (1, fout), bound)))
    params["decoder"] = dec
    return params


# ------------------------- Pure-JAX reference (for validation) ----------------

def reference_forward(x, params):
    B, T, _ = x.shape
    H = HIDDEN_SIZE
    hs = [jnp.zeros((B, H), jnp.float32) for _ in range(NUM_LAYERS)]
    cs = [jnp.zeros((B, H), jnp.float32) for _ in range(NUM_LAYERS)]
    for t in range(T):
        inp = x[:, t, :]
        for l in range(NUM_LAYERS):
            wih, whh, b = params["lstm"][l]
            gates = inp @ wih + hs[l] @ whh + b
            i = jax.nn.sigmoid(gates[:, 0 * H:1 * H])
            f = jax.nn.sigmoid(gates[:, 1 * H:2 * H])
            g = jnp.tanh(gates[:, 2 * H:3 * H])
            o = jax.nn.sigmoid(gates[:, 3 * H:4 * H])
            cs[l] = f * cs[l] + i * g
            hs[l] = o * jnp.tanh(cs[l])
            inp = hs[l]
    w, b = params["fc_latent"]
    encoded = hs[-1] @ w + b
    h = encoded
    for idx, (w, b) in enumerate(params["decoder"]):
        h = h @ w + b
        if idx < len(params["decoder"]) - 1:
            h = jnp.maximum(h, 0.0)
    return encoded, h


if __name__ == "__main__":
    key = jax.random.PRNGKey(0)
    k_param, k_x = jax.random.split(key)
    params = init_params(k_param)
    kparams = prepare_kernel_params(params)   # one-time kernel-layout conversion

    B, T = 2, 8
    x = jax.random.normal(k_x, (B, T, INPUT_SIZE), dtype=jnp.float32)

    encoded, decoded = autoencoder_lstm_forward(x, kparams)
    encoded, decoded = jax.block_until_ready((encoded, decoded))

    enc_ref, dec_ref = reference_forward(x, params)
    np.testing.assert_allclose(np.asarray(encoded), np.asarray(enc_ref), rtol=1e-5, atol=1e-5)
    np.testing.assert_allclose(np.asarray(decoded), np.asarray(dec_ref), rtol=1e-5, atol=1e-5)

    assert encoded.shape == (B, LATENT_SIZE)
    assert decoded.shape == (B, DEC_OUT)
    print("KERNEL_OK")
</pallas_src>

<mosaic_0001>
module attributes {stable_mosaic.version = 11 : i64} {
  func.func @fused_forward_kernel(%arg0: memref<8x8xf32, #tpu.memory_space<vmem>>, %arg1: memref<1x512xf32, #tpu.memory_space<vmem>>, %arg2: memref<10x512xf32, #tpu.memory_space<vmem>>, %arg3: memref<1x512xf32, #tpu.memory_space<vmem>>, %arg4: memref<10x512xf32, #tpu.memory_space<vmem>>, %arg5: memref<10x512xf32, #tpu.memory_space<vmem>>, %arg6: memref<1x512xf32, #tpu.memory_space<vmem>>, %arg7: memref<10x128xf32, #tpu.memory_space<vmem>>, %arg8: memref<1x128xf32, #tpu.memory_space<vmem>>, %arg9: memref<128x32xf32, #tpu.memory_space<vmem>>, %arg10: memref<1x32xf32, #tpu.memory_space<vmem>>, %arg11: memref<32x32xf32, #tpu.memory_space<vmem>>, %arg12: memref<1x32xf32, #tpu.memory_space<vmem>>, %arg13: memref<32x64xf32, #tpu.memory_space<vmem>>, %arg14: memref<1x64xf32, #tpu.memory_space<vmem>>, %arg15: memref<64x128xf32, #tpu.memory_space<vmem>>, %arg16: memref<1x128xf32, #tpu.memory_space<vmem>>, %arg17: memref<128x256xf32, #tpu.memory_space<any>>, %arg18: memref<1x256xf32, #tpu.memory_space<vmem>>, %arg19: memref<256x512xf32, #tpu.memory_space<any>>, %arg20: memref<1x512xf32, #tpu.memory_space<vmem>>, %arg21: memref<8x128xf32, #tpu.memory_space<vmem>>, %arg22: memref<8x512xf32, #tpu.memory_space<vmem>>, %arg23: memref<128x256xf32, #tpu.memory_space<vmem>>, %arg24: memref<256x512xf32, #tpu.memory_space<vmem>>, %arg25: memref<2x!tpu.dma_semaphore, #tpu.memory_space<semaphore_mem>>) attributes {dimension_semantics = [], scalar_prefetch = 0 : i64, scratch_operands = 3 : i64, tpu.core_type = #tpu.core_type<tc>} {
    %c0_i32 = arith.constant 0 : i32
    %0 = tpu.memref_slice %arg25[%c0_i32] : memref<2x!tpu.dma_semaphore, #tpu.memory_space<semaphore_mem>> -> memref<1x!tpu.dma_semaphore, #tpu.memory_space<semaphore_mem>>
    %1 = tpu.memref_squeeze %0 : memref<1x!tpu.dma_semaphore, #tpu.memory_space<semaphore_mem>> -> memref<!tpu.dma_semaphore, #tpu.memory_space<semaphore_mem>>
    tpu.enqueue_dma source(%arg17 : memref<128x256xf32, #tpu.memory_space<any>>) target(%arg23 : memref<128x256xf32, #tpu.memory_space<vmem>>) target_semaphore(%1 : memref<!tpu.dma_semaphore, #tpu.memory_space<semaphore_mem>>)
    %c1_i32 = arith.constant 1 : i32
    %2 = tpu.memref_slice %arg25[%c1_i32] : memref<2x!tpu.dma_semaphore, #tpu.memory_space<semaphore_mem>> -> memref<1x!tpu.dma_semaphore, #tpu.memory_space<semaphore_mem>>
    %3 = tpu.memref_squeeze %2 : memref<1x!tpu.dma_semaphore, #tpu.memory_space<semaphore_mem>> -> memref<!tpu.dma_semaphore, #tpu.memory_space<semaphore_mem>>
    tpu.enqueue_dma source(%arg19 : memref<256x512xf32, #tpu.memory_space<any>>) target(%arg24 : memref<256x512xf32, #tpu.memory_space<vmem>>) target_semaphore(%3 : memref<!tpu.dma_semaphore, #tpu.memory_space<semaphore_mem>>)
    %c0 = arith.constant 0 : index
    %c0_0 = arith.constant 0 : index
    %4 = vector.load %arg0[%c0, %c0_0] : memref<8x8xf32, #tpu.memory_space<vmem>>, vector<8x8xf32>
    %c0_1 = arith.constant 0 : index
    %c0_2 = arith.constant 0 : index
    %5 = vector.load %arg1[%c0_1, %c0_2] : memref<1x512xf32, #tpu.memory_space<vmem>>, vector<1x512xf32>
    %c0_3 = arith.constant 0 : index
    %c0_4 = arith.constant 0 : index
    %6 = vector.load %arg3[%c0_3, %c0_4] : memref<1x512xf32, #tpu.memory_space<vmem>>, vector<1x512xf32>
    %cst = arith.constant 0.000000e+00 : f32
    %7 = vector.broadcast %cst : f32 to vector<8x10xf32>
    %8 = vector.extract_strided_slice %4 {offsets = [0, 0], sizes = [8, 1], strides = [1, 1]} : vector<8x8xf32> to vector<8x1xf32>
    %9 = vector.broadcast %8 : vector<8x1xf32> to vector<8x512xf32>
    %10 = vector.broadcast %5 : vector<1x512xf32> to vector<8x512xf32>
    %11 = arith.mulf %9, %10 : vector<8x512xf32>
    %12 = vector.broadcast %6 : vector<1x512xf32> to vector<8x512xf32>
    %13 = arith.addf %11, %12 : vector<8x512xf32>
    %c0_5 = arith.constant 0 : index
    %c0_6 = arith.constant 0 : index
    %14 = vector.load %arg2[%c0_5, %c0_6] : memref<10x512xf32, #tpu.memory_space<vmem>>, vector<10x512xf32>
    %cst_7 = arith.constant dense<0.000000e+00> : vector<8x512xf32>
    %15 = tpu.matmul %7, %14, %cst_7 {dimension_numbers = #tpu.dot_dimension_numbers<[1], [0], [0], [1], [0, 0, 1, 1], [], []>} : vector<8x10xf32>, vector<10x512xf32>, vector<8x512xf32> -> vector<8x512xf32>
    %16 = arith.addf %13, %15 : vector<8x512xf32>
    %17 = vector.extract_strided_slice %16 {offsets = [0, 0], sizes = [8, 10], strides = [1, 1]} : vector<8x512xf32> to vector<8x10xf32>
    %18 = arith.negf %17 : vector<8x10xf32>
    %19 = math.exp %18 : vector<8x10xf32>
    %cst_8 = arith.constant 1.000000e+00 : f32
    %20 = vector.broadcast %cst_8 : f32 to vector<8x10xf32>
    %21 = arith.addf %20, %19 : vector<8x10xf32>
    %22 = arith.divf %20, %21 : vector<8x10xf32>
    %23 = vector.extract_strided_slice %16 {offsets = [0, 128], sizes = [8, 10], strides = [1, 1]} : vector<8x512xf32> to vector<8x10xf32>
    %24 = arith.negf %23 : vector<8x10xf32>
    %25 = math.exp %24 : vector<8x10xf32>
    %cst_9 = arith.constant 1.000000e+00 : f32
    %26 = vector.broadcast %cst_9 : f32 to vector<8x10xf32>
    %27 = arith.addf %26, %25 : vector<8x10xf32>
    %28 = arith.divf %26, %27 : vector<8x10xf32>
    %29 = vector.extract_strided_slice %16 {offsets = [0, 256], sizes = [8, 10], strides = [1, 1]} : vector<8x512xf32> to vector<8x10xf32>
    %30 = math.tanh %29 : vector<8x10xf32>
    %31 = vector.extract_strided_slice %16 {offsets = [0, 384], sizes = [8, 10], strides = [1, 1]} : vector<8x512xf32> to vector<8x10xf32>
    %32 = arith.negf %31 : vector<8x10xf32>
    %33 = math.exp %32 : vector<8x10xf32>
    %cst_10 = arith.constant 1.000000e+00 : f32
    %34 = vector.broadcast %cst_10 : f32 to vector<8x10xf32>
    %35 = arith.addf %34, %33 : vector<8x10xf32>
    %36 = arith.divf %34, %35 : vector<8x10xf32>
    %37 = arith.mulf %28, %7 : vector<8x10xf32>
    %38 = arith.mulf %22, %30 : vector<8x10xf32>
    %39 = arith.addf %37, %38 : vector<8x10xf32>
    %40 = math.tanh %39 : vector<8x10xf32>
    %41 = arith.mulf %36, %40 : vector<8x10xf32>
    %c0_11 = arith.constant 0 : index
    %c0_12 = arith.constant 0 : index
    %42 = vector.load %arg4[%c0_11, %c0_12] : memref<10x512xf32, #tpu.memory_space<vmem>>, vector<10x512xf32>
    %cst_13 = arith.constant dense<0.000000e+00> : vector<8x512xf32>
    %43 = tpu.matmul %41, %42, %cst_13 {dimension_numbers = #tpu.dot_dimension_numbers<[1], [0], [0], [1], [0, 0, 1, 1], [], []>} : vector<8x10xf32>, vector<10x512xf32>, vector<8x512xf32> -> vector<8x512xf32>
    %c0_14 = arith.constant 0 : index
    %c0_15 = arith.constant 0 : index
    %44 = vector.load %arg5[%c0_14, %c0_15] : memref<10x512xf32, #tpu.memory_space<vmem>>, vector<10x512xf32>
    %cst_16 = arith.constant dense<0.000000e+00> : vector<8x512xf32>
    %45 = tpu.matmul %7, %44, %cst_16 {dimension_numbers = #tpu.dot_dimension_numbers<[1], [0], [0], [1], [0, 0, 1, 1], [], []>} : vector<8x10xf32>, vector<10x512xf32>, vector<8x512xf32> -> vector<8x512xf32>
    %46 = arith.addf %43, %45 : vector<8x512xf32>
    %c0_17 = arith.constant 0 : index
    %c0_18 = arith.constant 0 : index
    %47 = vector.load %arg6[%c0_17, %c0_18] : memref<1x512xf32, #tpu.memory_space<vmem>>, vector<1x512xf32>
    %48 = vector.broadcast %47 : vector<1x512xf32> to vector<8x512xf32>
    %49 = arith.addf %46, %48 : vector<8x512xf32>
    %50 = vector.extract_strided_slice %49 {offsets = [0, 0], sizes = [8, 10], strides = [1, 1]} : vector<8x512xf32> to vector<8x10xf32>
    %51 = arith.negf %50 : vector<8x10xf32>
    %52 = math.exp %51 : vector<8x10xf32>
    %cst_19 = arith.constant 1.000000e+00 : f32
    %53 = vector.broadcast %cst_19 : f32 to vector<8x10xf32>
    %54 = arith.addf %53, %52 : vector<8x10xf32>
    %55 = arith.divf %53, %54 : vector<8x10xf32>
    %56 = vector.extract_strided_slice %49 {offsets = [0, 128], sizes = [8, 10], strides = [1, 1]} : vector<8x512xf32> to vector<8x10xf32>
    %57 = arith.negf %56 : vector<8x10xf32>
    %58 = math.exp %57 : vector<8x10xf32>
    %cst_20 = arith.constant 1.000000e+00 : f32
    %59 = vector.broadcast %cst_20 : f32 to vector<8x10xf32>
    %60 = arith.addf %59, %58 : vector<8x10xf32>
    %61 = arith.divf %59, %60 : vector<8x10xf32>
    %62 = vector.extract_strided_slice %49 {offsets = [0, 256], sizes = [8, 10], strides = [1, 1]} : vector<8x512xf32> to vector<8x10xf32>
    %63 = math.tanh %62 : vector<8x10xf32>
    %64 = vector.extract_strided_slice %49 {offsets = [0, 384], sizes = [8, 10], strides = [1, 1]} : vector<8x512xf32> to vector<8x10xf32>
    %65 = arith.negf %64 : vector<8x10xf32>
    %66 = math.exp %65 : vector<8x10xf32>
    %cst_21 = arith.constant 1.000000e+00 : f32
    %67 = vector.broadcast %cst_21 : f32 to vector<8x10xf32>
    %68 = arith.addf %67, %66 : vector<8x10xf32>
    %69 = arith.divf %67, %68 : vector<8x10xf32>
    %70 = arith.mulf %61, %7 : vector<8x10xf32>
    %71 = arith.mulf %55, %63 : vector<8x10xf32>
    %72 = arith.addf %70, %71 : vector<8x10xf32>
    %73 = math.tanh %72 : vector<8x10xf32>
    %74 = arith.mulf %69, %73 : vector<8x10xf32>
    %75 = vector.extract_strided_slice %4 {offsets = [0, 1], sizes = [8, 1], strides = [1, 1]} : vector<8x8xf32> to vector<8x1xf32>
    %76 = vector.broadcast %75 : vector<8x1xf32> to vector<8x512xf32>
    %77 = vector.broadcast %5 : vector<1x512xf32> to vector<8x512xf32>
    %78 = arith.mulf %76, %77 : vector<8x512xf32>
    %79 = vector.broadcast %6 : vector<1x512xf32> to vector<8x512xf32>
    %80 = arith.addf %78, %79 : vector<8x512xf32>
    %c0_22 = arith.constant 0 : index
    %c0_23 = arith.constant 0 : index
    %81 = vector.load %arg2[%c0_22, %c0_23] : memref<10x512xf32, #tpu.memory_space<vmem>>, vector<10x512xf32>
    %cst_24 = arith.constant dense<0.000000e+00> : vector<8x512xf32>
    %82 = tpu.matmul %41, %81, %cst_24 {dimension_numbers = #tpu.dot_dimension_numbers<[1], [0], [0], [1], [0, 0, 1, 1], [], []>} : vector<8x10xf32>, vector<10x512xf32>, vector<8x512xf32> -> vector<8x512xf32>
    %83 = arith.addf %80, %82 : vector<8x512xf32>
    %84 = vector.extract_strided_slice %83 {offsets = [0, 0], sizes = [8, 10], strides = [1, 1]} : vector<8x512xf32> to vector<8x10xf32>
    %85 = arith.negf %84 : vector<8x10xf32>
    %86 = math.exp %85 : vector<8x10xf32>
    %cst_25 = arith.constant 1.000000e+00 : f32
    %87 = vector.broadcast %cst_25 : f32 to vector<8x10xf32>
    %88 = arith.addf %87, %86 : vector<8x10xf32>
    %89 = arith.divf %87, %88 : vector<8x10xf32>
    %90 = vector.extract_strided_slice %83 {offsets = [0, 128], sizes = [8, 10], strides = [1, 1]} : vector<8x512xf32> to vector<8x10xf32>
    %91 = arith.negf %90 : vector<8x10xf32>
    %92 = math.exp %91 : vector<8x10xf32>
    %cst_26 = arith.constant 1.000000e+00 : f32
    %93 = vector.broadcast %cst_26 : f32 to vector<8x10xf32>
    %94 = arith.addf %93, %92 : vector<8x10xf32>
    %95 = arith.divf %93, %94 : vector<8x10xf32>
    %96 = vector.extract_strided_slice %83 {offsets = [0, 256], sizes = [8, 10], strides = [1, 1]} : vector<8x512xf32> to vector<8x10xf32>
    %97 = math.tanh %96 : vector<8x10xf32>
    %98 = vector.extract_strided_slice %83 {offsets = [0, 384], sizes = [8, 10], strides = [1, 1]} : vector<8x512xf32> to vector<8x10xf32>
    %99 = arith.negf %98 : vector<8x10xf32>
    %100 = math.exp %99 : vector<8x10xf32>
    %cst_27 = arith.constant 1.000000e+00 : f32
    %101 = vector.broadcast %cst_27 : f32 to vector<8x10xf32>
    %102 = arith.addf %101, %100 : vector<8x10xf32>
    %103 = arith.divf %101, %102 : vector<8x10xf32>
    %104 = arith.mulf %95, %39 : vector<8x10xf32>
    %105 = arith.mulf %89, %97 : vector<8x10xf32>
    %106 = arith.addf %104, %105 : vector<8x10xf32>
    %107 = math.tanh %106 : vector<8x10xf32>
    %108 = arith.mulf %103, %107 : vector<8x10xf32>
    %c0_28 = arith.constant 0 : index
    %c0_29 = arith.constant 0 : index
    %109 = vector.load %arg4[%c0_28, %c0_29] : memref<10x512xf32, #tpu.memory_space<vmem>>, vector<10x512xf32>
    %cst_30 = arith.constant dense<0.000000e+00> : vector<8x512xf32>
    %110 = tpu.matmul %108, %109, %cst_30 {dimension_numbers = #tpu.dot_dimension_numbers<[1], [0], [0], [1], [0, 0, 1, 1], [], []>} : vector<8x10xf32>, vector<10x512xf32>, vector<8x512xf32> -> vector<8x512xf32>
    %c0_31 = arith.constant 0 : index
    %c0_32 = arith.constant 0 : index
    %111 = vector.load %arg5[%c0_31, %c0_32] : memref<10x512xf32, #tpu.memory_space<vmem>>, vector<10x512xf32>
    %cst_33 = arith.constant dense<0.000000e+00> : vector<8x512xf32>
    %112 = tpu.matmul %74, %111, %cst_33 {dimension_numbers = #tpu.dot_dimension_numbers<[1], [0], [0], [1], [0, 0, 1, 1], [], []>} : vector<8x10xf32>, vector<10x512xf32>, vector<8x512xf32> -> vector<8x512xf32>
    %113 = arith.addf %110, %112 : vector<8x512xf32>
    %c0_34 = arith.constant 0 : index
    %c0_35 = arith.constant 0 : index
    %114 = vector.load %arg6[%c0_34, %c0_35] : memref<1x512xf32, #tpu.memory_space<vmem>>, vector<1x512xf32>
    %115 = vector.broadcast %114 : vector<1x512xf32> to vector<8x512xf32>
    %116 = arith.addf %113, %115 : vector<8x512xf32>
    %117 = vector.extract_strided_slice %116 {offsets = [0, 0], sizes = [8, 10], strides = [1, 1]} : vector<8x512xf32> to vector<8x10xf32>
    %118 = arith.negf %117 : vector<8x10xf32>
    %119 = math.exp %118 : vector<8x10xf32>
    %cst_36 = arith.constant 1.000000e+00 : f32
    %120 = vector.broadcast %cst_36 : f32 to vector<8x10xf32>
    %121 = arith.addf %120, %119 : vector<8x10xf32>
    %122 = arith.divf %120, %121 : vector<8x10xf32>
    %123 = vector.extract_strided_slice %116 {offsets = [0, 128], sizes = [8, 10], strides = [1, 1]} : vector<8x512xf32> to vector<8x10xf32>
    %124 = arith.negf %123 : vector<8x10xf32>
    %125 = math.exp %124 : vector<8x10xf32>
    %cst_37 = arith.constant 1.000000e+00 : f32
    %126 = vector.broadcast %cst_37 : f32 to vector<8x10xf32>
    %127 = arith.addf %126, %125 : vector<8x10xf32>
    %128 = arith.divf %126, %127 : vector<8x10xf32>
    %129 = vector.extract_strided_slice %116 {offsets = [0, 256], sizes = [8, 10], strides = [1, 1]} : vector<8x512xf32> to vector<8x10xf32>
    %130 = math.tanh %129 : vector<8x10xf32>
    %131 = vector.extract_strided_slice %116 {offsets = [0, 384], sizes = [8, 10], strides = [1, 1]} : vector<8x512xf32> to vector<8x10xf32>
    %132 = arith.negf %131 : vector<8x10xf32>
    %133 = math.exp %132 : vector<8x10xf32>
    %cst_38 = arith.constant 1.000000e+00 : f32
    %134 = vector.broadcast %cst_38 : f32 to vector<8x10xf32>
    %135 = arith.addf %134, %133 : vector<8x10xf32>
    %136 = arith.divf %134, %135 : vector<8x10xf32>
    %137 = arith.mulf %128, %72 : vector<8x10xf32>
    %138 = arith.mulf %122, %130 : vector<8x10xf32>
    %139 = arith.addf %137, %138 : vector<8x10xf32>
    %140 = math.tanh %139 : vector<8x10xf32>
    %141 = arith.mulf %136, %140 : vector<8x10xf32>
    %142 = vector.extract_strided_slice %4 {offsets = [0, 2], sizes = [8, 1], strides = [1, 1]} : vector<8x8xf32> to vector<8x1xf32>
    %143 = vector.broadcast %142 : vector<8x1xf32> to vector<8x512xf32>
    %144 = vector.broadcast %5 : vector<1x512xf32> to vector<8x512xf32>
    %145 = arith.mulf %143, %144 : vector<8x512xf32>
    %146 = vector.broadcast %6 : vector<1x512xf32> to vector<8x512xf32>
    %147 = arith.addf %145, %146 : vector<8x512xf32>
    %c0_39 = arith.constant 0 : index
    %c0_40 = arith.constant 0 : index
    %148 = vector.load %arg2[%c0_39, %c0_40] : memref<10x512xf32, #tpu.memory_space<vmem>>, vector<10x512xf32>
    %cst_41 = arith.constant dense<0.000000e+00> : vector<8x512xf32>
    %149 = tpu.matmul %108, %148, %cst_41 {dimension_numbers = #tpu.dot_dimension_numbers<[1], [0], [0], [1], [0, 0, 1, 1], [], []>} : vector<8x10xf32>, vector<10x512xf32>, vector<8x512xf32> -> vector<8x512xf32>
    %150 = arith.addf %147, %149 : vector<8x512xf32>
    %151 = vector.extract_strided_slice %150 {offsets = [0, 0], sizes = [8, 10], strides = [1, 1]} : vector<8x512xf32> to vector<8x10xf32>
    %152 = arith.negf %151 : vector<8x10xf32>
    %153 = math.exp %152 : vector<8x10xf32>
    %cst_42 = arith.constant 1.000000e+00 : f32
    %154 = vector.broadcast %cst_42 : f32 to vector<8x10xf32>
    %155 = arith.addf %154, %153 : vector<8x10xf32>
    %156 = arith.divf %154, %155 : vector<8x10xf32>
    %157 = vector.extract_strided_slice %150 {offsets = [0, 128], sizes = [8, 10], strides = [1, 1]} : vector<8x512xf32> to vector<8x10xf32>
    %158 = arith.negf %157 : vector<8x10xf32>
    %159 = math.exp %158 : vector<8x10xf32>
    %cst_43 = arith.constant 1.000000e+00 : f32
    %160 = vector.broadcast %cst_43 : f32 to vector<8x10xf32>
    %161 = arith.addf %160, %159 : vector<8x10xf32>
    %162 = arith.divf %160, %161 : vector<8x10xf32>
    %163 = vector.extract_strided_slice %150 {offsets = [0, 256], sizes = [8, 10], strides = [1, 1]} : vector<8x512xf32> to vector<8x10xf32>
    %164 = math.tanh %163 : vector<8x10xf32>
    %165 = vector.extract_strided_slice %150 {offsets = [0, 384], sizes = [8, 10], strides = [1, 1]} : vector<8x512xf32> to vector<8x10xf32>
    %166 = arith.negf %165 : vector<8x10xf32>
    %167 = math.exp %166 : vector<8x10xf32>
    %cst_44 = arith.constant 1.000000e+00 : f32
    %168 = vector.broadcast %cst_44 : f32 to vector<8x10xf32>
    %169 = arith.addf %168, %167 : vector<8x10xf32>
    %170 = arith.divf %168, %169 : vector<8x10xf32>
    %171 = arith.mulf %162, %106 : vector<8x10xf32>
    %172 = arith.mulf %156, %164 : vector<8x10xf32>
    %173 = arith.addf %171, %172 : vector<8x10xf32>
    %174 = math.tanh %173 : vector<8x10xf32>
    %175 = arith.mulf %170, %174 : vector<8x10xf32>
    %c0_45 = arith.constant 0 : index
    %c0_46 = arith.constant 0 : index
    %176 = vector.load %arg4[%c0_45, %c0_46] : memref<10x512xf32, #tpu.memory_space<vmem>>, vector<10x512xf32>
    %cst_47 = arith.constant dense<0.000000e+00> : vector<8x512xf32>
    %177 = tpu.matmul %175, %176, %cst_47 {dimension_numbers = #tpu.dot_dimension_numbers<[1], [0], [0], [1], [0, 0, 1, 1], [], []>} : vector<8x10xf32>, vector<10x512xf32>, vector<8x512xf32> -> vector<8x512xf32>
    %c0_48 = arith.constant 0 : index
    %c0_49 = arith.constant 0 : index
    %178 = vector.load %arg5[%c0_48, %c0_49] : memref<10x512xf32, #tpu.memory_space<vmem>>, vector<10x512xf32>
    %cst_50 = arith.constant dense<0.000000e+00> : vector<8x512xf32>
    %179 = tpu.matmul %141, %178, %cst_50 {dimension_numbers = #tpu.dot_dimension_numbers<[1], [0], [0], [1], [0, 0, 1, 1], [], []>} : vector<8x10xf32>, vector<10x512xf32>, vector<8x512xf32> -> vector<8x512xf32>
    %180 = arith.addf %177, %179 : vector<8x512xf32>
    %c0_51 = arith.constant 0 : index
    %c0_52 = arith.constant 0 : index
    %181 = vector.load %arg6[%c0_51, %c0_52] : memref<1x512xf32, #tpu.memory_space<vmem>>, vector<1x512xf32>
    %182 = vector.broadcast %181 : vector<1x512xf32> to vector<8x512xf32>
    %183 = arith.addf %180, %182 : vector<8x512xf32>
    %184 = vector.extract_strided_slice %183 {offsets = [0, 0], sizes = [8, 10], strides = [1, 1]} : vector<8x512xf32> to vector<8x10xf32>
    %185 = arith.negf %184 : vector<8x10xf32>
    %186 = math.exp %185 : vector<8x10xf32>
    %cst_53 = arith.constant 1.000000e+00 : f32
    %187 = vector.broadcast %cst_53 : f32 to vector<8x10xf32>
    %188 = arith.addf %187, %186 : vector<8x10xf32>
    %189 = arith.divf %187, %188 : vector<8x10xf32>
    %190 = vector.extract_strided_slice %183 {offsets = [0, 128], sizes = [8, 10], strides = [1, 1]} : vector<8x512xf32> to vector<8x10xf32>
    %191 = arith.negf %190 : vector<8x10xf32>
    %192 = math.exp %191 : vector<8x10xf32>
    %cst_54 = arith.constant 1.000000e+00 : f32
    %193 = vector.broadcast %cst_54 : f32 to vector<8x10xf32>
    %194 = arith.addf %193, %192 : vector<8x10xf32>
    %195 = arith.divf %193, %194 : vector<8x10xf32>
    %196 = vector.extract_strided_slice %183 {offsets = [0, 256], sizes = [8, 10], strides = [1, 1]} : vector<8x512xf32> to vector<8x10xf32>
    %197 = math.tanh %196 : vector<8x10xf32>
    %198 = vector.extract_strided_slice %183 {offsets = [0, 384], sizes = [8, 10], strides = [1, 1]} : vector<8x512xf32> to vector<8x10xf32>
    %199 = arith.negf %198 : vector<8x10xf32>
    %200 = math.exp %199 : vector<8x10xf32>
    %cst_55 = arith.constant 1.000000e+00 : f32
    %201 = vector.broadcast %cst_55 : f32 to vector<8x10xf32>
    %202 = arith.addf %201, %200 : vector<8x10xf32>
    %203 = arith.divf %201, %202 : vector<8x10xf32>
    %204 = arith.mulf %195, %139 : vector<8x10xf32>
    %205 = arith.mulf %189, %197 : vector<8x10xf32>
    %206 = arith.addf %204, %205 : vector<8x10xf32>
    %207 = math.tanh %206 : vector<8x10xf32>
    %208 = arith.mulf %203, %207 : vector<8x10xf32>
    %209 = vector.extract_strided_slice %4 {offsets = [0, 3], sizes = [8, 1], strides = [1, 1]} : vector<8x8xf32> to vector<8x1xf32>
    %210 = vector.broadcast %209 : vector<8x1xf32> to vector<8x512xf32>
    %211 = vector.broadcast %5 : vector<1x512xf32> to vector<8x512xf32>
    %212 = arith.mulf %210, %211 : vector<8x512xf32>
    %213 = vector.broadcast %6 : vector<1x512xf32> to vector<8x512xf32>
    %214 = arith.addf %212, %213 : vector<8x512xf32>
    %c0_56 = arith.constant 0 : index
    %c0_57 = arith.constant 0 : index
    %215 = vector.load %arg2[%c0_56, %c0_57] : memref<10x512xf32, #tpu.memory_space<vmem>>, vector<10x512xf32>
    %cst_58 = arith.constant dense<0.000000e+00> : vector<8x512xf32>
    %216 = tpu.matmul %175, %215, %cst_58 {dimension_numbers = #tpu.dot_dimension_numbers<[1], [0], [0], [1], [0, 0, 1, 1], [], []>} : vector<8x10xf32>, vector<10x512xf32>, vector<8x512xf32> -> vector<8x512xf32>
    %217 = arith.addf %214, %216 : vector<8x512xf32>
    %218 = vector.extract_strided_slice %217 {offsets = [0, 0], sizes = [8, 10], strides = [1, 1]} : vector<8x512xf32> to vector<8x10xf32>
    %219 = arith.negf %218 : vector<8x10xf32>
    %220 = math.exp %219 : vector<8x10xf32>
    %cst_59 = arith.constant 1.000000e+00 : f32
    %221 = vector.broadcast %cst_59 : f32 to vector<8x10xf32>
    %222 = arith.addf %221, %220 : vector<8x10xf32>
    %223 = arith.divf %221, %222 : vector<8x10xf32>
    %224 = vector.extract_strided_slice %217 {offsets = [0, 128], sizes = [8, 10], strides = [1, 1]} : vector<8x512xf32> to vector<8x10xf32>
    %225 = arith.negf %224 : vector<8x10xf32>
    %226 = math.exp %225 : vector<8x10xf32>
    %cst_60 = arith.constant 1.000000e+00 : f32
    %227 = vector.broadcast %cst_60 : f32 to vector<8x10xf32>
    %228 = arith.addf %227, %226 : vector<8x10xf32>
    %229 = arith.divf %227, %228 : vector<8x10xf32>
    %230 = vector.extract_strided_slice %217 {offsets = [0, 256], sizes = [8, 10], strides = [1, 1]} : vector<8x512xf32> to vector<8x10xf32>
    %231 = math.tanh %230 : vector<8x10xf32>
    %232 = vector.extract_strided_slice %217 {offsets = [0, 384], sizes = [8, 10], strides = [1, 1]} : vector<8x512xf32> to vector<8x10xf32>
    %233 = arith.negf %232 : vector<8x10xf32>
    %234 = math.exp %233 : vector<8x10xf32>
    %cst_61 = arith.constant 1.000000e+00 : f32
    %235 = vector.broadcast %cst_61 : f32 to vector<8x10xf32>
    %236 = arith.addf %235, %234 : vector<8x10xf32>
    %237 = arith.divf %235, %236 : vector<8x10xf32>
    %238 = arith.mulf %229, %173 : vector<8x10xf32>
    %239 = arith.mulf %223, %231 : vector<8x10xf32>
    %240 = arith.addf %238, %239 : vector<8x10xf32>
    %241 = math.tanh %240 : vector<8x10xf32>
    %242 = arith.mulf %237, %241 : vector<8x10xf32>
    %c0_62 = arith.constant 0 : index
    %c0_63 = arith.constant 0 : index
    %243 = vector.load %arg4[%c0_62, %c0_63] : memref<10x512xf32, #tpu.memory_space<vmem>>, vector<10x512xf32>
    %cst_64 = arith.constant dense<0.000000e+00> : vector<8x512xf32>
    %244 = tpu.matmul %242, %243, %cst_64 {dimension_numbers = #tpu.dot_dimension_numbers<[1], [0], [0], [1], [0, 0, 1, 1], [], []>} : vector<8x10xf32>, vector<10x512xf32>, vector<8x512xf32> -> vector<8x512xf32>
    %c0_65 = arith.constant 0 : index
    %c0_66 = arith.constant 0 : index
    %245 = vector.load %arg5[%c0_65, %c0_66] : memref<10x512xf32, #tpu.memory_space<vmem>>, vector<10x512xf32>
    %cst_67 = arith.constant dense<0.000000e+00> : vector<8x512xf32>
    %246 = tpu.matmul %208, %245, %cst_67 {dimension_numbers = #tpu.dot_dimension_numbers<[1], [0], [0], [1], [0, 0, 1, 1], [], []>} : vector<8x10xf32>, vector<10x512xf32>, vector<8x512xf32> -> vector<8x512xf32>
    %247 = arith.addf %244, %246 : vector<8x512xf32>
    %c0_68 = arith.constant 0 : index
    %c0_69 = arith.constant 0 : index
    %248 = vector.load %arg6[%c0_68, %c0_69] : memref<1x512xf32, #tpu.memory_space<vmem>>, vector<1x512xf32>
    %249 = vector.broadcast %248 : vector<1x512xf32> to vector<8x512xf32>
    %250 = arith.addf %247, %249 : vector<8x512xf32>
    %251 = vector.extract_strided_slice %250 {offsets = [0, 0], sizes = [8, 10], strides = [1, 1]} : vector<8x512xf32> to vector<8x10xf32>
    %252 = arith.negf %251 : vector<8x10xf32>
    %253 = math.exp %252 : vector<8x10xf32>
    %cst_70 = arith.constant 1.000000e+00 : f32
    %254 = vector.broadcast %cst_70 : f32 to vector<8x10xf32>
    %255 = arith.addf %254, %253 : vector<8x10xf32>
    %256 = arith.divf %254, %255 : vector<8x10xf32>
    %257 = vector.extract_strided_slice %250 {offsets = [0, 128], sizes = [8, 10], strides = [1, 1]} : vector<8x512xf32> to vector<8x10xf32>
    %258 = arith.negf %257 : vector<8x10xf32>
    %259 = math.exp %258 : vector<8x10xf32>
    %cst_71 = arith.constant 1.000000e+00 : f32
    %260 = vector.broadcast %cst_71 : f32 to vector<8x10xf32>
    %261 = arith.addf %260, %259 : vector<8x10xf32>
    %262 = arith.divf %260, %261 : vector<8x10xf32>
    %263 = vector.extract_strided_slice %250 {offsets = [0, 256], sizes = [8, 10], strides = [1, 1]} : vector<8x512xf32> to vector<8x10xf32>
    %264 = math.tanh %263 : vector<8x10xf32>
    %265 = vector.extract_strided_slice %250 {offsets = [0, 384], sizes = [8, 10], strides = [1, 1]} : vector<8x512xf32> to vector<8x10xf32>
    %266 = arith.negf %265 : vector<8x10xf32>
    %267 = math.exp %266 : vector<8x10xf32>
    %cst_72 = arith.constant 1.000000e+00 : f32
    %268 = vector.broadcast %cst_72 : f32 to vector<8x10xf32>
    %269 = arith.addf %268, %267 : vector<8x10xf32>
    %270 = arith.divf %268, %269 : vector<8x10xf32>
    %271 = arith.mulf %262, %206 : vector<8x10xf32>
    %272 = arith.mulf %256, %264 : vector<8x10xf32>
    %273 = arith.addf %271, %272 : vector<8x10xf32>
    %274 = math.tanh %273 : vector<8x10xf32>
    %275 = arith.mulf %270, %274 : vector<8x10xf32>
    %276 = vector.extract_strided_slice %4 {offsets = [0, 4], sizes = [8, 1], strides = [1, 1]} : vector<8x8xf32> to vector<8x1xf32>
    %277 = vector.broadcast %276 : vector<8x1xf32> to vector<8x512xf32>
    %278 = vector.broadcast %5 : vector<1x512xf32> to vector<8x512xf32>
    %279 = arith.mulf %277, %278 : vector<8x512xf32>
    %280 = vector.broadcast %6 : vector<1x512xf32> to vector<8x512xf32>
    %281 = arith.addf %279, %280 : vector<8x512xf32>
    %c0_73 = arith.constant 0 : index
    %c0_74 = arith.constant 0 : index
    %282 = vector.load %arg2[%c0_73, %c0_74] : memref<10x512xf32, #tpu.memory_space<vmem>>, vector<10x512xf32>
    %cst_75 = arith.constant dense<0.000000e+00> : vector<8x512xf32>
    %283 = tpu.matmul %242, %282, %cst_75 {dimension_numbers = #tpu.dot_dimension_numbers<[1], [0], [0], [1], [0, 0, 1, 1], [], []>} : vector<8x10xf32>, vector<10x512xf32>, vector<8x512xf32> -> vector<8x512xf32>
    %284 = arith.addf %281, %283 : vector<8x512xf32>
    %285 = vector.extract_strided_slice %284 {offsets = [0, 0], sizes = [8, 10], strides = [1, 1]} : vector<8x512xf32> to vector<8x10xf32>
    %286 = arith.negf %285 : vector<8x10xf32>
    %287 = math.exp %286 : vector<8x10xf32>
    %cst_76 = arith.constant 1.000000e+00 : f32
    %288 = vector.broadcast %cst_76 : f32 to vector<8x10xf32>
    %289 = arith.addf %288, %287 : vector<8x10xf32>
    %290 = arith.divf %288, %289 : vector<8x10xf32>
    %291 = vector.extract_strided_slice %284 {offsets = [0, 128], sizes = [8, 10], strides = [1, 1]} : vector<8x512xf32> to vector<8x10xf32>
    %292 = arith.negf %291 : vector<8x10xf32>
    %293 = math.exp %292 : vector<8x10xf32>
    %cst_77 = arith.constant 1.000000e+00 : f32
    %294 = vector.broadcast %cst_77 : f32 to vector<8x10xf32>
    %295 = arith.addf %294, %293 : vector<8x10xf32>
    %296 = arith.divf %294, %295 : vector<8x10xf32>
    %297 = vector.extract_strided_slice %284 {offsets = [0, 256], sizes = [8, 10], strides = [1, 1]} : vector<8x512xf32> to vector<8x10xf32>
    %298 = math.tanh %297 : vector<8x10xf32>
    %299 = vector.extract_strided_slice %284 {offsets = [0, 384], sizes = [8, 10], strides = [1, 1]} : vector<8x512xf32> to vector<8x10xf32>
    %300 = arith.negf %299 : vector<8x10xf32>
    %301 = math.exp %300 : vector<8x10xf32>
    %cst_78 = arith.constant 1.000000e+00 : f32
    %302 = vector.broadcast %cst_78 : f32 to vector<8x10xf32>
    %303 = arith.addf %302, %301 : vector<8x10xf32>
    %304 = arith.divf %302, %303 : vector<8x10xf32>
    %305 = arith.mulf %296, %240 : vector<8x10xf32>
    %306 = arith.mulf %290, %298 : vector<8x10xf32>
    %307 = arith.addf %305, %306 : vector<8x10xf32>
    %308 = math.tanh %307 : vector<8x10xf32>
    %309 = arith.mulf %304, %308 : vector<8x10xf32>
    %c0_79 = arith.constant 0 : index
    %c0_80 = arith.constant 0 : index
    %310 = vector.load %arg4[%c0_79, %c0_80] : memref<10x512xf32, #tpu.memory_space<vmem>>, vector<10x512xf32>
    %cst_81 = arith.constant dense<0.000000e+00> : vector<8x512xf32>
    %311 = tpu.matmul %309, %310, %cst_81 {dimension_numbers = #tpu.dot_dimension_numbers<[1], [0], [0], [1], [0, 0, 1, 1], [], []>} : vector<8x10xf32>, vector<10x512xf32>, vector<8x512xf32> -> vector<8x512xf32>
    %c0_82 = arith.constant 0 : index
    %c0_83 = arith.constant 0 : index
    %312 = vector.load %arg5[%c0_82, %c0_83] : memref<10x512xf32, #tpu.memory_space<vmem>>, vector<10x512xf32>
    %cst_84 = arith.constant dense<0.000000e+00> : vector<8x512xf32>
    %313 = tpu.matmul %275, %312, %cst_84 {dimension_numbers = #tpu.dot_dimension_numbers<[1], [0], [0], [1], [0, 0, 1, 1], [], []>} : vector<8x10xf32>, vector<10x512xf32>, vector<8x512xf32> -> vector<8x512xf32>
    %314 = arith.addf %311, %313 : vector<8x512xf32>
    %c0_85 = arith.constant 0 : index
    %c0_86 = arith.constant 0 : index
    %315 = vector.load %arg6[%c0_85, %c0_86] : memref<1x512xf32, #tpu.memory_space<vmem>>, vector<1x512xf32>
    %316 = vector.broadcast %315 : vector<1x512xf32> to vector<8x512xf32>
    %317 = arith.addf %314, %316 : vector<8x512xf32>
    %318 = vector.extract_strided_slice %317 {offsets = [0, 0], sizes = [8, 10], strides = [1, 1]} : vector<8x512xf32> to vector<8x10xf32>
    %319 = arith.negf %318 : vector<8x10xf32>
    %320 = math.exp %319 : vector<8x10xf32>
    %cst_87 = arith.constant 1.000000e+00 : f32
    %321 = vector.broadcast %cst_87 : f32 to vector<8x10xf32>
    %322 = arith.addf %321, %320 : vector<8x10xf32>
    %323 = arith.divf %321, %322 : vector<8x10xf32>
    %324 = vector.extract_strided_slice %317 {offsets = [0, 128], sizes = [8, 10], strides = [1, 1]} : vector<8x512xf32> to vector<8x10xf32>
    %325 = arith.negf %324 : vector<8x10xf32>
    %326 = math.exp %325 : vector<8x10xf32>
    %cst_88 = arith.constant 1.000000e+00 : f32
    %327 = vector.broadcast %cst_88 : f32 to vector<8x10xf32>
    %328 = arith.addf %327, %326 : vector<8x10xf32>
    %329 = arith.divf %327, %328 : vector<8x10xf32>
    %330 = vector.extract_strided_slice %317 {offsets = [0, 256], sizes = [8, 10], strides = [1, 1]} : vector<8x512xf32> to vector<8x10xf32>
    %331 = math.tanh %330 : vector<8x10xf32>
    %332 = vector.extract_strided_slice %317 {offsets = [0, 384], sizes = [8, 10], strides = [1, 1]} : vector<8x512xf32> to vector<8x10xf32>
    %333 = arith.negf %332 : vector<8x10xf32>
    %334 = math.exp %333 : vector<8x10xf32>
    %cst_89 = arith.constant 1.000000e+00 : f32
    %335 = vector.broadcast %cst_89 : f32 to vector<8x10xf32>
    %336 = arith.addf %335, %334 : vector<8x10xf32>
    %337 = arith.divf %335, %336 : vector<8x10xf32>
    %338 = arith.mulf %329, %273 : vector<8x10xf32>
    %339 = arith.mulf %323, %331 : vector<8x10xf32>
    %340 = arith.addf %338, %339 : vector<8x10xf32>
    %341 = math.tanh %340 : vector<8x10xf32>
    %342 = arith.mulf %337, %341 : vector<8x10xf32>
    %343 = vector.extract_strided_slice %4 {offsets = [0, 5], sizes = [8, 1], strides = [1, 1]} : vector<8x8xf32> to vector<8x1xf32>
    %344 = vector.broadcast %343 : vector<8x1xf32> to vector<8x512xf32>
    %345 = vector.broadcast %5 : vector<1x512xf32> to vector<8x512xf32>
    %346 = arith.mulf %344, %345 : vector<8x512xf32>
    %347 = vector.broadcast %6 : vector<1x512xf32> to vector<8x512xf32>
    %348 = arith.addf %346, %347 : vector<8x512xf32>
    %c0_90 = arith.constant 0 : index
    %c0_91 = arith.constant 0 : index
    %349 = vector.load %arg2[%c0_90, %c0_91] : memref<10x512xf32, #tpu.memory_space<vmem>>, vector<10x512xf32>
    %cst_92 = arith.constant dense<0.000000e+00> : vector<8x512xf32>
    %350 = tpu.matmul %309, %349, %cst_92 {dimension_numbers = #tpu.dot_dimension_numbers<[1], [0], [0], [1], [0, 0, 1, 1], [], []>} : vector<8x10xf32>, vector<10x512xf32>, vector<8x512xf32> -> vector<8x512xf32>
    %351 = arith.addf %348, %350 : vector<8x512xf32>
    %352 = vector.extract_strided_slice %351 {offsets = [0, 0], sizes = [8, 10], strides = [1, 1]} : vector<8x512xf32> to vector<8x10xf32>
    %353 = arith.negf %352 : vector<8x10xf32>
    %354 = math.exp %353 : vector<8x10xf32>
    %cst_93 = arith.constant 1.000000e+00 : f32
    %355 = vector.broadcast %cst_93 : f32 to vector<8x10xf32>
    %356 = arith.addf %355, %354 : vector<8x10xf32>
    %357 = arith.divf %355, %356 : vector<8x10xf32>
    %358 = vector.extract_strided_slice %351 {offsets = [0, 128], sizes = [8, 10], strides = [1, 1]} : vector<8x512xf32> to vector<8x10xf32>
    %359 = arith.negf %358 : vector<8x10xf32>
    %360 = math.exp %359 : vector<8x10xf32>
    %cst_94 = arith.constant 1.000000e+00 : f32
    %361 = vector.broadcast %cst_94 : f32 to vector<8x10xf32>
    %362 = arith.addf %361, %360 : vector<8x10xf32>
    %363 = arith.divf %361, %362 : vector<8x10xf32>
    %364 = vector.extract_strided_slice %351 {offsets = [0, 256], sizes = [8, 10], strides = [1, 1]} : vector<8x512xf32> to vector<8x10xf32>
    %365 = math.tanh %364 : vector<8x10xf32>
    %366 = vector.extract_strided_slice %351 {offsets = [0, 384], sizes = [8, 10], strides = [1, 1]} : vector<8x512xf32> to vector<8x10xf32>
    %367 = arith.negf %366 : vector<8x10xf32>
    %368 = math.exp %367 : vector<8x10xf32>
    %cst_95 = arith.constant 1.000000e+00 : f32
    %369 = vector.broadcast %cst_95 : f32 to vector<8x10xf32>
    %370 = arith.addf %369, %368 : vector<8x10xf32>
    %371 = arith.divf %369, %370 : vector<8x10xf32>
    %372 = arith.mulf %363, %307 : vector<8x10xf32>
    %373 = arith.mulf %357, %365 : vector<8x10xf32>
    %374 = arith.addf %372, %373 : vector<8x10xf32>
    %375 = math.tanh %374 : vector<8x10xf32>
    %376 = arith.mulf %371, %375 : vector<8x10xf32>
    %c0_96 = arith.constant 0 : index
    %c0_97 = arith.constant 0 : index
    %377 = vector.load %arg4[%c0_96, %c0_97] : memref<10x512xf32, #tpu.memory_space<vmem>>, vector<10x512xf32>
    %cst_98 = arith.constant dense<0.000000e+00> : vector<8x512xf32>
    %378 = tpu.matmul %376, %377, %cst_98 {dimension_numbers = #tpu.dot_dimension_numbers<[1], [0], [0], [1], [0, 0, 1, 1], [], []>} : vector<8x10xf32>, vector<10x512xf32>, vector<8x512xf32> -> vector<8x512xf32>
    %c0_99 = arith.constant 0 : index
    %c0_100 = arith.constant 0 : index
    %379 = vector.load %arg5[%c0_99, %c0_100] : memref<10x512xf32, #tpu.memory_space<vmem>>, vector<10x512xf32>
    %cst_101 = arith.constant dense<0.000000e+00> : vector<8x512xf32>
    %380 = tpu.matmul %342, %379, %cst_101 {dimension_numbers = #tpu.dot_dimension_numbers<[1], [0], [0], [1], [0, 0, 1, 1], [], []>} : vector<8x10xf32>, vector<10x512xf32>, vector<8x512xf32> -> vector<8x512xf32>
    %381 = arith.addf %378, %380 : vector<8x512xf32>
    %c0_102 = arith.constant 0 : index
    %c0_103 = arith.constant 0 : index
    %382 = vector.load %arg6[%c0_102, %c0_103] : memref<1x512xf32, #tpu.memory_space<vmem>>, vector<1x512xf32>
    %383 = vector.broadcast %382 : vector<1x512xf32> to vector<8x512xf32>
    %384 = arith.addf %381, %383 : vector<8x512xf32>
    %385 = vector.extract_strided_slice %384 {offsets = [0, 0], sizes = [8, 10], strides = [1, 1]} : vector<8x512xf32> to vector<8x10xf32>
    %386 = arith.negf %385 : vector<8x10xf32>
    %387 = math.exp %386 : vector<8x10xf32>
    %cst_104 = arith.constant 1.000000e+00 : f32
    %388 = vector.broadcast %cst_104 : f32 to vector<8x10xf32>
    %389 = arith.addf %388, %387 : vector<8x10xf32>
    %390 = arith.divf %388, %389 : vector<8x10xf32>
    %391 = vector.extract_strided_slice %384 {offsets = [0, 128], sizes = [8, 10], strides = [1, 1]} : vector<8x512xf32> to vector<8x10xf32>
    %392 = arith.negf %391 : vector<8x10xf32>
    %393 = math.exp %392 : vector<8x10xf32>
    %cst_105 = arith.constant 1.000000e+00 : f32
    %394 = vector.broadcast %cst_105 : f32 to vector<8x10xf32>
    %395 = arith.addf %394, %393 : vector<8x10xf32>
    %396 = arith.divf %394, %395 : vector<8x10xf32>
    %397 = vector.extract_strided_slice %384 {offsets = [0, 256], sizes = [8, 10], strides = [1, 1]} : vector<8x512xf32> to vector<8x10xf32>
    %398 = math.tanh %397 : vector<8x10xf32>
    %399 = vector.extract_strided_slice %384 {offsets = [0, 384], sizes = [8, 10], strides = [1, 1]} : vector<8x512xf32> to vector<8x10xf32>
    %400 = arith.negf %399 : vector<8x10xf32>
    %401 = math.exp %400 : vector<8x10xf32>
    %cst_106 = arith.constant 1.000000e+00 : f32
    %402 = vector.broadcast %cst_106 : f32 to vector<8x10xf32>
    %403 = arith.addf %402, %401 : vector<8x10xf32>
    %404 = arith.divf %402, %403 : vector<8x10xf32>
    %405 = arith.mulf %396, %340 : vector<8x10xf32>
    %406 = arith.mulf %390, %398 : vector<8x10xf32>
    %407 = arith.addf %405, %406 : vector<8x10xf32>
    %408 = math.tanh %407 : vector<8x10xf32>
    %409 = arith.mulf %404, %408 : vector<8x10xf32>
    %410 = vector.extract_strided_slice %4 {offsets = [0, 6], sizes = [8, 1], strides = [1, 1]} : vector<8x8xf32> to vector<8x1xf32>
    %411 = vector.broadcast %410 : vector<8x1xf32> to vector<8x512xf32>
    %412 = vector.broadcast %5 : vector<1x512xf32> to vector<8x512xf32>
    %413 = arith.mulf %411, %412 : vector<8x512xf32>
    %414 = vector.broadcast %6 : vector<1x512xf32> to vector<8x512xf32>
    %415 = arith.addf %413, %414 : vector<8x512xf32>
    %c0_107 = arith.constant 0 : index
    %c0_108 = arith.constant 0 : index
    %416 = vector.load %arg2[%c0_107, %c0_108] : memref<10x512xf32, #tpu.memory_space<vmem>>, vector<10x512xf32>
    %cst_109 = arith.constant dense<0.000000e+00> : vector<8x512xf32>
    %417 = tpu.matmul %376, %416, %cst_109 {dimension_numbers = #tpu.dot_dimension_numbers<[1], [0], [0], [1], [0, 0, 1, 1], [], []>} : vector<8x10xf32>, vector<10x512xf32>, vector<8x512xf32> -> vector<8x512xf32>
    %418 = arith.addf %415, %417 : vector<8x512xf32>
    %419 = vector.extract_strided_slice %418 {offsets = [0, 0], sizes = [8, 10], strides = [1, 1]} : vector<8x512xf32> to vector<8x10xf32>
    %420 = arith.negf %419 : vector<8x10xf32>
    %421 = math.exp %420 : vector<8x10xf32>
    %cst_110 = arith.constant 1.000000e+00 : f32
    %422 = vector.broadcast %cst_110 : f32 to vector<8x10xf32>
    %423 = arith.addf %422, %421 : vector<8x10xf32>
    %424 = arith.divf %422, %423 : vector<8x10xf32>
    %425 = vector.extract_strided_slice %418 {offsets = [0, 128], sizes = [8, 10], strides = [1, 1]} : vector<8x512xf32> to vector<8x10xf32>
    %426 = arith.negf %425 : vector<8x10xf32>
    %427 = math.exp %426 : vector<8x10xf32>
    %cst_111 = arith.constant 1.000000e+00 : f32
    %428 = vector.broadcast %cst_111 : f32 to vector<8x10xf32>
    %429 = arith.addf %428, %427 : vector<8x10xf32>
    %430 = arith.divf %428, %429 : vector<8x10xf32>
    %431 = vector.extract_strided_slice %418 {offsets = [0, 256], sizes = [8, 10], strides = [1, 1]} : vector<8x512xf32> to vector<8x10xf32>
    %432 = math.tanh %431 : vector<8x10xf32>
    %433 = vector.extract_strided_slice %418 {offsets = [0, 384], sizes = [8, 10], strides = [1, 1]} : vector<8x512xf32> to vector<8x10xf32>
    %434 = arith.negf %433 : vector<8x10xf32>
    %435 = math.exp %434 : vector<8x10xf32>
    %cst_112 = arith.constant 1.000000e+00 : f32
    %436 = vector.broadcast %cst_112 : f32 to vector<8x10xf32>
    %437 = arith.addf %436, %435 : vector<8x10xf32>
    %438 = arith.divf %436, %437 : vector<8x10xf32>
    %439 = arith.mulf %430, %374 : vector<8x10xf32>
    %440 = arith.mulf %424, %432 : vector<8x10xf32>
    %441 = arith.addf %439, %440 : vector<8x10xf32>
    %442 = math.tanh %441 : vector<8x10xf32>
    %443 = arith.mulf %438, %442 : vector<8x10xf32>
    %c0_113 = arith.constant 0 : index
    %c0_114 = arith.constant 0 : index
    %444 = vector.load %arg4[%c0_113, %c0_114] : memref<10x512xf32, #tpu.memory_space<vmem>>, vector<10x512xf32>
    %cst_115 = arith.constant dense<0.000000e+00> : vector<8x512xf32>
    %445 = tpu.matmul %443, %444, %cst_115 {dimension_numbers = #tpu.dot_dimension_numbers<[1], [0], [0], [1], [0, 0, 1, 1], [], []>} : vector<8x10xf32>, vector<10x512xf32>, vector<8x512xf32> -> vector<8x512xf32>
    %c0_116 = arith.constant 0 : index
    %c0_117 = arith.constant 0 : index
    %446 = vector.load %arg5[%c0_116, %c0_117] : memref<10x512xf32, #tpu.memory_space<vmem>>, vector<10x512xf32>
    %cst_118 = arith.constant dense<0.000000e+00> : vector<8x512xf32>
    %447 = tpu.matmul %409, %446, %cst_118 {dimension_numbers = #tpu.dot_dimension_numbers<[1], [0], [0], [1], [0, 0, 1, 1], [], []>} : vector<8x10xf32>, vector<10x512xf32>, vector<8x512xf32> -> vector<8x512xf32>
    %448 = arith.addf %445, %447 : vector<8x512xf32>
    %c0_119 = arith.constant 0 : index
    %c0_120 = arith.constant 0 : index
    %449 = vector.load %arg6[%c0_119, %c0_120] : memref<1x512xf32, #tpu.memory_space<vmem>>, vector<1x512xf32>
    %450 = vector.broadcast %449 : vector<1x512xf32> to vector<8x512xf32>
    %451 = arith.addf %448, %450 : vector<8x512xf32>
    %452 = vector.extract_strided_slice %451 {offsets = [0, 0], sizes = [8, 10], strides = [1, 1]} : vector<8x512xf32> to vector<8x10xf32>
    %453 = arith.negf %452 : vector<8x10xf32>
    %454 = math.exp %453 : vector<8x10xf32>
    %cst_121 = arith.constant 1.000000e+00 : f32
    %455 = vector.broadcast %cst_121 : f32 to vector<8x10xf32>
    %456 = arith.addf %455, %454 : vector<8x10xf32>
    %457 = arith.divf %455, %456 : vector<8x10xf32>
    %458 = vector.extract_strided_slice %451 {offsets = [0, 128], sizes = [8, 10], strides = [1, 1]} : vector<8x512xf32> to vector<8x10xf32>
    %459 = arith.negf %458 : vector<8x10xf32>
    %460 = math.exp %459 : vector<8x10xf32>
    %cst_122 = arith.constant 1.000000e+00 : f32
    %461 = vector.broadcast %cst_122 : f32 to vector<8x10xf32>
    %462 = arith.addf %461, %460 : vector<8x10xf32>
    %463 = arith.divf %461, %462 : vector<8x10xf32>
    %464 = vector.extract_strided_slice %451 {offsets = [0, 256], sizes = [8, 10], strides = [1, 1]} : vector<8x512xf32> to vector<8x10xf32>
    %465 = math.tanh %464 : vector<8x10xf32>
    %466 = vector.extract_strided_slice %451 {offsets = [0, 384], sizes = [8, 10], strides = [1, 1]} : vector<8x512xf32> to vector<8x10xf32>
    %467 = arith.negf %466 : vector<8x10xf32>
    %468 = math.exp %467 : vector<8x10xf32>
    %cst_123 = arith.constant 1.000000e+00 : f32
    %469 = vector.broadcast %cst_123 : f32 to vector<8x10xf32>
    %470 = arith.addf %469, %468 : vector<8x10xf32>
    %471 = arith.divf %469, %470 : vector<8x10xf32>
    %472 = arith.mulf %463, %407 : vector<8x10xf32>
    %473 = arith.mulf %457, %465 : vector<8x10xf32>
    %474 = arith.addf %472, %473 : vector<8x10xf32>
    %475 = math.tanh %474 : vector<8x10xf32>
    %476 = arith.mulf %471, %475 : vector<8x10xf32>
    %477 = vector.extract_strided_slice %4 {offsets = [0, 7], sizes = [8, 1], strides = [1, 1]} : vector<8x8xf32> to vector<8x1xf32>
    %478 = vector.broadcast %477 : vector<8x1xf32> to vector<8x512xf32>
    %479 = vector.broadcast %5 : vector<1x512xf32> to vector<8x512xf32>
    %480 = arith.mulf %478, %479 : vector<8x512xf32>
    %481 = vector.broadcast %6 : vector<1x512xf32> to vector<8x512xf32>
    %482 = arith.addf %480, %481 : vector<8x512xf32>
    %c0_124 = arith.constant 0 : index
    %c0_125 = arith.constant 0 : index
    %483 = vector.load %arg2[%c0_124, %c0_125] : memref<10x512xf32, #tpu.memory_space<vmem>>, vector<10x512xf32>
    %cst_126 = arith.constant dense<0.000000e+00> : vector<8x512xf32>
    %484 = tpu.matmul %443, %483, %cst_126 {dimension_numbers = #tpu.dot_dimension_numbers<[1], [0], [0], [1], [0, 0, 1, 1], [], []>} : vector<8x10xf32>, vector<10x512xf32>, vector<8x512xf32> -> vector<8x512xf32>
    %485 = arith.addf %482, %484 : vector<8x512xf32>
    %486 = vector.extract_strided_slice %485 {offsets = [0, 0], sizes = [8, 10], strides = [1, 1]} : vector<8x512xf32> to vector<8x10xf32>
    %487 = arith.negf %486 : vector<8x10xf32>
    %488 = math.exp %487 : vector<8x10xf32>
    %cst_127 = arith.constant 1.000000e+00 : f32
    %489 = vector.broadcast %cst_127 : f32 to vector<8x10xf32>
    %490 = arith.addf %489, %488 : vector<8x10xf32>
    %491 = arith.divf %489, %490 : vector<8x10xf32>
    %492 = vector.extract_strided_slice %485 {offsets = [0, 128], sizes = [8, 10], strides = [1, 1]} : vector<8x512xf32> to vector<8x10xf32>
    %493 = arith.negf %492 : vector<8x10xf32>
    %494 = math.exp %493 : vector<8x10xf32>
    %cst_128 = arith.constant 1.000000e+00 : f32
    %495 = vector.broadcast %cst_128 : f32 to vector<8x10xf32>
    %496 = arith.addf %495, %494 : vector<8x10xf32>
    %497 = arith.divf %495, %496 : vector<8x10xf32>
    %498 = vector.extract_strided_slice %485 {offsets = [0, 256], sizes = [8, 10], strides = [1, 1]} : vector<8x512xf32> to vector<8x10xf32>
    %499 = math.tanh %498 : vector<8x10xf32>
    %500 = vector.extract_strided_slice %485 {offsets = [0, 384], sizes = [8, 10], strides = [1, 1]} : vector<8x512xf32> to vector<8x10xf32>
    %501 = arith.negf %500 : vector<8x10xf32>
    %502 = math.exp %501 : vector<8x10xf32>
    %cst_129 = arith.constant 1.000000e+00 : f32
    %503 = vector.broadcast %cst_129 : f32 to vector<8x10xf32>
    %504 = arith.addf %503, %502 : vector<8x10xf32>
    %505 = arith.divf %503, %504 : vector<8x10xf32>
    %506 = arith.mulf %497, %441 : vector<8x10xf32>
    %507 = arith.mulf %491, %499 : vector<8x10xf32>
    %508 = arith.addf %506, %507 : vector<8x10xf32>
    %509 = math.tanh %508 : vector<8x10xf32>
    %510 = arith.mulf %505, %509 : vector<8x10xf32>
    %c0_130 = arith.constant 0 : index
    %c0_131 = arith.constant 0 : index
    %511 = vector.load %arg4[%c0_130, %c0_131] : memref<10x512xf32, #tpu.memory_space<vmem>>, vector<10x512xf32>
    %cst_132 = arith.constant dense<0.000000e+00> : vector<8x512xf32>
    %512 = tpu.matmul %510, %511, %cst_132 {dimension_numbers = #tpu.dot_dimension_numbers<[1], [0], [0], [1], [0, 0, 1, 1], [], []>} : vector<8x10xf32>, vector<10x512xf32>, vector<8x512xf32> -> vector<8x512xf32>
    %c0_133 = arith.constant 0 : index
    %c0_134 = arith.constant 0 : index
    %513 = vector.load %arg5[%c0_133, %c0_134] : memref<10x512xf32, #tpu.memory_space<vmem>>, vector<10x512xf32>
    %cst_135 = arith.constant dense<0.000000e+00> : vector<8x512xf32>
    %514 = tpu.matmul %476, %513, %cst_135 {dimension_numbers = #tpu.dot_dimension_numbers<[1], [0], [0], [1], [0, 0, 1, 1], [], []>} : vector<8x10xf32>, vector<10x512xf32>, vector<8x512xf32> -> vector<8x512xf32>
    %515 = arith.addf %512, %514 : vector<8x512xf32>
    %c0_136 = arith.constant 0 : index
    %c0_137 = arith.constant 0 : index
    %516 = vector.load %arg6[%c0_136, %c0_137] : memref<1x512xf32, #tpu.memory_space<vmem>>, vector<1x512xf32>
    %517 = vector.broadcast %516 : vector<1x512xf32> to vector<8x512xf32>
    %518 = arith.addf %515, %517 : vector<8x512xf32>
    %519 = vector.extract_strided_slice %518 {offsets = [0, 0], sizes = [8, 10], strides = [1, 1]} : vector<8x512xf32> to vector<8x10xf32>
    %520 = arith.negf %519 : vector<8x10xf32>
    %521 = math.exp %520 : vector<8x10xf32>
    %cst_138 = arith.constant 1.000000e+00 : f32
    %522 = vector.broadcast %cst_138 : f32 to vector<8x10xf32>
    %523 = arith.addf %522, %521 : vector<8x10xf32>
    %524 = arith.divf %522, %523 : vector<8x10xf32>
    %525 = vector.extract_strided_slice %518 {offsets = [0, 128], sizes = [8, 10], strides = [1, 1]} : vector<8x512xf32> to vector<8x10xf32>
    %526 = arith.negf %525 : vector<8x10xf32>
    %527 = math.exp %526 : vector<8x10xf32>
    %cst_139 = arith.constant 1.000000e+00 : f32
    %528 = vector.broadcast %cst_139 : f32 to vector<8x10xf32>
    %529 = arith.addf %528, %527 : vector<8x10xf32>
    %530 = arith.divf %528, %529 : vector<8x10xf32>
    %531 = vector.extract_strided_slice %518 {offsets = [0, 256], sizes = [8, 10], strides = [1, 1]} : vector<8x512xf32> to vector<8x10xf32>
    %532 = math.tanh %531 : vector<8x10xf32>
    %533 = vector.extract_strided_slice %518 {offsets = [0, 384], sizes = [8, 10], strides = [1, 1]} : vector<8x512xf32> to vector<8x10xf32>
    %534 = arith.negf %533 : vector<8x10xf32>
    %535 = math.exp %534 : vector<8x10xf32>
    %cst_140 = arith.constant 1.000000e+00 : f32
    %536 = vector.broadcast %cst_140 : f32 to vector<8x10xf32>
    %537 = arith.addf %536, %535 : vector<8x10xf32>
    %538 = arith.divf %536, %537 : vector<8x10xf32>
    %539 = arith.mulf %530, %474 : vector<8x10xf32>
    %540 = arith.mulf %524, %532 : vector<8x10xf32>
    %541 = arith.addf %539, %540 : vector<8x10xf32>
    %542 = math.tanh %541 : vector<8x10xf32>
    %543 = arith.mulf %538, %542 : vector<8x10xf32>
    %c0_141 = arith.constant 0 : index
    %c0_142 = arith.constant 0 : index
    %544 = vector.load %arg7[%c0_141, %c0_142] : memref<10x128xf32, #tpu.memory_space<vmem>>, vector<10x128xf32>
    %cst_143 = arith.constant dense<0.000000e+00> : vector<8x128xf32>
    %545 = tpu.matmul %543, %544, %cst_143 {dimension_numbers = #tpu.dot_dimension_numbers<[1], [0], [0], [1], [0, 0, 1, 1], [], []>} : vector<8x10xf32>, vector<10x128xf32>, vector<8x128xf32> -> vector<8x128xf32>
    %c0_144 = arith.constant 0 : index
    %c0_145 = arith.constant 0 : index
    %546 = vector.load %arg8[%c0_144, %c0_145] : memref<1x128xf32, #tpu.memory_space<vmem>>, vector<1x128xf32>
    %547 = vector.broadcast %546 : vector<1x128xf32> to vector<8x128xf32>
    %548 = arith.addf %545, %547 : vector<8x128xf32>
    %c0_146 = arith.constant 0 : index
    %c0_147 = arith.constant 0 : index
    %549 = vector.load %arg21[%c0_146, %c0_147] : memref<8x128xf32, #tpu.memory_space<vmem>>, vector<8x128xf32>
    tpu.vector_store %arg21[%c0_146, %c0_147], %548 {strides = array<i32>} : memref<8x128xf32, #tpu.memory_space<vmem>>, vector<8x128xf32>,
    %c0_148 = arith.constant 0 : index
    %c0_149 = arith.constant 0 : index
    %550 = vector.load %arg9[%c0_148, %c0_149] : memref<128x32xf32, #tpu.memory_space<vmem>>, vector<128x32xf32>
    %c0_150 = arith.constant 0 : index
    %c0_151 = arith.constant 0 : index
    %551 = vector.load %arg10[%c0_150, %c0_151] : memref<1x32xf32, #tpu.memory_space<vmem>>, vector<1x32xf32>
    %cst_152 = arith.constant dense<0.000000e+00> : vector<8x32xf32>
    %552 = tpu.matmul %548, %550, %cst_152 {dimension_numbers = #tpu.dot_dimension_numbers<[1], [0], [0], [1], [0, 0, 1, 1], [], []>} : vector<8x128xf32>, vector<128x32xf32>, vector<8x32xf32> -> vector<8x32xf32>
    %553 = vector.broadcast %551 : vector<1x32xf32> to vector<8x32xf32>
    %554 = arith.addf %552, %553 : vector<8x32xf32>
    %cst_153 = arith.constant 0.000000e+00 : f32
    %555 = vector.broadcast %cst_153 : f32 to vector<8x32xf32>
    %556 = arith.maximumf %554, %555 : vector<8x32xf32>
    %c0_154 = arith.constant 0 : index
    %c0_155 = arith.constant 0 : index
    %557 = vector.load %arg11[%c0_154, %c0_155] : memref<32x32xf32, #tpu.memory_space<vmem>>, vector<32x32xf32>
    %c0_156 = arith.constant 0 : index
    %c0_157 = arith.constant 0 : index
    %558 = vector.load %arg12[%c0_156, %c0_157] : memref<1x32xf32, #tpu.memory_space<vmem>>, vector<1x32xf32>
    %cst_158 = arith.constant dense<0.000000e+00> : vector<8x32xf32>
    %559 = tpu.matmul %556, %557, %cst_158 {dimension_numbers = #tpu.dot_dimension_numbers<[1], [0], [0], [1], [0, 0, 1, 1], [], []>} : vector<8x32xf32>, vector<32x32xf32>, vector<8x32xf32> -> vector<8x32xf32>
    %560 = vector.broadcast %558 : vector<1x32xf32> to vector<8x32xf32>
    %561 = arith.addf %559, %560 : vector<8x32xf32>
    %cst_159 = arith.constant 0.000000e+00 : f32
    %562 = vector.broadcast %cst_159 : f32 to vector<8x32xf32>
    %563 = arith.maximumf %561, %562 : vector<8x32xf32>
    %c0_160 = arith.constant 0 : index
    %c0_161 = arith.constant 0 : index
    %564 = vector.load %arg13[%c0_160, %c0_161] : memref<32x64xf32, #tpu.memory_space<vmem>>, vector<32x64xf32>
    %c0_162 = arith.constant 0 : index
    %c0_163 = arith.constant 0 : index
    %565 = vector.load %arg14[%c0_162, %c0_163] : memref<1x64xf32, #tpu.memory_space<vmem>>, vector<1x64xf32>
    %cst_164 = arith.constant dense<0.000000e+00> : vector<8x64xf32>
    %566 = tpu.matmul %563, %564, %cst_164 {dimension_numbers = #tpu.dot_dimension_numbers<[1], [0], [0], [1], [0, 0, 1, 1], [], []>} : vector<8x32xf32>, vector<32x64xf32>, vector<8x64xf32> -> vector<8x64xf32>
    %567 = vector.broadcast %565 : vector<1x64xf32> to vector<8x64xf32>
    %568 = arith.addf %566, %567 : vector<8x64xf32>
    %cst_165 = arith.constant 0.000000e+00 : f32
    %569 = vector.broadcast %cst_165 : f32 to vector<8x64xf32>
    %570 = arith.maximumf %568, %569 : vector<8x64xf32>
    %c0_166 = arith.constant 0 : index
    %c0_167 = arith.constant 0 : index
    %571 = vector.load %arg15[%c0_166, %c0_167] : memref<64x128xf32, #tpu.memory_space<vmem>>, vector<64x128xf32>
    %c0_168 = arith.constant 0 : index
    %c0_169 = arith.constant 0 : index
    %572 = vector.load %arg16[%c0_168, %c0_169] : memref<1x128xf32, #tpu.memory_space<vmem>>, vector<1x128xf32>
    %cst_170 = arith.constant dense<0.000000e+00> : vector<8x128xf32>
    %573 = tpu.matmul %570, %571, %cst_170 {dimension_numbers = #tpu.dot_dimension_numbers<[1], [0], [0], [1], [0, 0, 1, 1], [], []>} : vector<8x64xf32>, vector<64x128xf32>, vector<8x128xf32> -> vector<8x128xf32>
    %574 = vector.broadcast %572 : vector<1x128xf32> to vector<8x128xf32>
    %575 = arith.addf %573, %574 : vector<8x128xf32>
    %cst_171 = arith.constant 0.000000e+00 : f32
    %576 = vector.broadcast %cst_171 : f32 to vector<8x128xf32>
    %577 = arith.maximumf %575, %576 : vector<8x128xf32>
    %c0_i32_172 = arith.constant 0 : i32
    %578 = tpu.memref_slice %arg25[%c0_i32_172] : memref<2x!tpu.dma_semaphore, #tpu.memory_space<semaphore_mem>> -> memref<1x!tpu.dma_semaphore, #tpu.memory_space<semaphore_mem>>
    %579 = tpu.memref_squeeze %578 : memref<1x!tpu.dma_semaphore, #tpu.memory_space<semaphore_mem>> -> memref<!tpu.dma_semaphore, #tpu.memory_space<semaphore_mem>>
    tpu.wait_dma2 semaphore(%579 : memref<!tpu.dma_semaphore, #tpu.memory_space<semaphore_mem>>) src(%arg17 : memref<128x256xf32, #tpu.memory_space<any>>) dst(%arg23 : memref<128x256xf32, #tpu.memory_space<vmem>>)
    %c0_173 = arith.constant 0 : index
    %c0_174 = arith.constant 0 : index
    %580 = vector.load %arg23[%c0_173, %c0_174] : memref<128x256xf32, #tpu.memory_space<vmem>>, vector<128x256xf32>
    %c0_175 = arith.constant 0 : index
    %c0_176 = arith.constant 0 : index
    %581 = vector.load %arg18[%c0_175, %c0_176] : memref<1x256xf32, #tpu.memory_space<vmem>>, vector<1x256xf32>
    %cst_177 = arith.constant dense<0.000000e+00> : vector<8x256xf32>
    %582 = tpu.matmul %577, %580, %cst_177 {dimension_numbers = #tpu.dot_dimension_numbers<[1], [0], [0], [1], [0, 0, 1, 1], [], []>} : vector<8x128xf32>, vector<128x256xf32>, vector<8x256xf32> -> vector<8x256xf32>
    %583 = vector.broadcast %581 : vector<1x256xf32> to vector<8x256xf32>
    %584 = arith.addf %582, %583 : vector<8x256xf32>
    %cst_178 = arith.constant 0.000000e+00 : f32
    %585 = vector.broadcast %cst_178 : f32 to vector<8x256xf32>
    %586 = arith.maximumf %584, %585 : vector<8x256xf32>
    %c1_i32_179 = arith.constant 1 : i32
    %587 = tpu.memref_slice %arg25[%c1_i32_179] : memref<2x!tpu.dma_semaphore, #tpu.memory_space<semaphore_mem>> -> memref<1x!tpu.dma_semaphore, #tpu.memory_space<semaphore_mem>>
    %588 = tpu.memref_squeeze %587 : memref<1x!tpu.dma_semaphore, #tpu.memory_space<semaphore_mem>> -> memref<!tpu.dma_semaphore, #tpu.memory_space<semaphore_mem>>
    tpu.wait_dma2 semaphore(%588 : memref<!tpu.dma_semaphore, #tpu.memory_space<semaphore_mem>>) src(%arg19 : memref<256x512xf32, #tpu.memory_space<any>>) dst(%arg24 : memref<256x512xf32, #tpu.memory_space<vmem>>)
    %c0_180 = arith.constant 0 : index
    %c0_181 = arith.constant 0 : index
    %589 = vector.load %arg24[%c0_180, %c0_181] : memref<256x512xf32, #tpu.memory_space<vmem>>, vector<256x512xf32>
    %c0_182 = arith.constant 0 : index
    %c0_183 = arith.constant 0 : index
    %590 = vector.load %arg20[%c0_182, %c0_183] : memref<1x512xf32, #tpu.memory_space<vmem>>, vector<1x512xf32>
    %cst_184 = arith.constant dense<0.000000e+00> : vector<8x512xf32>
    %591 = tpu.matmul %586, %589, %cst_184 {dimension_numbers = #tpu.dot_dimension_numbers<[1], [0], [0], [1], [0, 0, 1, 1], [], []>} : vector<8x256xf32>, vector<256x512xf32>, vector<8x512xf32> -> vector<8x512xf32>
    %592 = vector.broadcast %590 : vector<1x512xf32> to vector<8x512xf32>
    %593 = arith.addf %591, %592 : vector<8x512xf32>
    %c0_185 = arith.constant 0 : index
    %c0_186 = arith.constant 0 : index
    %594 = vector.load %arg22[%c0_185, %c0_186] : memref<8x512xf32, #tpu.memory_space<vmem>>, vector<8x512xf32>
    tpu.vector_store %arg22[%c0_185, %c0_186], %593 {strides = array<i32>} : memref<8x512xf32, #tpu.memory_space<vmem>>, vector<8x512xf32>,
    return
  }
}

</mosaic_0001>

<llo_original>
// kernel: autoencoder_lstm_forward.1
$region0: #{autoencoder_lstm_forward.1}
  #allocation0 [shape = 'u32[]', space=smem, size = 0x4, offset = 0x4, fixed_abs, tag = 'smem constant byte address 0x4 - core index']
  #allocation1 [shape = 'u32[144,128]{1,0:T(1,128)}', space=vmem, size = 0x12000, scoped, tag = 'internal scratch']
  #allocation2 [shape = 'f32[128,256]{1,0:T(8,128)}', space=vmem, size = 0x20000, scoped, tag = 'scratch operand']
  #allocation3 [shape = 'f32[256,512]{1,0:T(8,128)}', space=vmem, size = 0x80000, scoped, tag = 'scratch operand']
  #allocation4 [shape = 's32[2]{0}', space=sflag, size = 0x8, scoped, tag = 'scratch operand']
  #allocation21 [shape = 's32[]', space=sflag, size = 0x4, offset = 0, fixed_abs, tag = 'sflag constant byte address 0x0 - dummy sync flag']
  #allocation22 [shape = 's32[]', space=sflag, size = 0x4, offset = 0, fixed_abs, tag = 'sflag constant byte address 0x0 - dummy sync flag']
  #allocation23 [shape = 'u32[]', space=smem, size = 0x4, offset = 0x44, fixed_abs, tag = 'smem constant byte address 0x44 - assertion arg 0']
  #allocation24 [shape = 'u32[]', space=smem, size = 0x4, offset = 0x48, fixed_abs, tag = 'smem constant byte address 0x48 - assertion arg 1']
  #allocation25 [shape = 's32[]', space=sflag, size = 0x4, offset = 0, fixed_abs, tag = 'sflag constant byte address 0x0 - dummy sync flag']
  #allocation26 [shape = 's32[]', space=sflag, size = 0x4, offset = 0, fixed_abs, tag = 'sflag constant byte address 0x0 - dummy sync flag']
  %s0 = inlined_call_operand.vmem [shape: f32[8,8], index: 0, kind: input, shape index: {}]
  %s1 = inlined_call_operand.vmem [shape: f32[1,512], index: 1, kind: input, shape index: {}]
  %s2 = inlined_call_operand.vmem [shape: f32[10,512], index: 2, kind: input, shape index: {}]
  %s3 = inlined_call_operand.hbm [shape: f32[1,512], index: 3, kind: input, shape index: {}]
  %s4 = inlined_call_operand.vmem [shape: f32[10,512], index: 4, kind: input, shape index: {}]
  %s5 = inlined_call_operand.vmem [shape: f32[10,512], index: 5, kind: input, shape index: {}]
  %s6 = inlined_call_operand.hbm [shape: f32[1,512], index: 6, kind: input, shape index: {}]
  %s7 = inlined_call_operand.vmem [shape: f32[10,128], index: 7, kind: input, shape index: {}]
  %s8 = inlined_call_operand.hbm [shape: f32[1,128], index: 8, kind: input, shape index: {}]
  %s9 = inlined_call_operand.vmem [shape: f32[128,32], index: 9, kind: input, shape index: {}]
  %s10 = inlined_call_operand.hbm [shape: f32[1,32], index: 10, kind: input, shape index: {}]
  %s11 = inlined_call_operand.hbm [shape: f32[32,32], index: 11, kind: input, shape index: {}]
  %s12 = inlined_call_operand.hbm [shape: f32[1,32], index: 12, kind: input, shape index: {}]
  %s13 = inlined_call_operand.hbm [shape: f32[32,64], index: 13, kind: input, shape index: {}]
  %s14 = inlined_call_operand.hbm [shape: f32[1,64], index: 14, kind: input, shape index: {}]
  %s15 = inlined_call_operand.hbm [shape: f32[64,128], index: 15, kind: input, shape index: {}]
  %s16 = inlined_call_operand.hbm [shape: f32[1,128], index: 16, kind: input, shape index: {}]
  %s17 = inlined_call_operand.hbm [shape: f32[128,256], index: 17, kind: input, shape index: {}]
  %s18 = inlined_call_operand.vmem [shape: f32[1,256], index: 18, kind: input, shape index: {}]
  %s19 = inlined_call_operand.hbm [shape: f32[256,512], index: 19, kind: input, shape index: {}]
  %s20 = inlined_call_operand.vmem [shape: f32[1,512], index: 20, kind: input, shape index: {}]
  %s21 = inlined_call_operand.vmem [shape: f32[8,128], index: 21, kind: output, shape index: {0}]
  %s22 = inlined_call_operand.vmem [shape: f32[8,512], index: 22, kind: output, shape index: {1}]
  %23 = xla_tuple %s21, %s22
  %s24 = sld [smem:[#allocation0]]
  $region142: #{autoencoder_lstm_forward.1} parent=0
    _
  %s26 = ssub.s32 1, %s24
  %s27 = scalar_select 0, %s26, %s24
  $region1: #{autoencoder_lstm_forward.1} parent=0
    #allocation5 [shape = 'u8[2048]{0}', space=vmem, size = 0x800, scoped, tag = 'input window, operand 3, single buffered']
    #allocation6 [shape = 's32[1]{0}', space=sflag, size = 0x4, scoped, tag = 'scoped memory for autoencoder_lstm_forward.1']
    #allocation7 [shape = 'u8[2048]{0}', space=vmem, size = 0x800, scoped, tag = 'input window, operand 6, single buffered']
    #allocation8 [shape = 's32[1]{0}', space=sflag, size = 0x4, scoped, tag = 'scoped memory for autoencoder_lstm_forward.1']
    #allocation9 [shape = 'u8[512]{0}', space=vmem, size = 0x400, scoped, tag = 'input window, operand 8, single buffered']
    #allocation10 [shape = 'u8[512]{0}', space=vmem, size = 0x400, scoped, tag = 'input window, operand 10, single buffered']
    #allocation11 [shape = 's32[1]{0}', space=sflag, size = 0x4, scoped, tag = 'scoped memory for autoencoder_lstm_forward.1']
    #allocation12 [shape = 'u8[16384]{0}', space=vmem, size = 0x4000, scoped, tag = 'input window, operand 11, single buffered']
    #allocation13 [shape = 'u8[512]{0}', space=vmem, size = 0x400, scoped, tag = 'input window, operand 12, single buffered']
    #allocation14 [shape = 's32[1]{0}', space=sflag, size = 0x4, scoped, tag = 'scoped memory for autoencoder_lstm_forward.1']
    #allocation15 [shape = 'u8[16384]{0}', space=vmem, size = 0x4000, scoped, tag = 'input window, operand 13, single buffered']
    #allocation16 [shape = 'u8[512]{0}', space=vmem, size = 0x400, scoped, tag = 'input window, operand 14, single buffered']
    #allocation17 [shape = 's32[1]{0}', space=sflag, size = 0x4, scoped, tag = 'scoped memory for autoencoder_lstm_forward.1']
    #allocation18 [shape = 'u8[32768]{0}', space=vmem, size = 0x8000, scoped, tag = 'input window, operand 15, single buffered']
    #allocation19 [shape = 'u8[512]{0}', space=vmem, size = 0x400, scoped, tag = 'input window, operand 16, single buffered']
    #allocation20 [shape = 's32[1]{0}', space=sflag, size = 0x4, scoped, tag = 'scoped memory for autoencoder_lstm_forward.1']
    %28 = vsyncpa [#allocation6], 0
    %29 = vsyncpa [#allocation8], 0
    %30 = vsyncpa [#allocation11], 0
    %31 = vsyncpa [#allocation14], 0
    %32 = vsyncpa [#allocation17], 0
    %33 = vsyncpa [#allocation20], 0
    // Predicated region
    $region2: #{autoencoder_lstm_forward.1} parent=1 // pred_check
      _
    $region3: #{autoencoder_lstm_forward.1} parent=1 // pred_check_branch
      %35 = sbr.rel (0) target = $region5
    $region4: #{autoencoder_lstm_forward.1} parent=1 // pred_region
      _
    $region5: #{autoencoder_lstm_forward.1} parent=1 // pred_fallthru
      _
    // Predicated region
    $region6: #{autoencoder_lstm_forward.1} parent=1 // pred_check
      _
    $region7: #{autoencoder_lstm_forward.1} parent=1 // pred_check_branch
      %37 = sbr.rel (0) target = $region9
    $region8: #{autoencoder_lstm_forward.1} parent=1 // pred_region
      _
    $region9: #{autoencoder_lstm_forward.1} parent=1 // pred_fallthru
      _
    // Predicated region
    $region10: #{autoencoder_lstm_forward.1} parent=1 // pred_check
      _
    $region11: #{autoencoder_lstm_forward.1} parent=1 // pred_check_branch
      %39 = sbr.rel (0) target = $region13
    $region12: #{autoencoder_lstm_forward.1} parent=1 // pred_region
      _
    $region13: #{autoencoder_lstm_forward.1} parent=1 // pred_fallthru
      _
    // Predicated region
    $region14: #{autoencoder_lstm_forward.1} parent=1 // pred_check
      _
    $region15: #{autoencoder_lstm_forward.1} parent=1 // pred_check_branch
      %41 = sbr.rel (0) target = $region17
    $region16: #{autoencoder_lstm_forward.1} parent=1 // pred_region
      %s43 = ssub.s32 64, 64
      %44 = vsyncadd [#allocation6], %s43
      %s46 = sshll.u32 [#allocation5], 4
      %s47 = int_to_ptr.vmem [resolvable:$true] %s46
      %49 = dma.hbm_to_vmem [thread:$0]  %s3, 64, %s47, [#allocation6]
    $region17: #{autoencoder_lstm_forward.1} parent=1 // pred_fallthru
      _
    // Predicated region
    $region18: #{autoencoder_lstm_forward.1} parent=1 // pred_check
      _
    $region19: #{autoencoder_lstm_forward.1} parent=1 // pred_check_branch
      %51 = sbr.rel (0) target = $region21
    $region20: #{autoencoder_lstm_forward.1} parent=1 // pred_region
      _
    $region21: #{autoencoder_lstm_forward.1} parent=1 // pred_fallthru
      _
    // Predicated region
    $region22: #{autoencoder_lstm_forward.1} parent=1 // pred_check
      _
    $region23: #{autoencoder_lstm_forward.1} parent=1 // pred_check_branch
      %53 = sbr.rel (0) target = $region25
    $region24: #{autoencoder_lstm_forward.1} parent=1 // pred_region
      _
    $region25: #{autoencoder_lstm_forward.1} parent=1 // pred_fallthru
      _
    // Predicated region
    $region26: #{autoencoder_lstm_forward.1} parent=1 // pred_check
      _
    $region27: #{autoencoder_lstm_forward.1} parent=1 // pred_check_branch
      %55 = sbr.rel (0) target = $region29
    $region28: #{autoencoder_lstm_forward.1} parent=1 // pred_region
      %s57 = ssub.s32 64, 64
      %58 = vsyncadd [#allocation8], %s57
      %s60 = sshll.u32 [#allocation7], 4
      %s61 = int_to_ptr.vmem [resolvable:$true] %s60
      %63 = dma.hbm_to_vmem [thread:$0]  %s6, 64, %s61, [#allocation8]
    $region29: #{autoencoder_lstm_forward.1} parent=1 // pred_fallthru
      _
    // Predicated region
    $region30: #{autoencoder_lstm_forward.1} parent=1 // pred_check
      _
    $region31: #{autoencoder_lstm_forward.1} parent=1 // pred_check_branch
      %65 = sbr.rel (0) target = $region33
    $region32: #{autoencoder_lstm_forward.1} parent=1 // pred_region
      _
    $region33: #{autoencoder_lstm_forward.1} parent=1 // pred_fallthru
      _
    // Predicated region
    $region34: #{autoencoder_lstm_forward.1} parent=1 // pred_check
      _
    $region35: #{autoencoder_lstm_forward.1} parent=1 // pred_check_branch
      %67 = sbr.rel (0) target = $region37
    $region36: #{autoencoder_lstm_forward.1} parent=1 // pred_region
      %s69 = ssub.s32 16, 16
      %70 = vsyncadd [#allocation8], %s69
      %s72 = sshll.u32 [#allocation9], 4
      %s73 = int_to_ptr.vmem [resolvable:$true] %s72
      %75 = dma.hbm_to_vmem [thread:$0]  %s8, 16, %s73, [#allocation8]
    $region37: #{autoencoder_lstm_forward.1} parent=1 // pred_fallthru
      _
    // Predicated region
    $region38: #{autoencoder_lstm_forward.1} parent=1 // pred_check
      _
    $region39: #{autoencoder_lstm_forward.1} parent=1 // pred_check_branch
      %77 = sbr.rel (0) target = $region41
    $region40: #{autoencoder_lstm_forward.1} parent=1 // pred_region
      _
    $region41: #{autoencoder_lstm_forward.1} parent=1 // pred_fallthru
      _
    // Predicated region
    $region42: #{autoencoder_lstm_forward.1} parent=1 // pred_check
      _
    $region43: #{autoencoder_lstm_forward.1} parent=1 // pred_check_branch
      %79 = sbr.rel (0) target = $region45
    $region44: #{autoencoder_lstm_forward.1} parent=1 // pred_region
      %s81 = ssub.s32 16, 16
      %82 = vsyncadd [#allocation11], %s81
      %s84 = sshll.u32 [#allocation10], 4
      %s85 = int_to_ptr.vmem [resolvable:$true] %s84
      %87 = dma.hbm_to_vmem [thread:$0]  %s10, 16, %s85, [#allocation11]
    $region45: #{autoencoder_lstm_forward.1} parent=1 // pred_fallthru
      _
    // Predicated region
    $region46: #{autoencoder_lstm_forward.1} parent=1 // pred_check
      _
    $region47: #{autoencoder_lstm_forward.1} parent=1 // pred_check_branch
      %89 = sbr.rel (0) target = $region49
    $region48: #{autoencoder_lstm_forward.1} parent=1 // pred_region
      %s91 = ssub.s32 512, 512
      %92 = vsyncadd [#allocation11], %s91
      %s93 = sshll.u32 [#allocation12], 4
      %s94 = int_to_ptr.vmem [resolvable:$true] %s93
      %99 = dma.hbm_to_vmem [thread:$0]  %s11, 512, %s94, [#allocation11], 128, 128, 8
    $region49: #{autoencoder_lstm_forward.1} parent=1 // pred_fallthru
      _
    // Predicated region
    $region50: #{autoencoder_lstm_forward.1} parent=1 // pred_check
      _
    $region51: #{autoencoder_lstm_forward.1} parent=1 // pred_check_branch
      %101 = sbr.rel (0) target = $region53
    $region52: #{autoencoder_lstm_forward.1} parent=1 // pred_region
      %s103 = ssub.s32 16, 16
      %104 = vsyncadd [#allocation14], %s103
      %s106 = sshll.u32 [#allocation13], 4
      %s107 = int_to_ptr.vmem [resolvable:$true] %s106
      %109 = dma.hbm_to_vmem [thread:$0]  %s12, 16, %s107, [#allocation14]
    $region53: #{autoencoder_lstm_forward.1} parent=1 // pred_fallthru
      _
    // Predicated region
    $region54: #{autoencoder_lstm_forward.1} parent=1 // pred_check
      _
    $region55: #{autoencoder_lstm_forward.1} parent=1 // pred_check_branch
      %111 = sbr.rel (0) target = $region57
    $region56: #{autoencoder_lstm_forward.1} parent=1 // pred_region
      %s113 = ssub.s32 512, 512
      %114 = vsyncadd [#allocation14], %s113
      %s115 = sshll.u32 [#allocation15], 4
      %s116 = int_to_ptr.vmem [resolvable:$true] %s115
      %121 = dma.hbm_to_vmem [thread:$0]  %s13, 512, %s116, [#allocation14], 128, 128, 8
    $region57: #{autoencoder_lstm_forward.1} parent=1 // pred_fallthru
      _
    // Predicated region
    $region58: #{autoencoder_lstm_forward.1} parent=1 // pred_check
      _
    $region59: #{autoencoder_lstm_forward.1} parent=1 // pred_check_branch
      %123 = sbr.rel (0) target = $region61
    $region60: #{autoencoder_lstm_forward.1} parent=1 // pred_region
      %s125 = ssub.s32 16, 16
      %126 = vsyncadd [#allocation17], %s125
      %s128 = sshll.u32 [#allocation16], 4
      %s129 = int_to_ptr.vmem [resolvable:$true] %s128
      %131 = dma.hbm_to_vmem [thread:$0]  %s14, 16, %s129, [#allocation17]
    $region61: #{autoencoder_lstm_forward.1} parent=1 // pred_fallthru
      _
    // Predicated region
    $region62: #{autoencoder_lstm_forward.1} parent=1 // pred_check
      _
    $region63: #{autoencoder_lstm_forward.1} parent=1 // pred_check_branch
      %133 = sbr.rel (0) target = $region65
    $region64: #{autoencoder_lstm_forward.1} parent=1 // pred_region
      %s135 = ssub.s32 1024, 1024
      %136 = vsyncadd [#allocation17], %s135
      %s137 = sshll.u32 [#allocation18], 4
      %s138 = int_to_ptr.vmem [resolvable:$true] %s137
      %143 = dma.hbm_to_vmem [thread:$0]  %s15, 1024, %s138, [#allocation17], 128, 128, 8
    $region65: #{autoencoder_lstm_forward.1} parent=1 // pred_fallthru
      _
    // Predicated region
    $region66: #{autoencoder_lstm_forward.1} parent=1 // pred_check
      _
    $region67: #{autoencoder_lstm_forward.1} parent=1 // pred_check_branch
      %145 = sbr.rel (0) target = $region69
    $region68: #{autoencoder_lstm_forward.1} parent=1 // pred_region
      %s147 = ssub.s32 16, 16
      %148 = vsyncadd [#allocation20], %s147
      %s150 = sshll.u32 [#allocation19], 4
      %s151 = int_to_ptr.vmem [resolvable:$true] %s150
      %153 = dma.hbm_to_vmem [thread:$0]  %s16, 16, %s151, [#allocation20]
    $region69: #{autoencoder_lstm_forward.1} parent=1 // pred_fallthru
      _
    // Predicated region
    $region70: #{autoencoder_lstm_forward.1} parent=1 // pred_check
      _
    $region71: #{autoencoder_lstm_forward.1} parent=1 // pred_check_branch
      %155 = sbr.rel (0) target = $region73
    $region72: #{autoencoder_lstm_forward.1} parent=1 // pred_region
      _
    $region73: #{autoencoder_lstm_forward.1} parent=1 // pred_fallthru
      _
    // Predicated region
    $region74: #{autoencoder_lstm_forward.1} parent=1 // pred_check
      _
    $region75: #{autoencoder_lstm_forward.1} parent=1 // pred_check_branch
      %157 = sbr.rel (0) target = $region77
    $region76: #{autoencoder_lstm_forward.1} parent=1 // pred_region
      _
    $region77: #{autoencoder_lstm_forward.1} parent=1 // pred_fallthru
      _
    // Predicated region
    $region78: #{autoencoder_lstm_forward.1} parent=1 // pred_check
      _
    $region79: #{autoencoder_lstm_forward.1} parent=1 // pred_check_branch
      %159 = sbr.rel (0) target = $region81
    $region80: #{autoencoder_lstm_forward.1} parent=1 // pred_region
      %160 = dma.done [#allocation6], 64
    $region81: #{autoencoder_lstm_forward.1} parent=1 // pred_fallthru
      _
    // Predicated region
    $region82: #{autoencoder_lstm_forward.1} parent=1 // pred_check
      _
    $region83: #{autoencoder_lstm_forward.1} parent=1 // pred_check_branch
      %162 = sbr.rel (0) target = $region85
    $region84: #{autoencoder_lstm_forward.1} parent=1 // pred_region
      %163 = dma.done [#allocation8], 64
    $region85: #{autoencoder_lstm_forward.1} parent=1 // pred_fallthru
      _
    // Predicated region
    $region86: #{autoencoder_lstm_forward.1} parent=1 // pred_check
      _
    $region87: #{autoencoder_lstm_forward.1} parent=1 // pred_check_branch
      %165 = sbr.rel (0) target = $region89
    $region88: #{autoencoder_lstm_forward.1} parent=1 // pred_region
      %166 = dma.done [#allocation8], 16
    $region89: #{autoencoder_lstm_forward.1} parent=1 // pred_fallthru
      _
    // Predicated region
    $region90: #{autoencoder_lstm_forward.1} parent=1 // pred_check
      _
    $region91: #{autoencoder_lstm_forward.1} parent=1 // pred_check_branch
      %168 = sbr.rel (0) target = $region93
    $region92: #{autoencoder_lstm_forward.1} parent=1 // pred_region
      %169 = dma.done [#allocation11], 16
    $region93: #{autoencoder_lstm_forward.1} parent=1 // pred_fallthru
      _
    // Predicated region
    $region94: #{autoencoder_lstm_forward.1} parent=1 // pred_check
      _
    $region95: #{autoencoder_lstm_forward.1} parent=1 // pred_check_branch
      %171 = sbr.rel (0) target = $region97
    $region96: #{autoencoder_lstm_forward.1} parent=1 // pred_region
      %172 = dma.done [#allocation11], 512
    $region97: #{autoencoder_lstm_forward.1} parent=1 // pred_fallthru
      _
    // Predicated region
    $region98: #{autoencoder_lstm_forward.1} parent=1 // pred_check
      _
    $region99: #{autoencoder_lstm_forward.1} parent=1 // pred_check_branch
      %174 = sbr.rel (0) target = $region101
    $region100: #{autoencoder_lstm_forward.1} parent=1 // pred_region
      %175 = dma.done [#allocation14], 16
    $region101: #{autoencoder_lstm_forward.1} parent=1 // pred_fallthru
      _
    // Predicated region
    $region102: #{autoencoder_lstm_forward.1} parent=1 // pred_check
      _
    $region103: #{autoencoder_lstm_forward.1} parent=1 // pred_check_branch
      %177 = sbr.rel (0) target = $region105
    $region104: #{autoencoder_lstm_forward.1} parent=1 // pred_region
      %178 = dma.done [#allocation14], 512
    $region105: #{autoencoder_lstm_forward.1} parent=1 // pred_fallthru
      _
    // Predicated region
    $region106: #{autoencoder_lstm_forward.1} parent=1 // pred_check
      _
    $region107: #{autoencoder_lstm_forward.1} parent=1 // pred_check_branch
      %180 = sbr.rel (0) target = $region109
    $region108: #{autoencoder_lstm_forward.1} parent=1 // pred_region
      %181 = dma.done [#allocation17], 16
    $region109: #{autoencoder_lstm_forward.1} parent=1 // pred_fallthru
      _
    // Predicated region
    $region110: #{autoencoder_lstm_forward.1} parent=1 // pred_check
      _
    $region111: #{autoencoder_lstm_forward.1} parent=1 // pred_check_branch
      %183 = sbr.rel (0) target = $region113
    $region112: #{autoencoder_lstm_forward.1} parent=1 // pred_region
      %184 = dma.done [#allocation17], 1024
    $region113: #{autoencoder_lstm_forward.1} parent=1 // pred_fallthru
      _
    // Predicated region
    $region114: #{autoencoder_lstm_forward.1} parent=1 // pred_check
      _
    $region115: #{autoencoder_lstm_forward.1} parent=1 // pred_check_branch
      %186 = sbr.rel (0) target = $region117
    $region116: #{autoencoder_lstm_forward.1} parent=1 // pred_region
      %187 = dma.done [#allocation20], 16
    $region117: #{autoencoder_lstm_forward.1} parent=1 // pred_fallthru
      _
    // Predicated region
    $region118: #{autoencoder_lstm_forward.1} parent=1 // pred_check
      _
    $region119: #{autoencoder_lstm_forward.1} parent=1 // pred_check_branch
      %189 = sbr.rel target = $region121
    $region120: #{autoencoder_lstm_forward.1} parent=1 // pred_region
      %190 = sst [smem:[#allocation23]] [#allocation22]
      %191 = sst [smem:[#allocation24]] [#allocation21]
    $region121: #{autoencoder_lstm_forward.1} parent=1 // pred_fallthru
      _
    %193 = shalt.err (0)
    %s195 = sshll.u32 [#allocation2], 4
    %s196 = int_to_ptr.vmem [resolvable:$true] %s195
    %198 = dma.hbm_to_vmem [thread:$0]  %s17, 4096, %s196, [#allocation4]
    %s199 = scalar_lea.sflag [#allocation4], 1
    // Predicated region
    $region122: #{autoencoder_lstm_forward.1} parent=1 // pred_check
      _
    $region123: #{autoencoder_lstm_forward.1} parent=1 // pred_check_branch
      %201 = sbr.rel target = $region125
    $region124: #{autoencoder_lstm_forward.1} parent=1 // pred_region
      %202 = sst [smem:[#allocation23]] [#allocation26]
      %203 = sst [smem:[#allocation24]] [#allocation25]
    $region125: #{autoencoder_lstm_forward.1} parent=1 // pred_fallthru
      _
    %205 = shalt.err (0)
    %s207 = sshll.u32 [#allocation3], 4
    %s208 = int_to_ptr.vmem [resolvable:$true] %s207
    %210 = dma.hbm_to_vmem [thread:$0]  %s19, 16384, %s208, %s199
    %v211 = vld [vmem:[%s0] sm:$0xff]
    %v212 = vld [vmem:[%s1] sm:$0xf]
    %v213 = vld [vmem:[#allocation5] sm:$0xf]
    %215 = vset.pattern.permute.xlu0 0
    %216 = vperm.xlu0 %215, %v211
    %v217 = vpop.permute.xlu0 %216
    %v220 = vlaneseq
    %v221 = vshrl.u32 %v220, 7
    %v222 = vsub.s32 0, %v221
    %v223 = vrot.slane %v212, %v222
    %v224 = vlaneseq
    %v225 = vshrl.u32 %v224, 7
    %v226 = vsub.s32 1, %v225
    %v227 = vrot.slane %v212, %v226
    %v228 = vlaneseq
    %v229 = vshrl.u32 %v228, 7
    %v230 = vsub.s32 2, %v229
    %v231 = vrot.slane %v212, %v230
    %v232 = vlaneseq
    %v233 = vshrl.u32 %v232, 7
    %v234 = vsub.s32 3, %v233
    %v235 = vrot.slane %v212, %v234
    %v240 = vmul.f32 %v217, %v223
    %v241 = vmul.f32 %v217, %v227
    %v242 = vmul.f32 %v217, %v231
    %v243 = vmul.f32 %v217, %v235
    %v245 = vlaneseq
    %v246 = vshrl.u32 %v245, 7
    %v247 = vsub.s32 0, %v246
    %v248 = vrot.slane %v213, %v247
    %v249 = vlaneseq
    %v250 = vshrl.u32 %v249, 7
    %v251 = vsub.s32 1, %v250
    %v252 = vrot.slane %v213, %v251
    %v253 = vlaneseq
    %v254 = vshrl.u32 %v253, 7
    %v255 = vsub.s32 2, %v254
    %v256 = vrot.slane %v213, %v255
    %v257 = vlaneseq
    %v258 = vshrl.u32 %v257, 7
    %v259 = vsub.s32 3, %v258
    %v260 = vrot.slane %v213, %v259
    %v265 = vadd.f32 %v240, %v248
    %v266 = vadd.f32 %v241, %v252
    %v267 = vadd.f32 %v242, %v256
    %v268 = vadd.f32 %v243, %v260
    %v269 = vld [vmem:[%s2] sm:$0xff]
    %v270 = vld [vmem:[%s2 + $0x8] sm:$0xff]
    %v271 = vld [vmem:[%s2 + $0x10] sm:$0xff]
    %v272 = vld [vmem:[%s2 + $0x18] sm:$0xff]
    %v273 = vld [vmem:[%s2 + $0x20] sm:$0x3]
    %v274 = vld [vmem:[%s2 + $0x28] sm:$0x3]
    %v275 = vld [vmem:[%s2 + $0x30] sm:$0x3]
    %v276 = vld [vmem:[%s2 + $0x38] sm:$0x3]
    %vm277 = vcmask 80896
    %v279 = vsel %vm277, 0.0, 0
    %vm281 = vcmask 1041408
    %v283 = vsel %vm281, %v273, 0
    %v286 = vsel %vm281, %v274, 0
    %v289 = vsel %vm281, %v275, 0
    %v292 = vsel %vm281, %v276, 0
    %294 = vmatprep.subr.mxu0 %v270
    %295 = vmatpush1.msra.mxu0 %v269
    %296 = vmatprep.subr.mxu0 %v286
    %297 = vmatpush1.msra.mxu0 %v283
    %298 = vmatprep.subr.mxu0 0.0
    %299 = vmatpush1.msra.mxu0 0.0
    %300 = vmatprep.subr.mxu0 0.0
    %301 = vmatpush1.msra.mxu0 0.0
    %302 = vmatprep.subr.mxu0 0.0
    %303 = vmatpush1.msra.mxu0 0.0
    %304 = vmatprep.subr.mxu0 0.0
    %305 = vmatpush1.msra.mxu0 0.0
    %306 = vmatprep.subr.mxu0 0.0
    %307 = vmatpush1.msra.mxu0 0.0
    %308 = vmatprep.subr.mxu0 0.0
    %309 = vmatpush1.msra.mxu0 0.0
    %310 = vmatprep.subr.mxu0 0.0
    %311 = vmatpush1.msra.mxu0 0.0
    %312 = vmatprep.subr.mxu0 0.0
    %313 = vmatpush1.msra.mxu0 0.0
    %314 = vmatprep.subr.mxu0 0.0
    %315 = vmatpush1.msra.mxu0 0.0
    %316 = vmatprep.subr.mxu0 0.0
    %317 = vmatpush1.msra.mxu0 0.0
    %318 = vmatprep.subr.mxu0 0.0
    %319 = vmatpush1.msra.mxu0 0.0
    %320 = vmatprep.subr.mxu0 0.0
    %321 = vmatpush1.msra.mxu0 0.0
    %322 = vmatprep.subr.mxu0 0.0
    %323 = vmatpush1.msra.mxu0 0.0
    %324 = vmatprep.subr.mxu0 0.0
    %325 = vmatpush1.msra.mxu0 0.0
    %326 = vmatprep.subr.mxu0 0.0
    %327 = vmatpush1.msra.mxu0 0.0
    %328 = vmatprep.subr.mxu0 0.0
    %329 = vmatpush1.msra.mxu0 0.0
    %330 = vmatprep.subr.mxu0 0.0
    %331 = vmatpush1.msra.mxu0 0.0
    %332 = vmatprep.subr.mxu0 0.0
    %333 = vmatpush1.msra.mxu0 0.0
    %334 = vmatprep.subr.mxu0 0.0
    %335 = vmatpush1.msra.mxu0 0.0
    %336 = vmatprep.subr.mxu0 0.0
    %337 = vmatpush1.msra.mxu0 0.0
    %338 = vmatprep.subr.mxu0 0.0
    %339 = vmatpush1.msra.mxu0 0.0
    %340 = vmatprep.subr.mxu0 0.0
    %341 = vmatpush1.msra.mxu0 0.0
    %342 = vmatprep.subr.mxu0 0.0
    %343 = vmatpush1.msra.mxu0 0.0
    %344 = vmatprep.subr.mxu0 0.0
    %345 = vmatpush1.msra.mxu0 0.0
    %346 = vmatprep.subr.mxu0 0.0
    %347 = vmatpush1.msra.mxu0 0.0
    %348 = vmatprep.subr.mxu0 0.0
    %349 = vmatpush1.msra.mxu0 0.0
    %350 = vmatprep.subr.mxu0 0.0
    %351 = vmatpush1.msra.mxu0 0.0
    %352 = vmatprep.subr.mxu0 0.0
    %353 = vmatpush1.msra.mxu0 0.0
    %354 = vmatprep.subr.mxu0 0.0
    %355 = vmatpush1.msra.mxu0 0.0
    %356 = vmatprep.subr.mxu0 0.0
    %357 = vmatpush1.msra.mxu0 0.0
    %358 = vmatprep.mubr.f32.mxu0 0.0
    %359 = vmatmul.mubr.f32.gmra.mrb[0].mxu0 %v279
    %v360 = vpop.f32.mrb[0].mxu0
    %v361 = vadd.f32 0.0, %v360
    %v362 = vpop.f32.mrb[0].mxu0
    %v363 = vadd.f32 0.0, %v362
    %364 = vdwg.mxu0
    %365 = vmatprep.subr.mxu0 %v272
    %366 = vmatpush1.msra.mxu0 %v271
    %367 = vmatprep.subr.mxu0 %v292
    %368 = vmatpush1.msra.mxu0 %v289
    %369 = vmatprep.subr.mxu0 0.0
    %370 = vmatpush1.msra.mxu0 0.0
    %371 = vmatprep.subr.mxu0 0.0
    %372 = vmatpush1.msra.mxu0 0.0
    %373 = vmatprep.subr.mxu0 0.0
    %374 = vmatpush1.msra.mxu0 0.0
    %375 = vmatprep.subr.mxu0 0.0
    %376 = vmatpush1.msra.mxu0 0.0
    %377 = vmatprep.subr.mxu0 0.0
    %378 = vmatpush1.msra.mxu0 0.0
    %379 = vmatprep.subr.mxu0 0.0
    %380 = vmatpush1.msra.mxu0 0.0
    %381 = vmatprep.subr.mxu0 0.0
    %382 = vmatpush1.msra.mxu0 0.0
    %383 = vmatprep.subr.mxu0 0.0
    %384 = vmatpush1.msra.mxu0 0.0
    %385 = vmatprep.subr.mxu0 0.0
    %386 = vmatpush1.msra.mxu0 0.0
    %387 = vmatprep.subr.mxu0 0.0
    %388 = vmatpush1.msra.mxu0 0.0
    %389 = vmatprep.subr.mxu0 0.0
    %390 = vmatpush1.msra.mxu0 0.0
    %391 = vmatprep.subr.mxu0 0.0
    %392 = vmatpush1.msra.mxu0 0.0
    %393 = vmatprep.subr.mxu0 0.0
    %394 = vmatpush1.msra.mxu0 0.0
    %395 = vmatprep.subr.mxu0 0.0
    %396 = vmatpush1.msra.mxu0 0.0
    %397 = vmatprep.subr.mxu0 0.0
    %398 = vmatpush1.msra.mxu0 0.0
    %399 = vmatprep.subr.mxu0 0.0
    %400 = vmatpush1.msra.mxu0 0.0
    %401 = vmatprep.subr.mxu0 0.0
    %402 = vmatpush1.msra.mxu0 0.0
    %403 = vmatprep.subr.mxu0 0.0
    %404 = vmatpush1.msra.mxu0 0.0
    %405 = vmatprep.subr.mxu0 0.0
    %406 = vmatpush1.msra.mxu0 0.0
    %407 = vmatprep.subr.mxu0 0.0
    %408 = vmatpush1.msra.mxu0 0.0
    %409 = vmatprep.subr.mxu0 0.0
    %410 = vmatpush1.msra.mxu0 0.0
    %411 = vmatprep.subr.mxu0 0.0
    %412 = vmatpush1.msra.mxu0 0.0
    %413 = vmatprep.subr.mxu0 0.0
    %414 = vmatpush1.msra.mxu0 0.0
    %415 = vmatprep.subr.mxu0 0.0
    %416 = vmatpush1.msra.mxu0 0.0
    %417 = vmatprep.subr.mxu0 0.0
    %418 = vmatpush1.msra.mxu0 0.0
    %419 = vmatprep.subr.mxu0 0.0
    %420 = vmatpush1.msra.mxu0 0.0
    %421 = vmatprep.subr.mxu0 0.0
    %422 = vmatpush1.msra.mxu0 0.0
    %423 = vmatprep.subr.mxu0 0.0
    %424 = vmatpush1.msra.mxu0 0.0
    %425 = vmatprep.subr.mxu0 0.0
    %426 = vmatpush1.msra.mxu0 0.0
    %427 = vmatprep.subr.mxu0 0.0
    %428 = vmatpush1.msra.mxu0 0.0
    %429 = vmatprep.mubr.f32.mxu0 0.0
    %430 = vmatmul.mubr.f32.gmra.mrb[0].mxu0 %v279
    %v431 = vpop.f32.mrb[0].mxu0
    %v432 = vadd.f32 0.0, %v431
    %v433 = vpop.f32.mrb[0].mxu0
    %v434 = vadd.f32 0.0, %v433
    %435 = vdwg.mxu0
    %v436 = vadd.f32 %v265, %v361
    %v437 = vadd.f32 %v266, %v363
    %v438 = vadd.f32 %v267, %v432
    %v439 = vadd.f32 %v268, %v434
    %v440 = vxor.u32 %v436, 2147483648
    %v441 = vmul.f32 %v440, 1.442695
    %v442 = vpow.pop %v441
    %v443 = vadd.f32 %v442, 1.0
    %v444 = vrcp.pop %v443
    %v445 = vmul.f32 1.0, %v444
    %v446 = vxor.u32 %v437, 2147483648
    %v447 = vmul.f32 %v446, 1.442695
    %v448 = vpow.pop %v447
    %v449 = vadd.f32 %v448, 1.0
    %v450 = vrcp.pop %v449
    %v451 = vmul.f32 1.0, %v450
    %v452 = vtanh.pop %v438
    %v453 = vxor.u32 %v439, 2147483648
    %v454 = vmul.f32 %v453, 1.442695
    %v455 = vpow.pop %v454
    %v456 = vadd.f32 %v455, 1.0
    %v457 = vrcp.pop %v456
    %v458 = vmul.f32 1.0, %v457
    %v459 = vmul.f32 %v451, 0.0
    %v460 = vmul.f32 %v445, %v452
    %v461 = vadd.f32 %v459, %v460
    %v462 = vtanh.pop %v461
    %v463 = vmul.f32 %v458, %v462
    %v464 = vld [vmem:[%s4] sm:$0xff]
    %v465 = vld [vmem:[%s4 + $0x8] sm:$0xff]
    %v466 = vld [vmem:[%s4 + $0x10] sm:$0xff]
    %v467 = vld [vmem:[%s4 + $0x18] sm:$0xff]
    %v468 = vld [vmem:[%s4 + $0x20] sm:$0x3]
    %v469 = vld [vmem:[%s4 + $0x28] sm:$0x3]
    %v470 = vld [vmem:[%s4 + $0x30] sm:$0x3]
    %v471 = vld [vmem:[%s4 + $0x38] sm:$0x3]
    %v472 = vld [vmem:[%s5] sm:$0xff]
    %v473 = vld [vmem:[%s5 + $0x8] sm:$0xff]
    %v474 = vld [vmem:[%s5 + $0x10] sm:$0xff]
    %v475 = vld [vmem:[%s5 + $0x18] sm:$0xff]
    %v476 = vld [vmem:[%s5 + $0x20] sm:$0x3]
    %v477 = vld [vmem:[%s5 + $0x28] sm:$0x3]
    %v478 = vld [vmem:[%s5 + $0x30] sm:$0x3]
    %v479 = vld [vmem:[%s5 + $0x38] sm:$0x3]
    %v481 = vsel %vm281, %v476, 0
    %v484 = vsel %vm281, %v477, 0
    %v487 = vsel %vm281, %v478, 0
    %v490 = vsel %vm281, %v479, 0
    %492 = vmatprep.subr.mxu0 %v473
    %493 = vmatpush1.msra.mxu0 %v472
    %494 = vmatprep.subr.mxu0 %v484
    %495 = vmatpush1.msra.mxu0 %v481
    %496 = vmatprep.subr.mxu0 0.0
    %497 = vmatpush1.msra.mxu0 0.0
    %498 = vmatprep.subr.mxu0 0.0
    %499 = vmatpush1.msra.mxu0 0.0
    %500 = vmatprep.subr.mxu0 0.0
    %501 = vmatpush1.msra.mxu0 0.0
    %502 = vmatprep.subr.mxu0 0.0
    %503 = vmatpush1.msra.mxu0 0.0
    %504 = vmatprep.subr.mxu0 0.0
    %505 = vmatpush1.msra.mxu0 0.0
    %506 = vmatprep.subr.mxu0 0.0
    %507 = vmatpush1.msra.mxu0 0.0
    %508 = vmatprep.subr.mxu0 0.0
    %509 = vmatpush1.msra.mxu0 0.0
    %510 = vmatprep.subr.mxu0 0.0
    %511 = vmatpush1.msra.mxu0 0.0
    %512 = vmatprep.subr.mxu0 0.0
    %513 = vmatpush1.msra.mxu0 0.0
    %514 = vmatprep.subr.mxu0 0.0
    %515 = vmatpush1.msra.mxu0 0.0
    %516 = vmatprep.subr.mxu0 0.0
    %517 = vmatpush1.msra.mxu0 0.0
    %518 = vmatprep.subr.mxu0 0.0
    %519 = vmatpush1.msra.mxu0 0.0
    %520 = vmatprep.subr.mxu0 0.0
    %521 = vmatpush1.msra.mxu0 0.0
    %522 = vmatprep.subr.mxu0 0.0
    %523 = vmatpush1.msra.mxu0 0.0
    %524 = vmatprep.subr.mxu0 0.0
    %525 = vmatpush1.msra.mxu0 0.0
    %526 = vmatprep.subr.mxu0 0.0
    %527 = vmatpush1.msra.mxu0 0.0
    %528 = vmatprep.subr.mxu0 0.0
    %529 = vmatpush1.msra.mxu0 0.0
    %530 = vmatprep.subr.mxu0 0.0
    %531 = vmatpush1.msra.mxu0 0.0
    %532 = vmatprep.subr.mxu0 0.0
    %533 = vmatpush1.msra.mxu0 0.0
    %534 = vmatprep.subr.mxu0 0.0
    %535 = vmatpush1.msra.mxu0 0.0
    %536 = vmatprep.subr.mxu0 0.0
    %537 = vmatpush1.msra.mxu0 0.0
    %538 = vmatprep.subr.mxu0 0.0
    %539 = vmatpush1.msra.mxu0 0.0
    %540 = vmatprep.subr.mxu0 0.0
    %541 = vmatpush1.msra.mxu0 0.0
    %542 = vmatprep.subr.mxu0 0.0
    %543 = vmatpush1.msra.mxu0 0.0
    %544 = vmatprep.subr.mxu0 0.0
    %545 = vmatpush1.msra.mxu0 0.0
    %546 = vmatprep.subr.mxu0 0.0
    %547 = vmatpush1.msra.mxu0 0.0
    %548 = vmatprep.subr.mxu0 0.0
    %549 = vmatpush1.msra.mxu0 0.0
    %550 = vmatprep.subr.mxu0 0.0
    %551 = vmatpush1.msra.mxu0 0.0
    %552 = vmatprep.subr.mxu0 0.0
    %553 = vmatpush1.msra.mxu0 0.0
    %554 = vmatprep.subr.mxu0 0.0
    %555 = vmatpush1.msra.mxu0 0.0
    %556 = vmatprep.mubr.f32.mxu0 0.0
    %557 = vmatmul.mubr.f32.gmra.mrb[0].mxu0 %v279
    %v558 = vpop.f32.mrb[0].mxu0
    %v559 = vadd.f32 0.0, %v558
    %v560 = vpop.f32.mrb[0].mxu0
    %v561 = vadd.f32 0.0, %v560
    %562 = vdwg.mxu0
    %563 = vmatprep.subr.mxu0 %v475
    %564 = vmatpush1.msra.mxu0 %v474
    %565 = vmatprep.subr.mxu0 %v490
    %566 = vmatpush1.msra.mxu0 %v487
    %567 = vmatprep.subr.mxu0 0.0
    %568 = vmatpush1.msra.mxu0 0.0
    %569 = vmatprep.subr.mxu0 0.0
    %570 = vmatpush1.msra.mxu0 0.0
    %571 = vmatprep.subr.mxu0 0.0
    %572 = vmatpush1.msra.mxu0 0.0
    %573 = vmatprep.subr.mxu0 0.0
    %574 = vmatpush1.msra.mxu0 0.0
    %575 = vmatprep.subr.mxu0 0.0
    %576 = vmatpush1.msra.mxu0 0.0
    %577 = vmatprep.subr.mxu0 0.0
    %578 = vmatpush1.msra.mxu0 0.0
    %579 = vmatprep.subr.mxu0 0.0
    %580 = vmatpush1.msra.mxu0 0.0
    %581 = vmatprep.subr.mxu0 0.0
    %582 = vmatpush1.msra.mxu0 0.0
    %583 = vmatprep.subr.mxu0 0.0
    %584 = vmatpush1.msra.mxu0 0.0
    %585 = vmatprep.subr.mxu0 0.0
    %586 = vmatpush1.msra.mxu0 0.0
    %587 = vmatprep.subr.mxu0 0.0
    %588 = vmatpush1.msra.mxu0 0.0
    %589 = vmatprep.subr.mxu0 0.0
    %590 = vmatpush1.msra.mxu0 0.0
    %591 = vmatprep.subr.mxu0 0.0
    %592 = vmatpush1.msra.mxu0 0.0
    %593 = vmatprep.subr.mxu0 0.0
    %594 = vmatpush1.msra.mxu0 0.0
    %595 = vmatprep.subr.mxu0 0.0
    %596 = vmatpush1.msra.mxu0 0.0
    %597 = vmatprep.subr.mxu0 0.0
    %598 = vmatpush1.msra.mxu0 0.0
    %599 = vmatprep.subr.mxu0 0.0
    %600 = vmatpush1.msra.mxu0 0.0
    %601 = vmatprep.subr.mxu0 0.0
    %602 = vmatpush1.msra.mxu0 0.0
    %603 = vmatprep.subr.mxu0 0.0
    %604 = vmatpush1.msra.mxu0 0.0
    %605 = vmatprep.subr.mxu0 0.0
    %606 = vmatpush1.msra.mxu0 0.0
    %607 = vmatprep.subr.mxu0 0.0
    %608 = vmatpush1.msra.mxu0 0.0
    %609 = vmatprep.subr.mxu0 0.0
    %610 = vmatpush1.msra.mxu0 0.0
    %611 = vmatprep.subr.mxu0 0.0
    %612 = vmatpush1.msra.mxu0 0.0
    %613 = vmatprep.subr.mxu0 0.0
    %614 = vmatpush1.msra.mxu0 0.0
    %615 = vmatprep.subr.mxu0 0.0
    %616 = vmatpush1.msra.mxu0 0.0
    %617 = vmatprep.subr.mxu0 0.0
    %618 = vmatpush1.msra.mxu0 0.0
    %619 = vmatprep.subr.mxu0 0.0
    %620 = vmatpush1.msra.mxu0 0.0
    %621 = vmatprep.subr.mxu0 0.0
    %622 = vmatpush1.msra.mxu0 0.0
    %623 = vmatprep.subr.mxu0 0.0
    %624 = vmatpush1.msra.mxu0 0.0
    %625 = vmatprep.subr.mxu0 0.0
    %626 = vmatpush1.msra.mxu0 0.0
    %627 = vmatprep.mubr.f32.mxu0 0.0
    %628 = vmatmul.mubr.f32.gmra.mrb[0].mxu0 %v279
    %v629 = vpop.f32.mrb[0].mxu0
    %v630 = vadd.f32 0.0, %v629
    %v631 = vpop.f32.mrb[0].mxu0
    %v632 = vadd.f32 0.0, %v631
    %633 = vdwg.mxu0
    %v635 = vsel %vm277, %v463, 0
    %v638 = vsel %vm281, %v468, 0
    %v641 = vsel %vm281, %v469, 0
    %v644 = vsel %vm281, %v470, 0
    %v647 = vsel %vm281, %v471, 0
    %649 = vmatprep.subr.mxu0 %v465
    %650 = vmatpush1.msra.mxu0 %v464
    %651 = vmatprep.subr.mxu0 %v641
    %652 = vmatpush1.msra.mxu0 %v638
    %653 = vmatprep.subr.mxu0 0.0
    %654 = vmatpush1.msra.mxu0 0.0
    %655 = vmatprep.subr.mxu0 0.0
    %656 = vmatpush1.msra.mxu0 0.0
    %657 = vmatprep.subr.mxu0 0.0
    %658 = vmatpush1.msra.mxu0 0.0
    %659 = vmatprep.subr.mxu0 0.0
    %660 = vmatpush1.msra.mxu0 0.0
    %661 = vmatprep.subr.mxu0 0.0
    %662 = vmatpush1.msra.mxu0 0.0
    %663 = vmatprep.subr.mxu0 0.0
    %664 = vmatpush1.msra.mxu0 0.0
    %665 = vmatprep.subr.mxu0 0.0
    %666 = vmatpush1.msra.mxu0 0.0
    %667 = vmatprep.subr.mxu0 0.0
    %668 = vmatpush1.msra.mxu0 0.0
    %669 = vmatprep.subr.mxu0 0.0
    %670 = vmatpush1.msra.mxu0 0.0
    %671 = vmatprep.subr.mxu0 0.0
    %672 = vmatpush1.msra.mxu0 0.0
    %673 = vmatprep.subr.mxu0 0.0
    %674 = vmatpush1.msra.mxu0 0.0
    %675 = vmatprep.subr.mxu0 0.0
    %676 = vmatpush1.msra.mxu0 0.0
    %677 = vmatprep.subr.mxu0 0.0
    %678 = vmatpush1.msra.mxu0 0.0
    %679 = vmatprep.subr.mxu0 0.0
    %680 = vmatpush1.msra.mxu0 0.0
    %681 = vmatprep.subr.mxu0 0.0
    %682 = vmatpush1.msra.mxu0 0.0
    %683 = vmatprep.subr.mxu0 0.0
    %684 = vmatpush1.msra.mxu0 0.0
    %685 = vmatprep.subr.mxu0 0.0
    %686 = vmatpush1.msra.mxu0 0.0
    %687 = vmatprep.subr.mxu0 0.0
    %688 = vmatpush1.msra.mxu0 0.0
    %689 = vmatprep.subr.mxu0 0.0
    %690 = vmatpush1.msra.mxu0 0.0
    %691 = vmatprep.subr.mxu0 0.0
    %692 = vmatpush1.msra.mxu0 0.0
    %693 = vmatprep.subr.mxu0 0.0
    %694 = vmatpush1.msra.mxu0 0.0
    %695 = vmatprep.subr.mxu0 0.0
    %696 = vmatpush1.msra.mxu0 0.0
    %697 = vmatprep.subr.mxu0 0.0
    %698 = vmatpush1.msra.mxu0 0.0
    %699 = vmatprep.subr.mxu0 0.0
    %700 = vmatpush1.msra.mxu0 0.0
    %701 = vmatprep.subr.mxu0 0.0
    %702 = vmatpush1.msra.mxu0 0.0
    %703 = vmatprep.subr.mxu0 0.0
    %704 = vmatpush1.msra.mxu0 0.0
    %705 = vmatprep.subr.mxu0 0.0
    %706 = vmatpush1.msra.mxu0 0.0
    %707 = vmatprep.subr.mxu0 0.0
    %708 = vmatpush1.msra.mxu0 0.0
    %709 = vmatprep.subr.mxu0 0.0
    %710 = vmatpush1.msra.mxu0 0.0
    %711 = vmatprep.subr.mxu0 0.0
    %712 = vmatpush1.msra.mxu0 0.0
    %713 = vmatprep.mubr.f32.mxu0 0.0
    %714 = vmatmul.mubr.f32.gmra.mrb[0].mxu0 %v635
    %v715 = vpop.f32.mrb[0].mxu0
    %v716 = vadd.f32 %v559, %v715
    %v717 = vpop.f32.mrb[0].mxu0
    %v718 = vadd.f32 %v561, %v717
    %719 = vdwg.mxu0
    %720 = vmatprep.subr.mxu0 %v467
    %721 = vmatpush1.msra.mxu0 %v466
    %722 = vmatprep.subr.mxu0 %v647
    %723 = vmatpush1.msra.mxu0 %v644
    %724 = vmatprep.subr.mxu0 0.0
    %725 = vmatpush1.msra.mxu0 0.0
    %726 = vmatprep.subr.mxu0 0.0
    %727 = vmatpush1.msra.mxu0 0.0
    %728 = vmatprep.subr.mxu0 0.0
    %729 = vmatpush1.msra.mxu0 0.0
    %730 = vmatprep.subr.mxu0 0.0
    %731 = vmatpush1.msra.mxu0 0.0
    %732 = vmatprep.subr.mxu0 0.0
    %733 = vmatpush1.msra.mxu0 0.0
    %734 = vmatprep.subr.mxu0 0.0
    %735 = vmatpush1.msra.mxu0 0.0
    %736 = vmatprep.subr.mxu0 0.0
    %737 = vmatpush1.msra.mxu0 0.0
    %738 = vmatprep.subr.mxu0 0.0
    %739 = vmatpush1.msra.mxu0 0.0
    %740 = vmatprep.subr.mxu0 0.0
    %741 = vmatpush1.msra.mxu0 0.0
    %742 = vmatprep.subr.mxu0 0.0
    %743 = vmatpush1.msra.mxu0 0.0
    %744 = vmatprep.subr.mxu0 0.0
    %745 = vmatpush1.msra.mxu0 0.0
    %746 = vmatprep.subr.mxu0 0.0
    %747 = vmatpush1.msra.mxu0 0.0
    %748 = vmatprep.subr.mxu0 0.0
    %749 = vmatpush1.msra.mxu0 0.0
    %750 = vmatprep.subr.mxu0 0.0
    %751 = vmatpush1.msra.mxu0 0.0
    %752 = vmatprep.subr.mxu0 0.0
    %753 = vmatpush1.msra.mxu0 0.0
    %754 = vmatprep.subr.mxu0 0.0
    %755 = vmatpush1.msra.mxu0 0.0
    %756 = vmatprep.subr.mxu0 0.0
    %757 = vmatpush1.msra.mxu0 0.0
    %758 = vmatprep.subr.mxu0 0.0
    %759 = vmatpush1.msra.mxu0 0.0
    %760 = vmatprep.subr.mxu0 0.0
    %761 = vmatpush1.msra.mxu0 0.0
    %762 = vmatprep.subr.mxu0 0.0
    %763 = vmatpush1.msra.mxu0 0.0
    %764 = vmatprep.subr.mxu0 0.0
    %765 = vmatpush1.msra.mxu0 0.0
    %766 = vmatprep.subr.mxu0 0.0
    %767 = vmatpush1.msra.mxu0 0.0
    %768 = vmatprep.subr.mxu0 0.0
    %769 = vmatpush1.msra.mxu0 0.0
    %770 = vmatprep.subr.mxu0 0.0
    %771 = vmatpush1.msra.mxu0 0.0
    %772 = vmatprep.subr.mxu0 0.0
    %773 = vmatpush1.msra.mxu0 0.0
    %774 = vmatprep.subr.mxu0 0.0
    %775 = vmatpush1.msra.mxu0 0.0
    %776 = vmatprep.subr.mxu0 0.0
    %777 = vmatpush1.msra.mxu0 0.0
    %778 = vmatprep.subr.mxu0 0.0
    %779 = vmatpush1.msra.mxu0 0.0
    %780 = vmatprep.subr.mxu0 0.0
    %781 = vmatpush1.msra.mxu0 0.0
    %782 = vmatprep.subr.mxu0 0.0
    %783 = vmatpush1.msra.mxu0 0.0
    %784 = vmatprep.mubr.f32.mxu0 0.0
    %785 = vmatmul.mubr.f32.gmra.mrb[0].mxu0 %v635
    %v786 = vpop.f32.mrb[0].mxu0
    %v787 = vadd.f32 %v630, %v786
    %v788 = vpop.f32.mrb[0].mxu0
    %v789 = vadd.f32 %v632, %v788
    %790 = vdwg.mxu0
    %v791 = vld [vmem:[#allocation7] sm:$0xf]
    %v793 = vlaneseq
    %v794 = vshrl.u32 %v793, 7
    %v795 = vsub.s32 0, %v794
    %v796 = vrot.slane %v791, %v795
    %v797 = vlaneseq
    %v798 = vshrl.u32 %v797, 7
    %v799 = vsub.s32 1, %v798
    %v800 = vrot.slane %v791, %v799
    %v801 = vlaneseq
    %v802 = vshrl.u32 %v801, 7
    %v803 = vsub.s32 2, %v802
    %v804 = vrot.slane %v791, %v803
    %v805 = vlaneseq
    %v806 = vshrl.u32 %v805, 7
    %v807 = vsub.s32 3, %v806
    %v808 = vrot.slane %v791, %v807
    %v813 = vadd.f32 %v716, %v796
    %v814 = vadd.f32 %v718, %v800
    %v815 = vadd.f32 %v787, %v804
    %v816 = vadd.f32 %v789, %v808
    %v817 = vxor.u32 %v813, 2147483648
    %v818 = vmul.f32 %v817, 1.442695
    %v819 = vpow.pop %v818
    %v820 = vadd.f32 %v819, 1.0
    %v821 = vrcp.pop %v820
    %v822 = vmul.f32 1.0, %v821
    %v823 = vxor.u32 %v814, 2147483648
    %v824 = vmul.f32 %v823, 1.442695
    %v825 = vpow.pop %v824
    %v826 = vadd.f32 %v825, 1.0
    %v827 = vrcp.pop %v826
    %v828 = vmul.f32 1.0, %v827
    %v829 = vtanh.pop %v815
    %v830 = vxor.u32 %v816, 2147483648
    %v831 = vmul.f32 %v830, 1.442695
    %v832 = vpow.pop %v831
    %v833 = vadd.f32 %v832, 1.0
    %v834 = vrcp.pop %v833
    %v835 = vmul.f32 1.0, %v834
    %v836 = vmul.f32 %v828, 0.0
    %v837 = vmul.f32 %v822, %v829
    %v838 = vadd.f32 %v836, %v837
    %v839 = vtanh.pop %v838
    %v840 = vmul.f32 %v835, %v839
    %841 = vset.pattern.permute.xlu0 1
    %842 = vperm.xlu0 %841, %v211
    %v843 = vpop.permute.xlu0 %842
    %v845 = vmul.f32 %v843, %v223
    %v846 = vmul.f32 %v843, %v227
    %v847 = vmul.f32 %v843, %v231
    %v848 = vmul.f32 %v843, %v235
    %v849 = vadd.f32 %v845, %v248
    %v850 = vadd.f32 %v846, %v252
    %v851 = vadd.f32 %v847, %v256
    %v852 = vadd.f32 %v848, %v260
    %853 = vmatprep.subr.mxu0 %v270
    %854 = vmatpush1.msra.mxu0 %v269
    %855 = vmatprep.subr.mxu0 %v286
    %856 = vmatpush1.msra.mxu0 %v283
    %857 = vmatprep.subr.mxu0 0.0
    %858 = vmatpush1.msra.mxu0 0.0
    %859 = vmatprep.subr.mxu0 0.0
    %860 = vmatpush1.msra.mxu0 0.0
    %861 = vmatprep.subr.mxu0 0.0
    %862 = vmatpush1.msra.mxu0 0.0
    %863 = vmatprep.subr.mxu0 0.0
    %864 = vmatpush1.msra.mxu0 0.0
    %865 = vmatprep.subr.mxu0 0.0
    %866 = vmatpush1.msra.mxu0 0.0
    %867 = vmatprep.subr.mxu0 0.0
    %868 = vmatpush1.msra.mxu0 0.0
    %869 = vmatprep.subr.mxu0 0.0
    %870 = vmatpush1.msra.mxu0 0.0
    %871 = vmatprep.subr.mxu0 0.0
    %872 = vmatpush1.msra.mxu0 0.0
    %873 = vmatprep.subr.mxu0 0.0
    %874 = vmatpush1.msra.mxu0 0.0
    %875 = vmatprep.subr.mxu0 0.0
    %876 = vmatpush1.msra.mxu0 0.0
    %877 = vmatprep.subr.mxu0 0.0
    %878 = vmatpush1.msra.mxu0 0.0
    %879 = vmatprep.subr.mxu0 0.0
    %880 = vmatpush1.msra.mxu0 0.0
    %881 = vmatprep.subr.mxu0 0.0
    %882 = vmatpush1.msra.mxu0 0.0
    %883 = vmatprep.subr.mxu0 0.0
    %884 = vmatpush1.msra.mxu0 0.0
    %885 = vmatprep.subr.mxu0 0.0
    %886 = vmatpush1.msra.mxu0 0.0
    %887 = vmatprep.subr.mxu0 0.0
    %888 = vmatpush1.msra.mxu0 0.0
    %889 = vmatprep.subr.mxu0 0.0
    %890 = vmatpush1.msra.mxu0 0.0
    %891 = vmatprep.subr.mxu0 0.0
    %892 = vmatpush1.msra.mxu0 0.0
    %893 = vmatprep.subr.mxu0 0.0
    %894 = vmatpush1.msra.mxu0 0.0
    %895 = vmatprep.subr.mxu0 0.0
    %896 = vmatpush1.msra.mxu0 0.0
    %897 = vmatprep.subr.mxu0 0.0
    %898 = vmatpush1.msra.mxu0 0.0
    %899 = vmatprep.subr.mxu0 0.0
    %900 = vmatpush1.msra.mxu0 0.0
    %901 = vmatprep.subr.mxu0 0.0
    %902 = vmatpush1.msra.mxu0 0.0
    %903 = vmatprep.subr.mxu0 0.0
    %904 = vmatpush1.msra.mxu0 0.0
    %905 = vmatprep.subr.mxu0 0.0
    %906 = vmatpush1.msra.mxu0 0.0
    %907 = vmatprep.subr.mxu0 0.0
    %908 = vmatpush1.msra.mxu0 0.0
    %909 = vmatprep.subr.mxu0 0.0
    %910 = vmatpush1.msra.mxu0 0.0
    %911 = vmatprep.subr.mxu0 0.0
    %912 = vmatpush1.msra.mxu0 0.0
    %913 = vmatprep.subr.mxu0 0.0
    %914 = vmatpush1.msra.mxu0 0.0
    %915 = vmatprep.subr.mxu0 0.0
    %916 = vmatpush1.msra.mxu0 0.0
    %917 = vmatprep.mubr.f32.mxu0 0.0
    %918 = vmatmul.mubr.f32.gmra.mrb[0].mxu0 %v635
    %v919 = vpop.f32.mrb[0].mxu0
    %v920 = vadd.f32 0.0, %v919
    %v921 = vpop.f32.mrb[0].mxu0
    %v922 = vadd.f32 0.0, %v921
    %923 = vdwg.mxu0
    %924 = vmatprep.subr.mxu0 %v272
    %925 = vmatpush1.msra.mxu0 %v271
    %926 = vmatprep.subr.mxu0 %v292
    %927 = vmatpush1.msra.mxu0 %v289
    %928 = vmatprep.subr.mxu0 0.0
    %929 = vmatpush1.msra.mxu0 0.0
    %930 = vmatprep.subr.mxu0 0.0
    %931 = vmatpush1.msra.mxu0 0.0
    %932 = vmatprep.subr.mxu0 0.0
    %933 = vmatpush1.msra.mxu0 0.0
    %934 = vmatprep.subr.mxu0 0.0
    %935 = vmatpush1.msra.mxu0 0.0
    %936 = vmatprep.subr.mxu0 0.0
    %937 = vmatpush1.msra.mxu0 0.0
    %938 = vmatprep.subr.mxu0 0.0
    %939 = vmatpush1.msra.mxu0 0.0
    %940 = vmatprep.subr.mxu0 0.0
    %941 = vmatpush1.msra.mxu0 0.0
    %942 = vmatprep.subr.mxu0 0.0
    %943 = vmatpush1.msra.mxu0 0.0
    %944 = vmatprep.subr.mxu0 0.0
    %945 = vmatpush1.msra.mxu0 0.0
    %946 = vmatprep.subr.mxu0 0.0
    %947 = vmatpush1.msra.mxu0 0.0
    %948 = vmatprep.subr.mxu0 0.0
    %949 = vmatpush1.msra.mxu0 0.0
    %950 = vmatprep.subr.mxu0 0.0
    %951 = vmatpush1.msra.mxu0 0.0
    %952 = vmatprep.subr.mxu0 0.0
    %953 = vmatpush1.msra.mxu0 0.0
    %954 = vmatprep.subr.mxu0 0.0
    %955 = vmatpush1.msra.mxu0 0.0
    %956 = vmatprep.subr.mxu0 0.0
    %957 = vmatpush1.msra.mxu0 0.0
    %958 = vmatprep.subr.mxu0 0.0
    %959 = vmatpush1.msra.mxu0 0.0
    %960 = vmatprep.subr.mxu0 0.0
    %961 = vmatpush1.msra.mxu0 0.0
    %962 = vmatprep.subr.mxu0 0.0
    %963 = vmatpush1.msra.mxu0 0.0
    %964 = vmatprep.subr.mxu0 0.0
    %965 = vmatpush1.msra.mxu0 0.0
    %966 = vmatprep.subr.mxu0 0.0
    %967 = vmatpush1.msra.mxu0 0.0
    %968 = vmatprep.subr.mxu0 0.0
    %969 = vmatpush1.msra.mxu0 0.0
    %970 = vmatprep.subr.mxu0 0.0
    %971 = vmatpush1.msra.mxu0 0.0
    %972 = vmatprep.subr.mxu0 0.0
    %973 = vmatpush1.msra.mxu0 0.0
    %974 = vmatprep.subr.mxu0 0.0
    %975 = vmatpush1.msra.mxu0 0.0
    %976 = vmatprep.subr.mxu0 0.0
    %977 = vmatpush1.msra.mxu0 0.0
    %978 = vmatprep.subr.mxu0 0.0
    %979 = vmatpush1.msra.mxu0 0.0
    %980 = vmatprep.subr.mxu0 0.0
    %981 = vmatpush1.msra.mxu0 0.0
    %982 = vmatprep.subr.mxu0 0.0
    %983 = vmatpush1.msra.mxu0 0.0
    %984 = vmatprep.subr.mxu0 0.0
    %985 = vmatpush1.msra.mxu0 0.0
    %986 = vmatprep.subr.mxu0 0.0
    %987 = vmatpush1.msra.mxu0 0.0
    %988 = vmatprep.mubr.f32.mxu0 0.0
    %989 = vmatmul.mubr.f32.gmra.mrb[0].mxu0 %v635
    %v990 = vpop.f32.mrb[0].mxu0
    %v991 = vadd.f32 0.0, %v990
    %v992 = vpop.f32.mrb[0].mxu0
    %v993 = vadd.f32 0.0, %v992
    %994 = vdwg.mxu0
    %v995 = vadd.f32 %v849, %v920
    %v996 = vadd.f32 %v850, %v922
    %v997 = vadd.f32 %v851, %v991
    %v998 = vadd.f32 %v852, %v993
    %v999 = vxor.u32 %v995, 2147483648
    %v1000 = vmul.f32 %v999, 1.442695
    %v1001 = vpow.pop %v1000
    %v1002 = vadd.f32 %v1001, 1.0
    %v1003 = vrcp.pop %v1002
    %v1004 = vmul.f32 1.0, %v1003
    %v1005 = vxor.u32 %v996, 2147483648
    %v1006 = vmul.f32 %v1005, 1.442695
    %v1007 = vpow.pop %v1006
    %v1008 = vadd.f32 %v1007, 1.0
    %v1009 = vrcp.pop %v1008
    %v1010 = vmul.f32 1.0, %v1009
    %v1011 = vtanh.pop %v997
    %v1012 = vxor.u32 %v998, 2147483648
    %v1013 = vmul.f32 %v1012, 1.442695
    %v1014 = vpow.pop %v1013
    %v1015 = vadd.f32 %v1014, 1.0
    %v1016 = vrcp.pop %v1015
    %v1017 = vmul.f32 1.0, %v1016
    %v1018 = vmul.f32 %v1010, %v461
    %v1019 = vmul.f32 %v1004, %v1011
    %v1020 = vadd.f32 %v1018, %v1019
    %v1021 = vtanh.pop %v1020
    %v1022 = vmul.f32 %v1017, %v1021
    %v1024 = vsel %vm277, %v840, 0
    %1026 = vmatprep.subr.mxu0 %v473
    %1027 = vmatpush1.msra.mxu0 %v472
    %1028 = vmatprep.subr.mxu0 %v484
    %1029 = vmatpush1.msra.mxu0 %v481
    %1030 = vmatprep.subr.mxu0 0.0
    %1031 = vmatpush1.msra.mxu0 0.0
    %1032 = vmatprep.subr.mxu0 0.0
    %1033 = vmatpush1.msra.mxu0 0.0
    %1034 = vmatprep.subr.mxu0 0.0
    %1035 = vmatpush1.msra.mxu0 0.0
    %1036 = vmatprep.subr.mxu0 0.0
    %1037 = vmatpush1.msra.mxu0 0.0
    %1038 = vmatprep.subr.mxu0 0.0
    %1039 = vmatpush1.msra.mxu0 0.0
    %1040 = vmatprep.subr.mxu0 0.0
    %1041 = vmatpush1.msra.mxu0 0.0
    %1042 = vmatprep.subr.mxu0 0.0
    %1043 = vmatpush1.msra.mxu0 0.0
    %1044 = vmatprep.subr.mxu0 0.0
    %1045 = vmatpush1.msra.mxu0 0.0
    %1046 = vmatprep.subr.mxu0 0.0
    %1047 = vmatpush1.msra.mxu0 0.0
    %1048 = vmatprep.subr.mxu0 0.0
    %1049 = vmatpush1.msra.mxu0 0.0
    %1050 = vmatprep.subr.mxu0 0.0
    %1051 = vmatpush1.msra.mxu0 0.0
    %1052 = vmatprep.subr.mxu0 0.0
    %1053 = vmatpush1.msra.mxu0 0.0
    %1054 = vmatprep.subr.mxu0 0.0
    %1055 = vmatpush1.msra.mxu0 0.0
    %1056 = vmatprep.subr.mxu0 0.0
    %1057 = vmatpush1.msra.mxu0 0.0
    %1058 = vmatprep.subr.mxu0 0.0
    %1059 = vmatpush1.msra.mxu0 0.0
    %1060 = vmatprep.subr.mxu0 0.0
    %1061 = vmatpush1.msra.mxu0 0.0
    %1062 = vmatprep.subr.mxu0 0.0
    %1063 = vmatpush1.msra.mxu0 0.0
    %1064 = vmatprep.subr.mxu0 0.0
    %1065 = vmatpush1.msra.mxu0 0.0
    %1066 = vmatprep.subr.mxu0 0.0
    %1067 = vmatpush1.msra.mxu0 0.0
    %1068 = vmatprep.subr.mxu0 0.0
    %1069 = vmatpush1.msra.mxu0 0.0
    %1070 = vmatprep.subr.mxu0 0.0
    %1071 = vmatpush1.msra.mxu0 0.0
    %1072 = vmatprep.subr.mxu0 0.0
    %1073 = vmatpush1.msra.mxu0 0.0
    %1074 = vmatprep.subr.mxu0 0.0
    %1075 = vmatpush1.msra.mxu0 0.0
    %1076 = vmatprep.subr.mxu0 0.0
    %1077 = vmatpush1.msra.mxu0 0.0
    %1078 = vmatprep.subr.mxu0 0.0
    %1079 = vmatpush1.msra.mxu0 0.0
    %1080 = vmatprep.subr.mxu0 0.0
    %1081 = vmatpush1.msra.mxu0 0.0
    %1082 = vmatprep.subr.mxu0 0.0
    %1083 = vmatpush1.msra.mxu0 0.0
    %1084 = vmatprep.subr.mxu0 0.0
    %1085 = vmatpush1.msra.mxu0 0.0
    %1086 = vmatprep.subr.mxu0 0.0
    %1087 = vmatpush1.msra.mxu0 0.0
    %1088 = vmatprep.subr.mxu0 0.0
    %1089 = vmatpush1.msra.mxu0 0.0
    %1090 = vmatprep.mubr.f32.mxu0 0.0
    %1091 = vmatmul.mubr.f32.gmra.mrb[0].mxu0 %v1024
    %v1092 = vpop.f32.mrb[0].mxu0
    %v1093 = vadd.f32 0.0, %v1092
    %v1094 = vpop.f32.mrb[0].mxu0
    %v1095 = vadd.f32 0.0, %v1094
    %1096 = vdwg.mxu0
    %1097 = vmatprep.subr.mxu0 %v475
    %1098 = vmatpush1.msra.mxu0 %v474
    %1099 = vmatprep.subr.mxu0 %v490
    %1100 = vmatpush1.msra.mxu0 %v487
    %1101 = vmatprep.subr.mxu0 0.0
    %1102 = vmatpush1.msra.mxu0 0.0
    %1103 = vmatprep.subr.mxu0 0.0
    %1104 = vmatpush1.msra.mxu0 0.0
    %1105 = vmatprep.subr.mxu0 0.0
    %1106 = vmatpush1.msra.mxu0 0.0
    %1107 = vmatprep.subr.mxu0 0.0
    %1108 = vmatpush1.msra.mxu0 0.0
    %1109 = vmatprep.subr.mxu0 0.0
    %1110 = vmatpush1.msra.mxu0 0.0
    %1111 = vmatprep.subr.mxu0 0.0
    %1112 = vmatpush1.msra.mxu0 0.0
    %1113 = vmatprep.subr.mxu0 0.0
    %1114 = vmatpush1.msra.mxu0 0.0
    %1115 = vmatprep.subr.mxu0 0.0
    %1116 = vmatpush1.msra.mxu0 0.0
    %1117 = vmatprep.subr.mxu0 0.0
    %1118 = vmatpush1.msra.mxu0 0.0
    %1119 = vmatprep.subr.mxu0 0.0
    %1120 = vmatpush1.msra.mxu0 0.0
    %1121 = vmatprep.subr.mxu0 0.0
    %1122 = vmatpush1.msra.mxu0 0.0
    %1123 = vmatprep.subr.mxu0 0.0
    %1124 = vmatpush1.msra.mxu0 0.0
    %1125 = vmatprep.subr.mxu0 0.0
    %1126 = vmatpush1.msra.mxu0 0.0
    %1127 = vmatprep.subr.mxu0 0.0
    %1128 = vmatpush1.msra.mxu0 0.0
    %1129 = vmatprep.subr.mxu0 0.0
    %1130 = vmatpush1.msra.mxu0 0.0
    %1131 = vmatprep.subr.mxu0 0.0
    %1132 = vmatpush1.msra.mxu0 0.0
    %1133 = vmatprep.subr.mxu0 0.0
    %1134 = vmatpush1.msra.mxu0 0.0
    %1135 = vmatprep.subr.mxu0 0.0
    %1136 = vmatpush1.msra.mxu0 0.0
    %1137 = vmatprep.subr.mxu0 0.0
    %1138 = vmatpush1.msra.mxu0 0.0
    %1139 = vmatprep.subr.mxu0 0.0
    %1140 = vmatpush1.msra.mxu0 0.0
    %1141 = vmatprep.subr.mxu0 0.0
    %1142 = vmatpush1.msra.mxu0 0.0
    %1143 = vmatprep.subr.mxu0 0.0
    %1144 = vmatpush1.msra.mxu0 0.0
    %1145 = vmatprep.subr.mxu0 0.0
    %1146 = vmatpush1.msra.mxu0 0.0
    %1147 = vmatprep.subr.mxu0 0.0
    %1148 = vmatpush1.msra.mxu0 0.0
    %1149 = vmatprep.subr.mxu0 0.0
    %1150 = vmatpush1.msra.mxu0 0.0
    %1151 = vmatprep.subr.mxu0 0.0
    %1152 = vmatpush1.msra.mxu0 0.0
    %1153 = vmatprep.subr.mxu0 0.0
    %1154 = vmatpush1.msra.mxu0 0.0
    %1155 = vmatprep.subr.mxu0 0.0
    %1156 = vmatpush1.msra.mxu0 0.0
    %1157 = vmatprep.subr.mxu0 0.0
    %1158 = vmatpush1.msra.mxu0 0.0
    %1159 = vmatprep.subr.mxu0 0.0
    %1160 = vmatpush1.msra.mxu0 0.0
    %1161 = vmatprep.mubr.f32.mxu0 0.0
    %1162 = vmatmul.mubr.f32.gmra.mrb[0].mxu0 %v1024
    %v1163 = vpop.f32.mrb[0].mxu0
    %v1164 = vadd.f32 0.0, %v1163
    %v1165 = vpop.f32.mrb[0].mxu0
    %v1166 = vadd.f32 0.0, %v1165
    %1167 = vdwg.mxu0
    %v1169 = vsel %vm277, %v1022, 0
    %1171 = vmatprep.subr.mxu0 %v465
    %1172 = vmatpush1.msra.mxu0 %v464
    %1173 = vmatprep.subr.mxu0 %v641
    %1174 = vmatpush1.msra.mxu0 %v638
    %1175 = vmatprep.subr.mxu0 0.0
    %1176 = vmatpush1.msra.mxu0 0.0
    %1177 = vmatprep.subr.mxu0 0.0
    %1178 = vmatpush1.msra.mxu0 0.0
    %1179 = vmatprep.subr.mxu0 0.0
    %1180 = vmatpush1.msra.mxu0 0.0
    %1181 = vmatprep.subr.mxu0 0.0
    %1182 = vmatpush1.msra.mxu0 0.0
    %1183 = vmatprep.subr.mxu0 0.0
    %1184 = vmatpush1.msra.mxu0 0.0
    %1185 = vmatprep.subr.mxu0 0.0
    %1186 = vmatpush1.msra.mxu0 0.0
    %1187 = vmatprep.subr.mxu0 0.0
    %1188 = vmatpush1.msra.mxu0 0.0
    %1189 = vmatprep.subr.mxu0 0.0
    %1190 = vmatpush1.msra.mxu0 0.0
    %1191 = vmatprep.subr.mxu0 0.0
    %1192 = vmatpush1.msra.mxu0 0.0
    %1193 = vmatprep.subr.mxu0 0.0
    %1194 = vmatpush1.msra.mxu0 0.0
    %1195 = vmatprep.subr.mxu0 0.0
    %1196 = vmatpush1.msra.mxu0 0.0
    %1197 = vmatprep.subr.mxu0 0.0
    %1198 = vmatpush1.msra.mxu0 0.0
    %1199 = vmatprep.subr.mxu0 0.0
    %1200 = vmatpush1.msra.mxu0 0.0
    %1201 = vmatprep.subr.mxu0 0.0
    %1202 = vmatpush1.msra.mxu0 0.0
    %1203 = vmatprep.subr.mxu0 0.0
    %1204 = vmatpush1.msra.mxu0 0.0
    %1205 = vmatprep.subr.mxu0 0.0
    %1206 = vmatpush1.msra.mxu0 0.0
    %1207 = vmatprep.subr.mxu0 0.0
    %1208 = vmatpush1.msra.mxu0 0.0
    %1209 = vmatprep.subr.mxu0 0.0
    %1210 = vmatpush1.msra.mxu0 0.0
    %1211 = vmatprep.subr.mxu0 0.0
    %1212 = vmatpush1.msra.mxu0 0.0
    %1213 = vmatprep.subr.mxu0 0.0
    %1214 = vmatpush1.msra.mxu0 0.0
    %1215 = vmatprep.subr.mxu0 0.0
    %1216 = vmatpush1.msra.mxu0 0.0
    %1217 = vmatprep.subr.mxu0 0.0
    %1218 = vmatpush1.msra.mxu0 0.0
    %1219 = vmatprep.subr.mxu0 0.0
    %1220 = vmatpush1.msra.mxu0 0.0
    %1221 = vmatprep.subr.mxu0 0.0
    %1222 = vmatpush1.msra.mxu0 0.0
    %1223 = vmatprep.subr.mxu0 0.0
    %1224 = vmatpush1.msra.mxu0 0.0
    %1225 = vmatprep.subr.mxu0 0.0
    %1226 = vmatpush1.msra.mxu0 0.0
    %1227 = vmatprep.subr.mxu0 0.0
    %1228 = vmatpush1.msra.mxu0 0.0
    %1229 = vmatprep.subr.mxu0 0.0
    %1230 = vmatpush1.msra.mxu0 0.0
    %1231 = vmatprep.subr.mxu0 0.0
    %1232 = vmatpush1.msra.mxu0 0.0
    %1233 = vmatprep.subr.mxu0 0.0
    %1234 = vmatpush1.msra.mxu0 0.0
    %1235 = vmatprep.mubr.f32.mxu0 0.0
    %1236 = vmatmul.mubr.f32.gmra.mrb[0].mxu0 %v1169
    %v1237 = vpop.f32.mrb[0].mxu0
    %v1238 = vadd.f32 %v1093, %v1237
    %v1239 = vpop.f32.mrb[0].mxu0
    %v1240 = vadd.f32 %v1095, %v1239
    %1241 = vdwg.mxu0
    %1242 = vmatprep.subr.mxu0 %v467
    %1243 = vmatpush1.msra.mxu0 %v466
    %1244 = vmatprep.subr.mxu0 %v647
    %1245 = vmatpush1.msra.mxu0 %v644
    %1246 = vmatprep.subr.mxu0 0.0
    %1247 = vmatpush1.msra.mxu0 0.0
    %1248 = vmatprep.subr.mxu0 0.0
    %1249 = vmatpush1.msra.mxu0 0.0
    %1250 = vmatprep.subr.mxu0 0.0
    %1251 = vmatpush1.msra.mxu0 0.0
    %1252 = vmatprep.subr.mxu0 0.0
    %1253 = vmatpush1.msra.mxu0 0.0
    %1254 = vmatprep.subr.mxu0 0.0
    %1255 = vmatpush1.msra.mxu0 0.0
    %1256 = vmatprep.subr.mxu0 0.0
    %1257 = vmatpush1.msra.mxu0 0.0
    %1258 = vmatprep.subr.mxu0 0.0
    %1259 = vmatpush1.msra.mxu0 0.0
    %1260 = vmatprep.subr.mxu0 0.0
    %1261 = vmatpush1.msra.mxu0 0.0
    %1262 = vmatprep.subr.mxu0 0.0
    %1263 = vmatpush1.msra.mxu0 0.0
    %1264 = vmatprep.subr.mxu0 0.0
    %1265 = vmatpush1.msra.mxu0 0.0
    %1266 = vmatprep.subr.mxu0 0.0
    %1267 = vmatpush1.msra.mxu0 0.0
    %1268 = vmatprep.subr.mxu0 0.0
    %1269 = vmatpush1.msra.mxu0 0.0
    %1270 = vmatprep.subr.mxu0 0.0
    %1271 = vmatpush1.msra.mxu0 0.0
    %1272 = vmatprep.subr.mxu0 0.0
    %1273 = vmatpush1.msra.mxu0 0.0
    %1274 = vmatprep.subr.mxu0 0.0
    %1275 = vmatpush1.msra.mxu0 0.0
    %1276 = vmatprep.subr.mxu0 0.0
    %1277 = vmatpush1.msra.mxu0 0.0
    %1278 = vmatprep.subr.mxu0 0.0
    %1279 = vmatpush1.msra.mxu0 0.0
    %1280 = vmatprep.subr.mxu0 0.0
    %1281 = vmatpush1.msra.mxu0 0.0
    %1282 = vmatprep.subr.mxu0 0.0
    %1283 = vmatpush1.msra.mxu0 0.0
    %1284 = vmatprep.subr.mxu0 0.0
    %1285 = vmatpush1.msra.mxu0 0.0
    %1286 = vmatprep.subr.mxu0 0.0
    %1287 = vmatpush1.msra.mxu0 0.0
    %1288 = vmatprep.subr.mxu0 0.0
    %1289 = vmatpush1.msra.mxu0 0.0
    %1290 = vmatprep.subr.mxu0 0.0
    %1291 = vmatpush1.msra.mxu0 0.0
    %1292 = vmatprep.subr.mxu0 0.0
    %1293 = vmatpush1.msra.mxu0 0.0
    %1294 = vmatprep.subr.mxu0 0.0
    %1295 = vmatpush1.msra.mxu0 0.0
    %1296 = vmatprep.subr.mxu0 0.0
    %1297 = vmatpush1.msra.mxu0 0.0
    %1298 = vmatprep.subr.mxu0 0.0
    %1299 = vmatpush1.msra.mxu0 0.0
    %1300 = vmatprep.subr.mxu0 0.0
    %1301 = vmatpush1.msra.mxu0 0.0
    %1302 = vmatprep.subr.mxu0 0.0
    %1303 = vmatpush1.msra.mxu0 0.0
    %1304 = vmatprep.subr.mxu0 0.0
    %1305 = vmatpush1.msra.mxu0 0.0
    %1306 = vmatprep.mubr.f32.mxu0 0.0
    %1307 = vmatmul.mubr.f32.gmra.mrb[0].mxu0 %v1169
    %v1308 = vpop.f32.mrb[0].mxu0
    %v1309 = vadd.f32 %v1164, %v1308
    %v1310 = vpop.f32.mrb[0].mxu0
    %v1311 = vadd.f32 %v1166, %v1310
    %1312 = vdwg.mxu0
    %v1313 = vadd.f32 %v1238, %v796
    %v1314 = vadd.f32 %v1240, %v800
    %v1315 = vadd.f32 %v1309, %v804
    %v1316 = vadd.f32 %v1311, %v808
    %v1317 = vxor.u32 %v1313, 2147483648
    %v1318 = vmul.f32 %v1317, 1.442695
    %v1319 = vpow.pop %v1318
    %v1320 = vadd.f32 %v1319, 1.0
    %v1321 = vrcp.pop %v1320
    %v1322 = vmul.f32 1.0, %v1321
    %v1323 = vxor.u32 %v1314, 2147483648
    %v1324 = vmul.f32 %v1323, 1.442695
    %v1325 = vpow.pop %v1324
    %v1326 = vadd.f32 %v1325, 1.0
    %v1327 = vrcp.pop %v1326
    %v1328 = vmul.f32 1.0, %v1327
    %v1329 = vtanh.pop %v1315
    %v1330 = vxor.u32 %v1316, 2147483648
    %v1331 = vmul.f32 %v1330, 1.442695
    %v1332 = vpow.pop %v1331
    %v1333 = vadd.f32 %v1332, 1.0
    %v1334 = vrcp.pop %v1333
    %v1335 = vmul.f32 1.0, %v1334
    %v1336 = vmul.f32 %v1328, %v838
    %v1337 = vmul.f32 %v1322, %v1329
    %v1338 = vadd.f32 %v1336, %v1337
    %v1339 = vtanh.pop %v1338
    %v1340 = vmul.f32 %v1335, %v1339
    %1341 = vset.pattern.permute.xlu0 2
    %1342 = vperm.xlu0 %1341, %v211
    %v1343 = vpop.permute.xlu0 %1342
    %v1345 = vmul.f32 %v1343, %v223
    %v1346 = vmul.f32 %v1343, %v227
    %v1347 = vmul.f32 %v1343, %v231
    %v1348 = vmul.f32 %v1343, %v235
    %v1349 = vadd.f32 %v1345, %v248
    %v1350 = vadd.f32 %v1346, %v252
    %v1351 = vadd.f32 %v1347, %v256
    %v1352 = vadd.f32 %v1348, %v260
    %1353 = vmatprep.subr.mxu0 %v270
    %1354 = vmatpush1.msra.mxu0 %v269
    %1355 = vmatprep.subr.mxu0 %v286
    %1356 = vmatpush1.msra.mxu0 %v283
    %1357 = vmatprep.subr.mxu0 0.0
    %1358 = vmatpush1.msra.mxu0 0.0
    %1359 = vmatprep.subr.mxu0 0.0
    %1360 = vmatpush1.msra.mxu0 0.0
    %1361 = vmatprep.subr.mxu0 0.0
    %1362 = vmatpush1.msra.mxu0 0.0
    %1363 = vmatprep.subr.mxu0 0.0
    %1364 = vmatpush1.msra.mxu0 0.0
    %1365 = vmatprep.subr.mxu0 0.0
    %1366 = vmatpush1.msra.mxu0 0.0
    %1367 = vmatprep.subr.mxu0 0.0
    %1368 = vmatpush1.msra.mxu0 0.0
    %1369 = vmatprep.subr.mxu0 0.0
    %1370 = vmatpush1.msra.mxu0 0.0
    %1371 = vmatprep.subr.mxu0 0.0
    %1372 = vmatpush1.msra.mxu0 0.0
    %1373 = vmatprep.subr.mxu0 0.0
    %1374 = vmatpush1.msra.mxu0 0.0
    %1375 = vmatprep.subr.mxu0 0.0
    %1376 = vmatpush1.msra.mxu0 0.0
    %1377 = vmatprep.subr.mxu0 0.0
    %1378 = vmatpush1.msra.mxu0 0.0
    %1379 = vmatprep.subr.mxu0 0.0
    %1380 = vmatpush1.msra.mxu0 0.0
    %1381 = vmatprep.subr.mxu0 0.0
    %1382 = vmatpush1.msra.mxu0 0.0
    %1383 = vmatprep.subr.mxu0 0.0
    %1384 = vmatpush1.msra.mxu0 0.0
    %1385 = vmatprep.subr.mxu0 0.0
    %1386 = vmatpush1.msra.mxu0 0.0
    %1387 = vmatprep.subr.mxu0 0.0
    %1388 = vmatpush1.msra.mxu0 0.0
    %1389 = vmatprep.subr.mxu0 0.0
    %1390 = vmatpush1.msra.mxu0 0.0
    %1391 = vmatprep.subr.mxu0 0.0
    %1392 = vmatpush1.msra.mxu0 0.0
    %1393 = vmatprep.subr.mxu0 0.0
    %1394 = vmatpush1.msra.mxu0 0.0
    %1395 = vmatprep.subr.mxu0 0.0
    %1396 = vmatpush1.msra.mxu0 0.0
    %1397 = vmatprep.subr.mxu0 0.0
    %1398 = vmatpush1.msra.mxu0 0.0
    %1399 = vmatprep.subr.mxu0 0.0
    %1400 = vmatpush1.msra.mxu0 0.0
    %1401 = vmatprep.subr.mxu0 0.0
    %1402 = vmatpush1.msra.mxu0 0.0
    %1403 = vmatprep.subr.mxu0 0.0
    %1404 = vmatpush1.msra.mxu0 0.0
    %1405 = vmatprep.subr.mxu0 0.0
    %1406 = vmatpush1.msra.mxu0 0.0
    %1407 = vmatprep.subr.mxu0 0.0
    %1408 = vmatpush1.msra.mxu0 0.0
    %1409 = vmatprep.subr.mxu0 0.0
    %1410 = vmatpush1.msra.mxu0 0.0
    %1411 = vmatprep.subr.mxu0 0.0
    %1412 = vmatpush1.msra.mxu0 0.0
    %1413 = vmatprep.subr.mxu0 0.0
    %1414 = vmatpush1.msra.mxu0 0.0
    %1415 = vmatprep.subr.mxu0 0.0
    %1416 = vmatpush1.msra.mxu0 0.0
    %1417 = vmatprep.mubr.f32.mxu0 0.0
    %1418 = vmatmul.mubr.f32.gmra.mrb[0].mxu0 %v1169
    %v1419 = vpop.f32.mrb[0].mxu0
    %v1420 = vadd.f32 0.0, %v1419
    %v1421 = vpop.f32.mrb[0].mxu0
    %v1422 = vadd.f32 0.0, %v1421
    %1423 = vdwg.mxu0
    %1424 = vmatprep.subr.mxu0 %v272
    %1425 = vmatpush1.msra.mxu0 %v271
    %1426 = vmatprep.subr.mxu0 %v292
    %1427 = vmatpush1.msra.mxu0 %v289
    %1428 = vmatprep.subr.mxu0 0.0
    %1429 = vmatpush1.msra.mxu0 0.0
    %1430 = vmatprep.subr.mxu0 0.0
    %1431 = vmatpush1.msra.mxu0 0.0
    %1432 = vmatprep.subr.mxu0 0.0
    %1433 = vmatpush1.msra.mxu0 0.0
    %1434 = vmatprep.subr.mxu0 0.0
    %1435 = vmatpush1.msra.mxu0 0.0
    %1436 = vmatprep.subr.mxu0 0.0
    %1437 = vmatpush1.msra.mxu0 0.0
    %1438 = vmatprep.subr.mxu0 0.0
    %1439 = vmatpush1.msra.mxu0 0.0
    %1440 = vmatprep.subr.mxu0 0.0
    %1441 = vmatpush1.msra.mxu0 0.0
    %1442 = vmatprep.subr.mxu0 0.0
    %1443 = vmatpush1.msra.mxu0 0.0
    %1444 = vmatprep.subr.mxu0 0.0
    %1445 = vmatpush1.msra.mxu0 0.0
    %1446 = vmatprep.subr.mxu0 0.0
    %1447 = vmatpush1.msra.mxu0 0.0
    %1448 = vmatprep.subr.mxu0 0.0
    %1449 = vmatpush1.msra.mxu0 0.0
    %1450 = vmatprep.subr.mxu0 0.0
    %1451 = vmatpush1.msra.mxu0 0.0
    %1452 = vmatprep.subr.mxu0 0.0
    %1453 = vmatpush1.msra.mxu0 0.0
    %1454 = vmatprep.subr.mxu0 0.0
    %1455 = vmatpush1.msra.mxu0 0.0
    %1456 = vmatprep.subr.mxu0 0.0
    %1457 = vmatpush1.msra.mxu0 0.0
    %1458 = vmatprep.subr.mxu0 0.0
    %1459 = vmatpush1.msra.mxu0 0.0
    %1460 = vmatprep.subr.mxu0 0.0
    %1461 = vmatpush1.msra.mxu0 0.0
    %1462 = vmatprep.subr.mxu0 0.0
    %1463 = vmatpush1.msra.mxu0 0.0
    %1464 = vmatprep.subr.mxu0 0.0
    %1465 = vmatpush1.msra.mxu0 0.0
    %1466 = vmatprep.subr.mxu0 0.0
    %1467 = vmatpush1.msra.mxu0 0.0
    %1468 = vmatprep.subr.mxu0 0.0
    %1469 = vmatpush1.msra.mxu0 0.0
    %1470 = vmatprep.subr.mxu0 0.0
    %1471 = vmatpush1.msra.mxu0 0.0
    %1472 = vmatprep.subr.mxu0 0.0
    %1473 = vmatpush1.msra.mxu0 0.0
    %1474 = vmatprep.subr.mxu0 0.0
    %1475 = vmatpush1.msra.mxu0 0.0
    %1476 = vmatprep.subr.mxu0 0.0
    %1477 = vmatpush1.msra.mxu0 0.0
    %1478 = vmatprep.subr.mxu0 0.0
    %1479 = vmatpush1.msra.mxu0 0.0
    %1480 = vmatprep.subr.mxu0 0.0
    %1481 = vmatpush1.msra.mxu0 0.0
    %1482 = vmatprep.subr.mxu0 0.0
    %1483 = vmatpush1.msra.mxu0 0.0
    %1484 = vmatprep.subr.mxu0 0.0
    %1485 = vmatpush1.msra.mxu0 0.0
    %1486 = vmatprep.subr.mxu0 0.0
    %1487 = vmatpush1.msra.mxu0 0.0
    %1488 = vmatprep.mubr.f32.mxu0 0.0
    %1489 = vmatmul.mubr.f32.gmra.mrb[0].mxu0 %v1169
    %v1490 = vpop.f32.mrb[0].mxu0
    %v1491 = vadd.f32 0.0, %v1490
    %v1492 = vpop.f32.mrb[0].mxu0
    %v1493 = vadd.f32 0.0, %v1492
    %1494 = vdwg.mxu0
    %v1495 = vadd.f32 %v1349, %v1420
    %v1496 = vadd.f32 %v1350, %v1422
    %v1497 = vadd.f32 %v1351, %v1491
    %v1498 = vadd.f32 %v1352, %v1493
    %v1499 = vxor.u32 %v1495, 2147483648
    %v1500 = vmul.f32 %v1499, 1.442695
    %v1501 = vpow.pop %v1500
    %v1502 = vadd.f32 %v1501, 1.0
    %v1503 = vrcp.pop %v1502
    %v1504 = vmul.f32 1.0, %v1503
    %v1505 = vxor.u32 %v1496, 2147483648
    %v1506 = vmul.f32 %v1505, 1.442695
    %v1507 = vpow.pop %v1506
    %v1508 = vadd.f32 %v1507, 1.0
    %v1509 = vrcp.pop %v1508
    %v1510 = vmul.f32 1.0, %v1509
    %v1511 = vtanh.pop %v1497
    %v1512 = vxor.u32 %v1498, 2147483648
    %v1513 = vmul.f32 %v1512, 1.442695
    %v1514 = vpow.pop %v1513
    %v1515 = vadd.f32 %v1514, 1.0
    %v1516 = vrcp.pop %v1515
    %v1517 = vmul.f32 1.0, %v1516
    %v1518 = vmul.f32 %v1510, %v1020
    %v1519 = vmul.f32 %v1504, %v1511
    %v1520 = vadd.f32 %v1518, %v1519
    %v1521 = vtanh.pop %v1520
    %v1522 = vmul.f32 %v1517, %v1521
    %v1524 = vsel %vm277, %v1340, 0
    %1526 = vmatprep.subr.mxu0 %v473
    %1527 = vmatpush1.msra.mxu0 %v472
    %1528 = vmatprep.subr.mxu0 %v484
    %1529 = vmatpush1.msra.mxu0 %v481
    %1530 = vmatprep.subr.mxu0 0.0
    %1531 = vmatpush1.msra.mxu0 0.0
    %1532 = vmatprep.subr.mxu0 0.0
    %1533 = vmatpush1.msra.mxu0 0.0
    %1534 = vmatprep.subr.mxu0 0.0
    %1535 = vmatpush1.msra.mxu0 0.0
    %1536 = vmatprep.subr.mxu0 0.0
    %1537 = vmatpush1.msra.mxu0 0.0
    %1538 = vmatprep.subr.mxu0 0.0
    %1539 = vmatpush1.msra.mxu0 0.0
    %1540 = vmatprep.subr.mxu0 0.0
    %1541 = vmatpush1.msra.mxu0 0.0
    %1542 = vmatprep.subr.mxu0 0.0
    %1543 = vmatpush1.msra.mxu0 0.0
    %1544 = vmatprep.subr.mxu0 0.0
    %1545 = vmatpush1.msra.mxu0 0.0
    %1546 = vmatprep.subr.mxu0 0.0
    %1547 = vmatpush1.msra.mxu0 0.0
    %1548 = vmatprep.subr.mxu0 0.0
    %1549 = vmatpush1.msra.mxu0 0.0
    %1550 = vmatprep.subr.mxu0 0.0
    %1551 = vmatpush1.msra.mxu0 0.0
    %1552 = vmatprep.subr.mxu0 0.0
    %1553 = vmatpush1.msra.mxu0 0.0
    %1554 = vmatprep.subr.mxu0 0.0
    %1555 = vmatpush1.msra.mxu0 0.0
    %1556 = vmatprep.subr.mxu0 0.0
    %1557 = vmatpush1.msra.mxu0 0.0
    %1558 = vmatprep.subr.mxu0 0.0
    %1559 = vmatpush1.msra.mxu0 0.0
    %1560 = vmatprep.subr.mxu0 0.0
    %1561 = vmatpush1.msra.mxu0 0.0
    %1562 = vmatprep.subr.mxu0 0.0
    %1563 = vmatpush1.msra.mxu0 0.0
    %1564 = vmatprep.subr.mxu0 0.0
    %1565 = vmatpush1.msra.mxu0 0.0
    %1566 = vmatprep.subr.mxu0 0.0
    %1567 = vmatpush1.msra.mxu0 0.0
    %1568 = vmatprep.subr.mxu0 0.0
    %1569 = vmatpush1.msra.mxu0 0.0
    %1570 = vmatprep.subr.mxu0 0.0
    %1571 = vmatpush1.msra.mxu0 0.0
    %1572 = vmatprep.subr.mxu0 0.0
    %1573 = vmatpush1.msra.mxu0 0.0
    %1574 = vmatprep.subr.mxu0 0.0
    %1575 = vmatpush1.msra.mxu0 0.0
    %1576 = vmatprep.subr.mxu0 0.0
    %1577 = vmatpush1.msra.mxu0 0.0
    %1578 = vmatprep.subr.mxu0 0.0
    %1579 = vmatpush1.msra.mxu0 0.0
    %1580 = vmatprep.subr.mxu0 0.0
    %1581 = vmatpush1.msra.mxu0 0.0
    %1582 = vmatprep.subr.mxu0 0.0
    %1583 = vmatpush1.msra.mxu0 0.0
    %1584 = vmatprep.subr.mxu0 0.0
    %1585 = vmatpush1.msra.mxu0 0.0
    %1586 = vmatprep.subr.mxu0 0.0
    %1587 = vmatpush1.msra.mxu0 0.0
    %1588 = vmatprep.subr.mxu0 0.0
    %1589 = vmatpush1.msra.mxu0 0.0
    %1590 = vmatprep.mubr.f32.mxu0 0.0
    %1591 = vmatmul.mubr.f32.gmra.mrb[0].mxu0 %v1524
    %v1592 = vpop.f32.mrb[0].mxu0
    %v1593 = vadd.f32 0.0, %v1592
    %v1594 = vpop.f32.mrb[0].mxu0
    %v1595 = vadd.f32 0.0, %v1594
    %1596 = vdwg.mxu0
    %1597 = vmatprep.subr.mxu0 %v475
    %1598 = vmatpush1.msra.mxu0 %v474
    %1599 = vmatprep.subr.mxu0 %v490
    %1600 = vmatpush1.msra.mxu0 %v487
    %1601 = vmatprep.subr.mxu0 0.0
    %1602 = vmatpush1.msra.mxu0 0.0
    %1603 = vmatprep.subr.mxu0 0.0
    %1604 = vmatpush1.msra.mxu0 0.0
    %1605 = vmatprep.subr.mxu0 0.0
    %1606 = vmatpush1.msra.mxu0 0.0
    %1607 = vmatprep.subr.mxu0 0.0
    %1608 = vmatpush1.msra.mxu0 0.0
    %1609 = vmatprep.subr.mxu0 0.0
    %1610 = vmatpush1.msra.mxu0 0.0
    %1611 = vmatprep.subr.mxu0 0.0
    %1612 = vmatpush1.msra.mxu0 0.0
    %1613 = vmatprep.subr.mxu0 0.0
    %1614 = vmatpush1.msra.mxu0 0.0
    %1615 = vmatprep.subr.mxu0 0.0
    %1616 = vmatpush1.msra.mxu0 0.0
    %1617 = vmatprep.subr.mxu0 0.0
    %1618 = vmatpush1.msra.mxu0 0.0
    %1619 = vmatprep.subr.mxu0 0.0
    %1620 = vmatpush1.msra.mxu0 0.0
    %1621 = vmatprep.subr.mxu0 0.0
    %1622 = vmatpush1.msra.mxu0 0.0
    %1623 = vmatprep.subr.mxu0 0.0
    %1624 = vmatpush1.msra.mxu0 0.0
    %1625 = vmatprep.subr.mxu0 0.0
    %1626 = vmatpush1.msra.mxu0 0.0
    %1627 = vmatprep.subr.mxu0 0.0
    %1628 = vmatpush1.msra.mxu0 0.0
    %1629 = vmatprep.subr.mxu0 0.0
    %1630 = vmatpush1.msra.mxu0 0.0
    %1631 = vmatprep.subr.mxu0 0.0
    %1632 = vmatpush1.msra.mxu0 0.0
    %1633 = vmatprep.subr.mxu0 0.0
    %1634 = vmatpush1.msra.mxu0 0.0
    %1635 = vmatprep.subr.mxu0 0.0
    %1636 = vmatpush1.msra.mxu0 0.0
    %1637 = vmatprep.subr.mxu0 0.0
    %1638 = vmatpush1.msra.mxu0 0.0
    %1639 = vmatprep.subr.mxu0 0.0
    %1640 = vmatpush1.msra.mxu0 0.0
    %1641 = vmatprep.subr.mxu0 0.0
    %1642 = vmatpush1.msra.mxu0 0.0
    %1643 = vmatprep.subr.mxu0 0.0
    %1644 = vmatpush1.msra.mxu0 0.0
    %1645 = vmatprep.subr.mxu0 0.0
    %1646 = vmatpush1.msra.mxu0 0.0
    %1647 = vmatprep.subr.mxu0 0.0
    %1648 = vmatpush1.msra.mxu0 0.0
    %1649 = vmatprep.subr.mxu0 0.0
    %1650 = vmatpush1.msra.mxu0 0.0
    %1651 = vmatprep.subr.mxu0 0.0
    %1652 = vmatpush1.msra.mxu0 0.0
    %1653 = vmatprep.subr.mxu0 0.0
    %1654 = vmatpush1.msra.mxu0 0.0
    %1655 = vmatprep.subr.mxu0 0.0
    %1656 = vmatpush1.msra.mxu0 0.0
    %1657 = vmatprep.subr.mxu0 0.0
    %1658 = vmatpush1.msra.mxu0 0.0
    %1659 = vmatprep.subr.mxu0 0.0
    %1660 = vmatpush1.msra.mxu0 0.0
    %1661 = vmatprep.mubr.f32.mxu0 0.0
    %1662 = vmatmul.mubr.f32.gmra.mrb[0].mxu0 %v1524
    %v1663 = vpop.f32.mrb[0].mxu0
    %v1664 = vadd.f32 0.0, %v1663
    %v1665 = vpop.f32.mrb[0].mxu0
    %v1666 = vadd.f32 0.0, %v1665
    %1667 = vdwg.mxu0
    %v1669 = vsel %vm277, %v1522, 0
    %1671 = vmatprep.subr.mxu0 %v465
    %1672 = vmatpush1.msra.mxu0 %v464
    %1673 = vmatprep.subr.mxu0 %v641
    %1674 = vmatpush1.msra.mxu0 %v638
    %1675 = vmatprep.subr.mxu0 0.0
    %1676 = vmatpush1.msra.mxu0 0.0
    %1677 = vmatprep.subr.mxu0 0.0
    %1678 = vmatpush1.msra.mxu0 0.0
    %1679 = vmatprep.subr.mxu0 0.0
    %1680 = vmatpush1.msra.mxu0 0.0
    %1681 = vmatprep.subr.mxu0 0.0
    %1682 = vmatpush1.msra.mxu0 0.0
    %1683 = vmatprep.subr.mxu0 0.0
    %1684 = vmatpush1.msra.mxu0 0.0
    %1685 = vmatprep.subr.mxu0 0.0
    %1686 = vmatpush1.msra.mxu0 0.0
    %1687 = vmatprep.subr.mxu0 0.0
    %1688 = vmatpush1.msra.mxu0 0.0
    %1689 = vmatprep.subr.mxu0 0.0
    %1690 = vmatpush1.msra.mxu0 0.0
    %1691 = vmatprep.subr.mxu0 0.0
    %1692 = vmatpush1.msra.mxu0 0.0
    %1693 = vmatprep.subr.mxu0 0.0
    %1694 = vmatpush1.msra.mxu0 0.0
    %1695 = vmatprep.subr.mxu0 0.0
    %1696 = vmatpush1.msra.mxu0 0.0
    %1697 = vmatprep.subr.mxu0 0.0
    %1698 = vmatpush1.msra.mxu0 0.0
    %1699 = vmatprep.subr.mxu0 0.0
    %1700 = vmatpush1.msra.mxu0 0.0
    %1701 = vmatprep.subr.mxu0 0.0
    %1702 = vmatpush1.msra.mxu0 0.0
    %1703 = vmatprep.subr.mxu0 0.0
    %1704 = vmatpush1.msra.mxu0 0.0
    %1705 = vmatprep.subr.mxu0 0.0
    %1706 = vmatpush1.msra.mxu0 0.0
    %1707 = vmatprep.subr.mxu0 0.0
    %1708 = vmatpush1.msra.mxu0 0.0
    %1709 = vmatprep.subr.mxu0 0.0
    %1710 = vmatpush1.msra.mxu0 0.0
    %1711 = vmatprep.subr.mxu0 0.0
    %1712 = vmatpush1.msra.mxu0 0.0
    %1713 = vmatprep.subr.mxu0 0.0
    %1714 = vmatpush1.msra.mxu0 0.0
    %1715 = vmatprep.subr.mxu0 0.0
    %1716 = vmatpush1.msra.mxu0 0.0
    %1717 = vmatprep.subr.mxu0 0.0
    %1718 = vmatpush1.msra.mxu0 0.0
    %1719 = vmatprep.subr.mxu0 0.0
    %1720 = vmatpush1.msra.mxu0 0.0
    %1721 = vmatprep.subr.mxu0 0.0
    %1722 = vmatpush1.msra.mxu0 0.0
    %1723 = vmatprep.subr.mxu0 0.0
    %1724 = vmatpush1.msra.mxu0 0.0
    %1725 = vmatprep.subr.mxu0 0.0
    %1726 = vmatpush1.msra.mxu0 0.0
    %1727 = vmatprep.subr.mxu0 0.0
    %1728 = vmatpush1.msra.mxu0 0.0
    %1729 = vmatprep.subr.mxu0 0.0
    %1730 = vmatpush1.msra.mxu0 0.0
    %1731 = vmatprep.subr.mxu0 0.0
    %1732 = vmatpush1.msra.mxu0 0.0
    %1733 = vmatprep.subr.mxu0 0.0
    %1734 = vmatpush1.msra.mxu0 0.0
    %1735 = vmatprep.mubr.f32.mxu0 0.0
    %1736 = vmatmul.mubr.f32.gmra.mrb[0].mxu0 %v1669
    %v1737 = vpop.f32.mrb[0].mxu0
    %v1738 = vadd.f32 %v1593, %v1737
    %v1739 = vpop.f32.mrb[0].mxu0
    %v1740 = vadd.f32 %v1595, %v1739
    %1741 = vdwg.mxu0
    %1742 = vmatprep.subr.mxu0 %v467
    %1743 = vmatpush1.msra.mxu0 %v466
    %1744 = vmatprep.subr.mxu0 %v647
    %1745 = vmatpush1.msra.mxu0 %v644
    %1746 = vmatprep.subr.mxu0 0.0
    %1747 = vmatpush1.msra.mxu0 0.0
    %1748 = vmatprep.subr.mxu0 0.0
    %1749 = vmatpush1.msra.mxu0 0.0
    %1750 = vmatprep.subr.mxu0 0.0
    %1751 = vmatpush1.msra.mxu0 0.0
    %1752 = vmatprep.subr.mxu0 0.0
    %1753 = vmatpush1.msra.mxu0 0.0
    %1754 = vmatprep.subr.mxu0 0.0
    %1755 = vmatpush1.msra.mxu0 0.0
    %1756 = vmatprep.subr.mxu0 0.0
    %1757 = vmatpush1.msra.mxu0 0.0
    %1758 = vmatprep.subr.mxu0 0.0
    %1759 = vmatpush1.msra.mxu0 0.0
    %1760 = vmatprep.subr.mxu0 0.0
    %1761 = vmatpush1.msra.mxu0 0.0
    %1762 = vmatprep.subr.mxu0 0.0
    %1763 = vmatpush1.msra.mxu0 0.0
    %1764 = vmatprep.subr.mxu0 0.0
    %1765 = vmatpush1.msra.mxu0 0.0
    %1766 = vmatprep.subr.mxu0 0.0
    %1767 = vmatpush1.msra.mxu0 0.0
    %1768 = vmatprep.subr.mxu0 0.0
    %1769 = vmatpush1.msra.mxu0 0.0
    %1770 = vmatprep.subr.mxu0 0.0
    %1771 = vmatpush1.msra.mxu0 0.0
    %1772 = vmatprep.subr.mxu0 0.0
    %1773 = vmatpush1.msra.mxu0 0.0
    %1774 = vmatprep.subr.mxu0 0.0
    %1775 = vmatpush1.msra.mxu0 0.0
    %1776 = vmatprep.subr.mxu0 0.0
    %1777 = vmatpush1.msra.mxu0 0.0
    %1778 = vmatprep.subr.mxu0 0.0
    %1779 = vmatpush1.msra.mxu0 0.0
    %1780 = vmatprep.subr.mxu0 0.0
    %1781 = vmatpush1.msra.mxu0 0.0
    %1782 = vmatprep.subr.mxu0 0.0
    %1783 = vmatpush1.msra.mxu0 0.0
    %1784 = vmatprep.subr.mxu0 0.0
    %1785 = vmatpush1.msra.mxu0 0.0
    %1786 = vmatprep.subr.mxu0 0.0
    %1787 = vmatpush1.msra.mxu0 0.0
    %1788 = vmatprep.subr.mxu0 0.0
    %1789 = vmatpush1.msra.mxu0 0.0
    %1790 = vmatprep.subr.mxu0 0.0
    %1791 = vmatpush1.msra.mxu0 0.0
    %1792 = vmatprep.subr.mxu0 0.0
    %1793 = vmatpush1.msra.mxu0 0.0
    %1794 = vmatprep.subr.mxu0 0.0
    %1795 = vmatpush1.msra.mxu0 0.0
    %1796 = vmatprep.subr.mxu0 0.0
    %1797 = vmatpush1.msra.mxu0 0.0
    %1798 = vmatprep.subr.mxu0 0.0
    %1799 = vmatpush1.msra.mxu0 0.0
    %1800 = vmatprep.subr.mxu0 0.0
    %1801 = vmatpush1.msra.mxu0 0.0
    %1802 = vmatprep.subr.mxu0 0.0
    %1803 = vmatpush1.msra.mxu0 0.0
    %1804 = vmatprep.subr.mxu0 0.0
    %1805 = vmatpush1.msra.mxu0 0.0
    %1806 = vmatprep.mubr.f32.mxu0 0.0
    %1807 = vmatmul.mubr.f32.gmra.mrb[0].mxu0 %v1669
    %v1808 = vpop.f32.mrb[0].mxu0
    %v1809 = vadd.f32 %v1664, %v1808
    %v1810 = vpop.f32.mrb[0].mxu0
    %v1811 = vadd.f32 %v1666, %v1810
    %1812 = vdwg.mxu0
    %v1813 = vadd.f32 %v1738, %v796
    %v1814 = vadd.f32 %v1740, %v800
    %v1815 = vadd.f32 %v1809, %v804
    %v1816 = vadd.f32 %v1811, %v808
    %v1817 = vxor.u32 %v1813, 2147483648
    %v1818 = vmul.f32 %v1817, 1.442695
    %v1819 = vpow.pop %v1818
    %v1820 = vadd.f32 %v1819, 1.0
    %v1821 = vrcp.pop %v1820
    %v1822 = vmul.f32 1.0, %v1821
    %v1823 = vxor.u32 %v1814, 2147483648
    %v1824 = vmul.f32 %v1823, 1.442695
    %v1825 = vpow.pop %v1824
    %v1826 = vadd.f32 %v1825, 1.0
    %v1827 = vrcp.pop %v1826
    %v1828 = vmul.f32 1.0, %v1827
    %v1829 = vtanh.pop %v1815
    %v1830 = vxor.u32 %v1816, 2147483648
    %v1831 = vmul.f32 %v1830, 1.442695
    %v1832 = vpow.pop %v1831
    %v1833 = vadd.f32 %v1832, 1.0
    %v1834 = vrcp.pop %v1833
    %v1835 = vmul.f32 1.0, %v1834
    %v1836 = vmul.f32 %v1828, %v1338
    %v1837 = vmul.f32 %v1822, %v1829
    %v1838 = vadd.f32 %v1836, %v1837
    %v1839 = vtanh.pop %v1838
    %v1840 = vmul.f32 %v1835, %v1839
    %1841 = vset.pattern.permute.xlu0 3
    %1842 = vperm.xlu0 %1841, %v211
    %v1843 = vpop.permute.xlu0 %1842
    %v1845 = vmul.f32 %v1843, %v223
    %v1846 = vmul.f32 %v1843, %v227
    %v1847 = vmul.f32 %v1843, %v231
    %v1848 = vmul.f32 %v1843, %v235
    %v1849 = vadd.f32 %v1845, %v248
    %v1850 = vadd.f32 %v1846, %v252
    %v1851 = vadd.f32 %v1847, %v256
    %v1852 = vadd.f32 %v1848, %v260
    %1853 = vmatprep.subr.mxu0 %v270
    %1854 = vmatpush1.msra.mxu0 %v269
    %1855 = vmatprep.subr.mxu0 %v286
    %1856 = vmatpush1.msra.mxu0 %v283
    %1857 = vmatprep.subr.mxu0 0.0
    %1858 = vmatpush1.msra.mxu0 0.0
    %1859 = vmatprep.subr.mxu0 0.0
    %1860 = vmatpush1.msra.mxu0 0.0
    %1861 = vmatprep.subr.mxu0 0.0
    %1862 = vmatpush1.msra.mxu0 0.0
    %1863 = vmatprep.subr.mxu0 0.0
    %1864 = vmatpush1.msra.mxu0 0.0
    %1865 = vmatprep.subr.mxu0 0.0
    %1866 = vmatpush1.msra.mxu0 0.0
    %1867 = vmatprep.subr.mxu0 0.0
    %1868 = vmatpush1.msra.mxu0 0.0
    %1869 = vmatprep.subr.mxu0 0.0
    %1870 = vmatpush1.msra.mxu0 0.0
    %1871 = vmatprep.subr.mxu0 0.0
    %1872 = vmatpush1.msra.mxu0 0.0
    %1873 = vmatprep.subr.mxu0 0.0
    %1874 = vmatpush1.msra.mxu0 0.0
    %1875 = vmatprep.subr.mxu0 0.0
    %1876 = vmatpush1.msra.mxu0 0.0
    %1877 = vmatprep.subr.mxu0 0.0
    %1878 = vmatpush1.msra.mxu0 0.0
    %1879 = vmatprep.subr.mxu0 0.0
    %1880 = vmatpush1.msra.mxu0 0.0
    %1881 = vmatprep.subr.mxu0 0.0
    %1882 = vmatpush1.msra.mxu0 0.0
    %1883 = vmatprep.subr.mxu0 0.0
    %1884 = vmatpush1.msra.mxu0 0.0
    %1885 = vmatprep.subr.mxu0 0.0
    %1886 = vmatpush1.msra.mxu0 0.0
    %1887 = vmatprep.subr.mxu0 0.0
    %1888 = vmatpush1.msra.mxu0 0.0
    %1889 = vmatprep.subr.mxu0 0.0
    %1890 = vmatpush1.msra.mxu0 0.0
    %1891 = vmatprep.subr.mxu0 0.0
    %1892 = vmatpush1.msra.mxu0 0.0
    %1893 = vmatprep.subr.mxu0 0.0
    %1894 = vmatpush1.msra.mxu0 0.0
    %1895 = vmatprep.subr.mxu0 0.0
    %1896 = vmatpush1.msra.mxu0 0.0
    %1897 = vmatprep.subr.mxu0 0.0
    %1898 = vmatpush1.msra.mxu0 0.0
    %1899 = vmatprep.subr.mxu0 0.0
    %1900 = vmatpush1.msra.mxu0 0.0
    %1901 = vmatprep.subr.mxu0 0.0
    %1902 = vmatpush1.msra.mxu0 0.0
    %1903 = vmatprep.subr.mxu0 0.0
    %1904 = vmatpush1.msra.mxu0 0.0
    %1905 = vmatprep.subr.mxu0 0.0
    %1906 = vmatpush1.msra.mxu0 0.0
    %1907 = vmatprep.subr.mxu0 0.0
    %1908 = vmatpush1.msra.mxu0 0.0
    %1909 = vmatprep.subr.mxu0 0.0
    %1910 = vmatpush1.msra.mxu0 0.0
    %1911 = vmatprep.subr.mxu0 0.0
    %1912 = vmatpush1.msra.mxu0 0.0
    %1913 = vmatprep.subr.mxu0 0.0
    %1914 = vmatpush1.msra.mxu0 0.0
    %1915 = vmatprep.subr.mxu0 0.0
    %1916 = vmatpush1.msra.mxu0 0.0
    %1917 = vmatprep.mubr.f32.mxu0 0.0
    %1918 = vmatmul.mubr.f32.gmra.mrb[0].mxu0 %v1669
    %v1919 = vpop.f32.mrb[0].mxu0
    %v1920 = vadd.f32 0.0, %v1919
    %v1921 = vpop.f32.mrb[0].mxu0
    %v1922 = vadd.f32 0.0, %v1921
    %1923 = vdwg.mxu0
    %1924 = vmatprep.subr.mxu0 %v272
    %1925 = vmatpush1.msra.mxu0 %v271
    %1926 = vmatprep.subr.mxu0 %v292
    %1927 = vmatpush1.msra.mxu0 %v289
    %1928 = vmatprep.subr.mxu0 0.0
    %1929 = vmatpush1.msra.mxu0 0.0
    %1930 = vmatprep.subr.mxu0 0.0
    %1931 = vmatpush1.msra.mxu0 0.0
    %1932 = vmatprep.subr.mxu0 0.0
    %1933 = vmatpush1.msra.mxu0 0.0
    %1934 = vmatprep.subr.mxu0 0.0
    %1935 = vmatpush1.msra.mxu0 0.0
    %1936 = vmatprep.subr.mxu0 0.0
    %1937 = vmatpush1.msra.mxu0 0.0
    %1938 = vmatprep.subr.mxu0 0.0
    %1939 = vmatpush1.msra.mxu0 0.0
    %1940 = vmatprep.subr.mxu0 0.0
    %1941 = vmatpush1.msra.mxu0 0.0
    %1942 = vmatprep.subr.mxu0 0.0
    %1943 = vmatpush1.msra.mxu0 0.0
    %1944 = vmatprep.subr.mxu0 0.0
    %1945 = vmatpush1.msra.mxu0 0.0
    %1946 = vmatprep.subr.mxu0 0.0
    %1947 = vmatpush1.msra.mxu0 0.0
    %1948 = vmatprep.subr.mxu0 0.0
    %1949 = vmatpush1.msra.mxu0 0.0
    %1950 = vmatprep.subr.mxu0 0.0
    %1951 = vmatpush1.msra.mxu0 0.0
    %1952 = vmatprep.subr.mxu0 0.0
    %1953 = vmatpush1.msra.mxu0 0.0
    %1954 = vmatprep.subr.mxu0 0.0
    %1955 = vmatpush1.msra.mxu0 0.0
    %1956 = vmatprep.subr.mxu0 0.0
    %1957 = vmatpush1.msra.mxu0 0.0
    %1958 = vmatprep.subr.mxu0 0.0
    %1959 = vmatpush1.msra.mxu0 0.0
    %1960 = vmatprep.subr.mxu0 0.0
    %1961 = vmatpush1.msra.mxu0 0.0
    %1962 = vmatprep.subr.mxu0 0.0
    %1963 = vmatpush1.msra.mxu0 0.0
    %1964 = vmatprep.subr.mxu0 0.0
    %1965 = vmatpush1.msra.mxu0 0.0
    %1966 = vmatprep.subr.mxu0 0.0
    %1967 = vmatpush1.msra.mxu0 0.0
    %1968 = vmatprep.subr.mxu0 0.0
    %1969 = vmatpush1.msra.mxu0 0.0
    %1970 = vmatprep.subr.mxu0 0.0
    %1971 = vmatpush1.msra.mxu0 0.0
    %1972 = vmatprep.subr.mxu0 0.0
    %1973 = vmatpush1.msra.mxu0 0.0
    %1974 = vmatprep.subr.mxu0 0.0
    %1975 = vmatpush1.msra.mxu0 0.0
    %1976 = vmatprep.subr.mxu0 0.0
    %1977 = vmatpush1.msra.mxu0 0.0
    %1978 = vmatprep.subr.mxu0 0.0
    %1979 = vmatpush1.msra.mxu0 0.0
    %1980 = vmatprep.subr.mxu0 0.0
    %1981 = vmatpush1.msra.mxu0 0.0
    %1982 = vmatprep.subr.mxu0 0.0
    %1983 = vmatpush1.msra.mxu0 0.0
    %1984 = vmatprep.subr.mxu0 0.0
    %1985 = vmatpush1.msra.mxu0 0.0
    %1986 = vmatprep.subr.mxu0 0.0
    %1987 = vmatpush1.msra.mxu0 0.0
    %1988 = vmatprep.mubr.f32.mxu0 0.0
    %1989 = vmatmul.mubr.f32.gmra.mrb[0].mxu0 %v1669
    %v1990 = vpop.f32.mrb[0].mxu0
    %v1991 = vadd.f32 0.0, %v1990
    %v1992 = vpop.f32.mrb[0].mxu0
    %v1993 = vadd.f32 0.0, %v1992
    %1994 = vdwg.mxu0
    %v1995 = vadd.f32 %v1849, %v1920
    %v1996 = vadd.f32 %v1850, %v1922
    %v1997 = vadd.f32 %v1851, %v1991
    %v1998 = vadd.f32 %v1852, %v1993
    %v1999 = vxor.u32 %v1995, 2147483648
    %v2000 = vmul.f32 %v1999, 1.442695
    %v2001 = vpow.pop %v2000
    %v2002 = vadd.f32 %v2001, 1.0
    %v2003 = vrcp.pop %v2002
    %v2004 = vmul.f32 1.0, %v2003
    %v2005 = vxor.u32 %v1996, 2147483648
    %v2006 = vmul.f32 %v2005, 1.442695
    %v2007 = vpow.pop %v2006
    %v2008 = vadd.f32 %v2007, 1.0
    %v2009 = vrcp.pop %v2008
    %v2010 = vmul.f32 1.0, %v2009
    %v2011 = vtanh.pop %v1997
    %v2012 = vxor.u32 %v1998, 2147483648
    %v2013 = vmul.f32 %v2012, 1.442695
    %v2014 = vpow.pop %v2013
    %v2015 = vadd.f32 %v2014, 1.0
    %v2016 = vrcp.pop %v2015
    %v2017 = vmul.f32 1.0, %v2016
    %v2018 = vmul.f32 %v2010, %v1520
    %v2019 = vmul.f32 %v2004, %v2011
    %v2020 = vadd.f32 %v2018, %v2019
    %v2021 = vtanh.pop %v2020
    %v2022 = vmul.f32 %v2017, %v2021
    %v2024 = vsel %vm277, %v1840, 0
    %2026 = vmatprep.subr.mxu0 %v473
    %2027 = vmatpush1.msra.mxu0 %v472
    %2028 = vmatprep.subr.mxu0 %v484
    %2029 = vmatpush1.msra.mxu0 %v481
    %2030 = vmatprep.subr.mxu0 0.0
    %2031 = vmatpush1.msra.mxu0 0.0
    %2032 = vmatprep.subr.mxu0 0.0
    %2033 = vmatpush1.msra.mxu0 0.0
    %2034 = vmatprep.subr.mxu0 0.0
    %2035 = vmatpush1.msra.mxu0 0.0
    %2036 = vmatprep.subr.mxu0 0.0
    %2037 = vmatpush1.msra.mxu0 0.0
    %2038 = vmatprep.subr.mxu0 0.0
    %2039 = vmatpush1.msra.mxu0 0.0
    %2040 = vmatprep.subr.mxu0 0.0
    %2041 = vmatpush1.msra.mxu0 0.0
    %2042 = vmatprep.subr.mxu0 0.0
    %2043 = vmatpush1.msra.mxu0 0.0
    %2044 = vmatprep.subr.mxu0 0.0
    %2045 = vmatpush1.msra.mxu0 0.0
    %2046 = vmatprep.subr.mxu0 0.0
    %2047 = vmatpush1.msra.mxu0 0.0
    %2048 = vmatprep.subr.mxu0 0.0
    %2049 = vmatpush1.msra.mxu0 0.0
    %2050 = vmatprep.subr.mxu0 0.0
    %2051 = vmatpush1.msra.mxu0 0.0
    %2052 = vmatprep.subr.mxu0 0.0
    %2053 = vmatpush1.msra.mxu0 0.0
    %2054 = vmatprep.subr.mxu0 0.0
    %2055 = vmatpush1.msra.mxu0 0.0
    %2056 = vmatprep.subr.mxu0 0.0
    %2057 = vmatpush1.msra.mxu0 0.0
    %2058 = vmatprep.subr.mxu0 0.0
    %2059 = vmatpush1.msra.mxu0 0.0
    %2060 = vmatprep.subr.mxu0 0.0
    %2061 = vmatpush1.msra.mxu0 0.0
    %2062 = vmatprep.subr.mxu0 0.0
    %2063 = vmatpush1.msra.mxu0 0.0
    %2064 = vmatprep.subr.mxu0 0.0
    %2065 = vmatpush1.msra.mxu0 0.0
    %2066 = vmatprep.subr.mxu0 0.0
    %2067 = vmatpush1.msra.mxu0 0.0
    %2068 = vmatprep.subr.mxu0 0.0
    %2069 = vmatpush1.msra.mxu0 0.0
    %2070 = vmatprep.subr.mxu0 0.0
    %2071 = vmatpush1.msra.mxu0 0.0
    %2072 = vmatprep.subr.mxu0 0.0
    %2073 = vmatpush1.msra.mxu0 0.0
    %2074 = vmatprep.subr.mxu0 0.0
    %2075 = vmatpush1.msra.mxu0 0.0
    %2076 = vmatprep.subr.mxu0 0.0
    %2077 = vmatpush1.msra.mxu0 0.0
    %2078 = vmatprep.subr.mxu0 0.0
    %2079 = vmatpush1.msra.mxu0 0.0
    %2080 = vmatprep.subr.mxu0 0.0
    %2081 = vmatpush1.msra.mxu0 0.0
    %2082 = vmatprep.subr.mxu0 0.0
    %2083 = vmatpush1.msra.mxu0 0.0
    %2084 = vmatprep.subr.mxu0 0.0
    %2085 = vmatpush1.msra.mxu0 0.0
    %2086 = vmatprep.subr.mxu0 0.0
    %2087 = vmatpush1.msra.mxu0 0.0
    %2088 = vmatprep.subr.mxu0 0.0
    %2089 = vmatpush1.msra.mxu0 0.0
    %2090 = vmatprep.mubr.f32.mxu0 0.0
    %2091 = vmatmul.mubr.f32.gmra.mrb[0].mxu0 %v2024
    %v2092 = vpop.f32.mrb[0].mxu0
    %v2093 = vadd.f32 0.0, %v2092
    %v2094 = vpop.f32.mrb[0].mxu0
    %v2095 = vadd.f32 0.0, %v2094
    %2096 = vdwg.mxu0
    %2097 = vmatprep.subr.mxu0 %v475
    %2098 = vmatpush1.msra.mxu0 %v474
    %2099 = vmatprep.subr.mxu0 %v490
    %2100 = vmatpush1.msra.mxu0 %v487
    %2101 = vmatprep.subr.mxu0 0.0
    %2102 = vmatpush1.msra.mxu0 0.0
    %2103 = vmatprep.subr.mxu0 0.0
    %2104 = vmatpush1.msra.mxu0 0.0
    %2105 = vmatprep.subr.mxu0 0.0
    %2106 = vmatpush1.msra.mxu0 0.0
    %2107 = vmatprep.subr.mxu0 0.0
    %2108 = vmatpush1.msra.mxu0 0.0
    %2109 = vmatprep.subr.mxu0 0.0
    %2110 = vmatpush1.msra.mxu0 0.0
    %2111 = vmatprep.subr.mxu0 0.0
    %2112 = vmatpush1.msra.mxu0 0.0
    %2113 = vmatprep.subr.mxu0 0.0
    %2114 = vmatpush1.msra.mxu0 0.0
    %2115 = vmatprep.subr.mxu0 0.0
    %2116 = vmatpush1.msra.mxu0 0.0
    %2117 = vmatprep.subr.mxu0 0.0
    %2118 = vmatpush1.msra.mxu0 0.0
    %2119 = vmatprep.subr.mxu0 0.0
    %2120 = vmatpush1.msra.mxu0 0.0
    %2121 = vmatprep.subr.mxu0 0.0
    %2122 = vmatpush1.msra.mxu0 0.0
    %2123 = vmatprep.subr.mxu0 0.0
    %2124 = vmatpush1.msra.mxu0 0.0
    %2125 = vmatprep.subr.mxu0 0.0
    %2126 = vmatpush1.msra.mxu0 0.0
    %2127 = vmatprep.subr.mxu0 0.0
    %2128 = vmatpush1.msra.mxu0 0.0
    %2129 = vmatprep.subr.mxu0 0.0
    %2130 = vmatpush1.msra.mxu0 0.0
    %2131 = vmatprep.subr.mxu0 0.0
    %2132 = vmatpush1.msra.mxu0 0.0
    %2133 = vmatprep.subr.mxu0 0.0
    %2134 = vmatpush1.msra.mxu0 0.0
    %2135 = vmatprep.subr.mxu0 0.0
    %2136 = vmatpush1.msra.mxu0 0.0
    %2137 = vmatprep.subr.mxu0 0.0
    %2138 = vmatpush1.msra.mxu0 0.0
    %2139 = vmatprep.subr.mxu0 0.0
    %2140 = vmatpush1.msra.mxu0 0.0
    %2141 = vmatprep.subr.mxu0 0.0
    %2142 = vmatpush1.msra.mxu0 0.0
    %2143 = vmatprep.subr.mxu0 0.0
    %2144 = vmatpush1.msra.mxu0 0.0
    %2145 = vmatprep.subr.mxu0 0.0
    %2146 = vmatpush1.msra.mxu0 0.0
    %2147 = vmatprep.subr.mxu0 0.0
    %2148 = vmatpush1.msra.mxu0 0.0
    %2149 = vmatprep.subr.mxu0 0.0
    %2150 = vmatpush1.msra.mxu0 0.0
    %2151 = vmatprep.subr.mxu0 0.0
    %2152 = vmatpush1.msra.mxu0 0.0
    %2153 = vmatprep.subr.mxu0 0.0
    %2154 = vmatpush1.msra.mxu0 0.0
    %2155 = vmatprep.subr.mxu0 0.0
    %2156 = vmatpush1.msra.mxu0 0.0
    %2157 = vmatprep.subr.mxu0 0.0
    %2158 = vmatpush1.msra.mxu0 0.0
    %2159 = vmatprep.subr.mxu0 0.0
    %2160 = vmatpush1.msra.mxu0 0.0
    %2161 = vmatprep.mubr.f32.mxu0 0.0
    %2162 = vmatmul.mubr.f32.gmra.mrb[0].mxu0 %v2024
    %v2163 = vpop.f32.mrb[0].mxu0
    %v2164 = vadd.f32 0.0, %v2163
    %v2165 = vpop.f32.mrb[0].mxu0
    %v2166 = vadd.f32 0.0, %v2165
    %2167 = vdwg.mxu0
    %v2169 = vsel %vm277, %v2022, 0
    %2171 = vmatprep.subr.mxu0 %v465
    %2172 = vmatpush1.msra.mxu0 %v464
    %2173 = vmatprep.subr.mxu0 %v641
    %2174 = vmatpush1.msra.mxu0 %v638
    %2175 = vmatprep.subr.mxu0 0.0
    %2176 = vmatpush1.msra.mxu0 0.0
    %2177 = vmatprep.subr.mxu0 0.0
    %2178 = vmatpush1.msra.mxu0 0.0
    %2179 = vmatprep.subr.mxu0 0.0
    %2180 = vmatpush1.msra.mxu0 0.0
    %2181 = vmatprep.subr.mxu0 0.0
    %2182 = vmatpush1.msra.mxu0 0.0
    %2183 = vmatprep.subr.mxu0 0.0
    %2184 = vmatpush1.msra.mxu0 0.0
    %2185 = vmatprep.subr.mxu0 0.0
    %2186 = vmatpush1.msra.mxu0 0.0
    %2187 = vmatprep.subr.mxu0 0.0
    %2188 = vmatpush1.msra.mxu0 0.0
    %2189 = vmatprep.subr.mxu0 0.0
    %2190 = vmatpush1.msra.mxu0 0.0
    %2191 = vmatprep.subr.mxu0 0.0
    %2192 = vmatpush1.msra.mxu0 0.0
    %2193 = vmatprep.subr.mxu0 0.0
    %2194 = vmatpush1.msra.mxu0 0.0
    %2195 = vmatprep.subr.mxu0 0.0
    %2196 = vmatpush1.msra.mxu0 0.0
    %2197 = vmatprep.subr.mxu0 0.0
    %2198 = vmatpush1.msra.mxu0 0.0
    %2199 = vmatprep.subr.mxu0 0.0
    %2200 = vmatpush1.msra.mxu0 0.0
    %2201 = vmatprep.subr.mxu0 0.0
    %2202 = vmatpush1.msra.mxu0 0.0
    %2203 = vmatprep.subr.mxu0 0.0
    %2204 = vmatpush1.msra.mxu0 0.0
    %2205 = vmatprep.subr.mxu0 0.0
    %2206 = vmatpush1.msra.mxu0 0.0
    %2207 = vmatprep.subr.mxu0 0.0
    %2208 = vmatpush1.msra.mxu0 0.0
    %2209 = vmatprep.subr.mxu0 0.0
    %2210 = vmatpush1.msra.mxu0 0.0
    %2211 = vmatprep.subr.mxu0 0.0
    %2212 = vmatpush1.msra.mxu0 0.0
    %2213 = vmatprep.subr.mxu0 0.0
    %2214 = vmatpush1.msra.mxu0 0.0
    %2215 = vmatprep.subr.mxu0 0.0
    %2216 = vmatpush1.msra.mxu0 0.0
    %2217 = vmatprep.subr.mxu0 0.0
    %2218 = vmatpush1.msra.mxu0 0.0
    %2219 = vmatprep.subr.mxu0 0.0
    %2220 = vmatpush1.msra.mxu0 0.0
    %2221 = vmatprep.subr.mxu0 0.0
    %2222 = vmatpush1.msra.mxu0 0.0
    %2223 = vmatprep.subr.mxu0 0.0
    %2224 = vmatpush1.msra.mxu0 0.0
    %2225 = vmatprep.subr.mxu0 0.0
    %2226 = vmatpush1.msra.mxu0 0.0
    %2227 = vmatprep.subr.mxu0 0.0
    %2228 = vmatpush1.msra.mxu0 0.0
    %2229 = vmatprep.subr.mxu0 0.0
    %2230 = vmatpush1.msra.mxu0 0.0
    %2231 = vmatprep.subr.mxu0 0.0
    %2232 = vmatpush1.msra.mxu0 0.0
    %2233 = vmatprep.subr.mxu0 0.0
    %2234 = vmatpush1.msra.mxu0 0.0
    %2235 = vmatprep.mubr.f32.mxu0 0.0
    %2236 = vmatmul.mubr.f32.gmra.mrb[0].mxu0 %v2169
    %v2237 = vpop.f32.mrb[0].mxu0
    %v2238 = vadd.f32 %v2093, %v2237
    %v2239 = vpop.f32.mrb[0].mxu0
    %v2240 = vadd.f32 %v2095, %v2239
    %2241 = vdwg.mxu0
    %2242 = vmatprep.subr.mxu0 %v467
    %2243 = vmatpush1.msra.mxu0 %v466
    %2244 = vmatprep.subr.mxu0 %v647
    %2245 = vmatpush1.msra.mxu0 %v644
    %2246 = vmatprep.subr.mxu0 0.0
    %2247 = vmatpush1.msra.mxu0 0.0
    %2248 = vmatprep.subr.mxu0 0.0
    %2249 = vmatpush1.msra.mxu0 0.0
    %2250 = vmatprep.subr.mxu0 0.0
    %2251 = vmatpush1.msra.mxu0 0.0
    %2252 = vmatprep.subr.mxu0 0.0
    %2253 = vmatpush1.msra.mxu0 0.0
    %2254 = vmatprep.subr.mxu0 0.0
    %2255 = vmatpush1.msra.mxu0 0.0
    %2256 = vmatprep.subr.mxu0 0.0
    %2257 = vmatpush1.msra.mxu0 0.0
    %2258 = vmatprep.subr.mxu0 0.0
    %2259 = vmatpush1.msra.mxu0 0.0
    %2260 = vmatprep.subr.mxu0 0.0
    %2261 = vmatpush1.msra.mxu0 0.0
    %2262 = vmatprep.subr.mxu0 0.0
    %2263 = vmatpush1.msra.mxu0 0.0
    %2264 = vmatprep.subr.mxu0 0.0
    %2265 = vmatpush1.msra.mxu0 0.0
    %2266 = vmatprep.subr.mxu0 0.0
    %2267 = vmatpush1.msra.mxu0 0.0
    %2268 = vmatprep.subr.mxu0 0.0
    %2269 = vmatpush1.msra.mxu0 0.0
    %2270 = vmatprep.subr.mxu0 0.0
    %2271 = vmatpush1.msra.mxu0 0.0
    %2272 = vmatprep.subr.mxu0 0.0
    %2273 = vmatpush1.msra.mxu0 0.0
    %2274 = vmatprep.subr.mxu0 0.0
    %2275 = vmatpush1.msra.mxu0 0.0
    %2276 = vmatprep.subr.mxu0 0.0
    %2277 = vmatpush1.msra.mxu0 0.0
    %2278 = vmatprep.subr.mxu0 0.0
    %2279 = vmatpush1.msra.mxu0 0.0
    %2280 = vmatprep.subr.mxu0 0.0
    %2281 = vmatpush1.msra.mxu0 0.0
    %2282 = vmatprep.subr.mxu0 0.0
    %2283 = vmatpush1.msra.mxu0 0.0
    %2284 = vmatprep.subr.mxu0 0.0
    %2285 = vmatpush1.msra.mxu0 0.0
    %2286 = vmatprep.subr.mxu0 0.0
    %2287 = vmatpush1.msra.mxu0 0.0
    %2288 = vmatprep.subr.mxu0 0.0
    %2289 = vmatpush1.msra.mxu0 0.0
    %2290 = vmatprep.subr.mxu0 0.0
    %2291 = vmatpush1.msra.mxu0 0.0
    %2292 = vmatprep.subr.mxu0 0.0
    %2293 = vmatpush1.msra.mxu0 0.0
    %2294 = vmatprep.subr.mxu0 0.0
    %2295 = vmatpush1.msra.mxu0 0.0
    %2296 = vmatprep.subr.mxu0 0.0
    %2297 = vmatpush1.msra.mxu0 0.0
    %2298 = vmatprep.subr.mxu0 0.0
    %2299 = vmatpush1.msra.mxu0 0.0
    %2300 = vmatprep.subr.mxu0 0.0
    %2301 = vmatpush1.msra.mxu0 0.0
    %2302 = vmatprep.subr.mxu0 0.0
    %2303 = vmatpush1.msra.mxu0 0.0
    %2304 = vmatprep.subr.mxu0 0.0
    %2305 = vmatpush1.msra.mxu0 0.0
    %2306 = vmatprep.mubr.f32.mxu0 0.0
    %2307 = vmatmul.mubr.f32.gmra.mrb[0].mxu0 %v2169
    %v2308 = vpop.f32.mrb[0].mxu0
    %v2309 = vadd.f32 %v2164, %v2308
    %v2310 = vpop.f32.mrb[0].mxu0
    %v2311 = vadd.f32 %v2166, %v2310
    %2312 = vdwg.mxu0
    %v2313 = vadd.f32 %v2238, %v796
    %v2314 = vadd.f32 %v2240, %v800
    %v2315 = vadd.f32 %v2309, %v804
    %v2316 = vadd.f32 %v2311, %v808
    %v2317 = vxor.u32 %v2313, 2147483648
    %v2318 = vmul.f32 %v2317, 1.442695
    %v2319 = vpow.pop %v2318
    %v2320 = vadd.f32 %v2319, 1.0
    %v2321 = vrcp.pop %v2320
    %v2322 = vmul.f32 1.0, %v2321
    %v2323 = vxor.u32 %v2314, 2147483648
    %v2324 = vmul.f32 %v2323, 1.442695
    %v2325 = vpow.pop %v2324
    %v2326 = vadd.f32 %v2325, 1.0
    %v2327 = vrcp.pop %v2326
    %v2328 = vmul.f32 1.0, %v2327
    %v2329 = vtanh.pop %v2315
    %v2330 = vxor.u32 %v2316, 2147483648
    %v2331 = vmul.f32 %v2330, 1.442695
    %v2332 = vpow.pop %v2331
    %v2333 = vadd.f32 %v2332, 1.0
    %v2334 = vrcp.pop %v2333
    %v2335 = vmul.f32 1.0, %v2334
    %v2336 = vmul.f32 %v2328, %v1838
    %v2337 = vmul.f32 %v2322, %v2329
    %v2338 = vadd.f32 %v2336, %v2337
    %v2339 = vtanh.pop %v2338
    %v2340 = vmul.f32 %v2335, %v2339
    %2341 = vset.pattern.permute.xlu0 4
    %2342 = vperm.xlu0 %2341, %v211
    %v2343 = vpop.permute.xlu0 %2342
    %v2345 = vmul.f32 %v2343, %v223
    %v2346 = vmul.f32 %v2343, %v227
    %v2347 = vmul.f32 %v2343, %v231
    %v2348 = vmul.f32 %v2343, %v235
    %v2349 = vadd.f32 %v2345, %v248
    %v2350 = vadd.f32 %v2346, %v252
    %v2351 = vadd.f32 %v2347, %v256
    %v2352 = vadd.f32 %v2348, %v260
    %2353 = vmatprep.subr.mxu0 %v270
    %2354 = vmatpush1.msra.mxu0 %v269
    %2355 = vmatprep.subr.mxu0 %v286
    %2356 = vmatpush1.msra.mxu0 %v283
    %2357 = vmatprep.subr.mxu0 0.0
    %2358 = vmatpush1.msra.mxu0 0.0
    %2359 = vmatprep.subr.mxu0 0.0
    %2360 = vmatpush1.msra.mxu0 0.0
    %2361 = vmatprep.subr.mxu0 0.0
    %2362 = vmatpush1.msra.mxu0 0.0
    %2363 = vmatprep.subr.mxu0 0.0
    %2364 = vmatpush1.msra.mxu0 0.0
    %2365 = vmatprep.subr.mxu0 0.0
    %2366 = vmatpush1.msra.mxu0 0.0
    %2367 = vmatprep.subr.mxu0 0.0
    %2368 = vmatpush1.msra.mxu0 0.0
    %2369 = vmatprep.subr.mxu0 0.0
    %2370 = vmatpush1.msra.mxu0 0.0
    %2371 = vmatprep.subr.mxu0 0.0
    %2372 = vmatpush1.msra.mxu0 0.0
    %2373 = vmatprep.subr.mxu0 0.0
    %2374 = vmatpush1.msra.mxu0 0.0
    %2375 = vmatprep.subr.mxu0 0.0
    %2376 = vmatpush1.msra.mxu0 0.0
    %2377 = vmatprep.subr.mxu0 0.0
    %2378 = vmatpush1.msra.mxu0 0.0
    %2379 = vmatprep.subr.mxu0 0.0
    %2380 = vmatpush1.msra.mxu0 0.0
    %2381 = vmatprep.subr.mxu0 0.0
    %2382 = vmatpush1.msra.mxu0 0.0
    %2383 = vmatprep.subr.mxu0 0.0
    %2384 = vmatpush1.msra.mxu0 0.0
    %2385 = vmatprep.subr.mxu0 0.0
    %2386 = vmatpush1.msra.mxu0 0.0
    %2387 = vmatprep.subr.mxu0 0.0
    %2388 = vmatpush1.msra.mxu0 0.0
    %2389 = vmatprep.subr.mxu0 0.0
    %2390 = vmatpush1.msra.mxu0 0.0
    %2391 = vmatprep.subr.mxu0 0.0
    %2392 = vmatpush1.msra.mxu0 0.0
    %2393 = vmatprep.subr.mxu0 0.0
    %2394 = vmatpush1.msra.mxu0 0.0
    %2395 = vmatprep.subr.mxu0 0.0
    %2396 = vmatpush1.msra.mxu0 0.0
    %2397 = vmatprep.subr.mxu0 0.0
    %2398 = vmatpush1.msra.mxu0 0.0
    %2399 = vmatprep.subr.mxu0 0.0
    %2400 = vmatpush1.msra.mxu0 0.0
    %2401 = vmatprep.subr.mxu0 0.0
    %2402 = vmatpush1.msra.mxu0 0.0
    %2403 = vmatprep.subr.mxu0 0.0
    %2404 = vmatpush1.msra.mxu0 0.0
    %2405 = vmatprep.subr.mxu0 0.0
    %2406 = vmatpush1.msra.mxu0 0.0
    %2407 = vmatprep.subr.mxu0 0.0
    %2408 = vmatpush1.msra.mxu0 0.0
    %2409 = vmatprep.subr.mxu0 0.0
    %2410 = vmatpush1.msra.mxu0 0.0
    %2411 = vmatprep.subr.mxu0 0.0
    %2412 = vmatpush1.msra.mxu0 0.0
    %2413 = vmatprep.subr.mxu0 0.0
    %2414 = vmatpush1.msra.mxu0 0.0
    %2415 = vmatprep.subr.mxu0 0.0
    %2416 = vmatpush1.msra.mxu0 0.0
    %2417 = vmatprep.mubr.f32.mxu0 0.0
    %2418 = vmatmul.mubr.f32.gmra.mrb[0].mxu0 %v2169
    %v2419 = vpop.f32.mrb[0].mxu0
    %v2420 = vadd.f32 0.0, %v2419
    %v2421 = vpop.f32.mrb[0].mxu0
    %v2422 = vadd.f32 0.0, %v2421
    %2423 = vdwg.mxu0
    %2424 = vmatprep.subr.mxu0 %v272
    %2425 = vmatpush1.msra.mxu0 %v271
    %2426 = vmatprep.subr.mxu0 %v292
    %2427 = vmatpush1.msra.mxu0 %v289
    %2428 = vmatprep.subr.mxu0 0.0
    %2429 = vmatpush1.msra.mxu0 0.0
    %2430 = vmatprep.subr.mxu0 0.0
    %2431 = vmatpush1.msra.mxu0 0.0
    %2432 = vmatprep.subr.mxu0 0.0
    %2433 = vmatpush1.msra.mxu0 0.0
    %2434 = vmatprep.subr.mxu0 0.0
    %2435 = vmatpush1.msra.mxu0 0.0
    %2436 = vmatprep.subr.mxu0 0.0
    %2437 = vmatpush1.msra.mxu0 0.0
    %2438 = vmatprep.subr.mxu0 0.0
    %2439 = vmatpush1.msra.mxu0 0.0
    %2440 = vmatprep.subr.mxu0 0.0
    %2441 = vmatpush1.msra.mxu0 0.0
    %2442 = vmatprep.subr.mxu0 0.0
    %2443 = vmatpush1.msra.mxu0 0.0
    %2444 = vmatprep.subr.mxu0 0.0
    %2445 = vmatpush1.msra.mxu0 0.0
    %2446 = vmatprep.subr.mxu0 0.0
    %2447 = vmatpush1.msra.mxu0 0.0
    %2448 = vmatprep.subr.mxu0 0.0
    %2449 = vmatpush1.msra.mxu0 0.0
    %2450 = vmatprep.subr.mxu0 0.0
    %2451 = vmatpush1.msra.mxu0 0.0
    %2452 = vmatprep.subr.mxu0 0.0
    %2453 = vmatpush1.msra.mxu0 0.0
    %2454 = vmatprep.subr.mxu0 0.0
    %2455 = vmatpush1.msra.mxu0 0.0
    %2456 = vmatprep.subr.mxu0 0.0
    %2457 = vmatpush1.msra.mxu0 0.0
    %2458 = vmatprep.subr.mxu0 0.0
    %2459 = vmatpush1.msra.mxu0 0.0
    %2460 = vmatprep.subr.mxu0 0.0
    %2461 = vmatpush1.msra.mxu0 0.0
    %2462 = vmatprep.subr.mxu0 0.0
    %2463 = vmatpush1.msra.mxu0 0.0
    %2464 = vmatprep.subr.mxu0 0.0
    %2465 = vmatpush1.msra.mxu0 0.0
    %2466 = vmatprep.subr.mxu0 0.0
    %2467 = vmatpush1.msra.mxu0 0.0
    %2468 = vmatprep.subr.mxu0 0.0
    %2469 = vmatpush1.msra.mxu0 0.0
    %2470 = vmatprep.subr.mxu0 0.0
    %2471 = vmatpush1.msra.mxu0 0.0
    %2472 = vmatprep.subr.mxu0 0.0
    %2473 = vmatpush1.msra.mxu0 0.0
    %2474 = vmatprep.subr.mxu0 0.0
    %2475 = vmatpush1.msra.mxu0 0.0
    %2476 = vmatprep.subr.mxu0 0.0
    %2477 = vmatpush1.msra.mxu0 0.0
    %2478 = vmatprep.subr.mxu0 0.0
    %2479 = vmatpush1.msra.mxu0 0.0
    %2480 = vmatprep.subr.mxu0 0.0
    %2481 = vmatpush1.msra.mxu0 0.0
    %2482 = vmatprep.subr.mxu0 0.0
    %2483 = vmatpush1.msra.mxu0 0.0
    %2484 = vmatprep.subr.mxu0 0.0
    %2485 = vmatpush1.msra.mxu0 0.0
    %2486 = vmatprep.subr.mxu0 0.0
    %2487 = vmatpush1.msra.mxu0 0.0
    %2488 = vmatprep.mubr.f32.mxu0 0.0
    %2489 = vmatmul.mubr.f32.gmra.mrb[0].mxu0 %v2169
    %v2490 = vpop.f32.mrb[0].mxu0
    %v2491 = vadd.f32 0.0, %v2490
    %v2492 = vpop.f32.mrb[0].mxu0
    %v2493 = vadd.f32 0.0, %v2492
    %2494 = vdwg.mxu0
    %v2495 = vadd.f32 %v2349, %v2420
    %v2496 = vadd.f32 %v2350, %v2422
    %v2497 = vadd.f32 %v2351, %v2491
    %v2498 = vadd.f32 %v2352, %v2493
    %v2499 = vxor.u32 %v2495, 2147483648
    %v2500 = vmul.f32 %v2499, 1.442695
    %v2501 = vpow.pop %v2500
    %v2502 = vadd.f32 %v2501, 1.0
    %v2503 = vrcp.pop %v2502
    %v2504 = vmul.f32 1.0, %v2503
    %v2505 = vxor.u32 %v2496, 2147483648
    %v2506 = vmul.f32 %v2505, 1.442695
    %v2507 = vpow.pop %v2506
    %v2508 = vadd.f32 %v2507, 1.0
    %v2509 = vrcp.pop %v2508
    %v2510 = vmul.f32 1.0, %v2509
    %v2511 = vtanh.pop %v2497
    %v2512 = vxor.u32 %v2498, 2147483648
    %v2513 = vmul.f32 %v2512, 1.442695
    %v2514 = vpow.pop %v2513
    %v2515 = vadd.f32 %v2514, 1.0
    %v2516 = vrcp.pop %v2515
    %v2517 = vmul.f32 1.0, %v2516
    %v2518 = vmul.f32 %v2510, %v2020
    %v2519 = vmul.f32 %v2504, %v2511
    %v2520 = vadd.f32 %v2518, %v2519
    %v2521 = vtanh.pop %v2520
    %v2522 = vmul.f32 %v2517, %v2521
    %v2524 = vsel %vm277, %v2340, 0
    %2526 = vmatprep.subr.mxu0 %v473
    %2527 = vmatpush1.msra.mxu0 %v472
    %2528 = vmatprep.subr.mxu0 %v484
    %2529 = vmatpush1.msra.mxu0 %v481
    %2530 = vmatprep.subr.mxu0 0.0
    %2531 = vmatpush1.msra.mxu0 0.0
    %2532 = vmatprep.subr.mxu0 0.0
    %2533 = vmatpush1.msra.mxu0 0.0
    %2534 = vmatprep.subr.mxu0 0.0
    %2535 = vmatpush1.msra.mxu0 0.0
    %2536 = vmatprep.subr.mxu0 0.0
    %2537 = vmatpush1.msra.mxu0 0.0
    %2538 = vmatprep.subr.mxu0 0.0
    %2539 = vmatpush1.msra.mxu0 0.0
    %2540 = vmatprep.subr.mxu0 0.0
    %2541 = vmatpush1.msra.mxu0 0.0
    %2542 = vmatprep.subr.mxu0 0.0
    %2543 = vmatpush1.msra.mxu0 0.0
    %2544 = vmatprep.subr.mxu0 0.0
    %2545 = vmatpush1.msra.mxu0 0.0
    %2546 = vmatprep.subr.mxu0 0.0
    %2547 = vmatpush1.msra.mxu0 0.0
    %2548 = vmatprep.subr.mxu0 0.0
    %2549 = vmatpush1.msra.mxu0 0.0
    %2550 = vmatprep.subr.mxu0 0.0
    %2551 = vmatpush1.msra.mxu0 0.0
    %2552 = vmatprep.subr.mxu0 0.0
    %2553 = vmatpush1.msra.mxu0 0.0
    %2554 = vmatprep.subr.mxu0 0.0
    %2555 = vmatpush1.msra.mxu0 0.0
    %2556 = vmatprep.subr.mxu0 0.0
    %2557 = vmatpush1.msra.mxu0 0.0
    %2558 = vmatprep.subr.mxu0 0.0
    %2559 = vmatpush1.msra.mxu0 0.0
    %2560 = vmatprep.subr.mxu0 0.0
    %2561 = vmatpush1.msra.mxu0 0.0
    %2562 = vmatprep.subr.mxu0 0.0
    %2563 = vmatpush1.msra.mxu0 0.0
    %2564 = vmatprep.subr.mxu0 0.0
    %2565 = vmatpush1.msra.mxu0 0.0
    %2566 = vmatprep.subr.mxu0 0.0
    %2567 = vmatpush1.msra.mxu0 0.0
    %2568 = vmatprep.subr.mxu0 0.0
    %2569 = vmatpush1.msra.mxu0 0.0
    %2570 = vmatprep.subr.mxu0 0.0
    %2571 = vmatpush1.msra.mxu0 0.0
    %2572 = vmatprep.subr.mxu0 0.0
    %2573 = vmatpush1.msra.mxu0 0.0
    %2574 = vmatprep.subr.mxu0 0.0
    %2575 = vmatpush1.msra.mxu0 0.0
    %2576 = vmatprep.subr.mxu0 0.0
    %2577 = vmatpush1.msra.mxu0 0.0
    %2578 = vmatprep.subr.mxu0 0.0
    %2579 = vmatpush1.msra.mxu0 0.0
    %2580 = vmatprep.subr.mxu0 0.0
    %2581 = vmatpush1.msra.mxu0 0.0
    %2582 = vmatprep.subr.mxu0 0.0
    %2583 = vmatpush1.msra.mxu0 0.0
    %2584 = vmatprep.subr.mxu0 0.0
    %2585 = vmatpush1.msra.mxu0 0.0
    %2586 = vmatprep.subr.mxu0 0.0
    %2587 = vmatpush1.msra.mxu0 0.0
    %2588 = vmatprep.subr.mxu0 0.0
    %2589 = vmatpush1.msra.mxu0 0.0
    %2590 = vmatprep.mubr.f32.mxu0 0.0
    %2591 = vmatmul.mubr.f32.gmra.mrb[0].mxu0 %v2524
    %v2592 = vpop.f32.mrb[0].mxu0
    %v2593 = vadd.f32 0.0, %v2592
    %v2594 = vpop.f32.mrb[0].mxu0
    %v2595 = vadd.f32 0.0, %v2594
    %2596 = vdwg.mxu0
    %2597 = vmatprep.subr.mxu0 %v475
    %2598 = vmatpush1.msra.mxu0 %v474
    %2599 = vmatprep.subr.mxu0 %v490
    %2600 = vmatpush1.msra.mxu0 %v487
    %2601 = vmatprep.subr.mxu0 0.0
    %2602 = vmatpush1.msra.mxu0 0.0
    %2603 = vmatprep.subr.mxu0 0.0
    %2604 = vmatpush1.msra.mxu0 0.0
    %2605 = vmatprep.subr.mxu0 0.0
    %2606 = vmatpush1.msra.mxu0 0.0
    %2607 = vmatprep.subr.mxu0 0.0
    %2608 = vmatpush1.msra.mxu0 0.0
    %2609 = vmatprep.subr.mxu0 0.0
    %2610 = vmatpush1.msra.mxu0 0.0
    %2611 = vmatprep.subr.mxu0 0.0
    %2612 = vmatpush1.msra.mxu0 0.0
    %2613 = vmatprep.subr.mxu0 0.0
    %2614 = vmatpush1.msra.mxu0 0.0
    %2615 = vmatprep.subr.mxu0 0.0
    %2616 = vmatpush1.msra.mxu0 0.0
    %2617 = vmatprep.subr.mxu0 0.0
    %2618 = vmatpush1.msra.mxu0 0.0
    %2619 = vmatprep.subr.mxu0 0.0
    %2620 = vmatpush1.msra.mxu0 0.0
    %2621 = vmatprep.subr.mxu0 0.0
    %2622 = vmatpush1.msra.mxu0 0.0
    %2623 = vmatprep.subr.mxu0 0.0
    %2624 = vmatpush1.msra.mxu0 0.0
    %2625 = vmatprep.subr.mxu0 0.0
    %2626 = vmatpush1.msra.mxu0 0.0
    %2627 = vmatprep.subr.mxu0 0.0
    %2628 = vmatpush1.msra.mxu0 0.0
    %2629 = vmatprep.subr.mxu0 0.0
    %2630 = vmatpush1.msra.mxu0 0.0
    %2631 = vmatprep.subr.mxu0 0.0
    %2632 = vmatpush1.msra.mxu0 0.0
    %2633 = vmatprep.subr.mxu0 0.0
    %2634 = vmatpush1.msra.mxu0 0.0
    %2635 = vmatprep.subr.mxu0 0.0
    %2636 = vmatpush1.msra.mxu0 0.0
    %2637 = vmatprep.subr.mxu0 0.0
    %2638 = vmatpush1.msra.mxu0 0.0
    %2639 = vmatprep.subr.mxu0 0.0
    %2640 = vmatpush1.msra.mxu0 0.0
    %2641 = vmatprep.subr.mxu0 0.0
    %2642 = vmatpush1.msra.mxu0 0.0
    %2643 = vmatprep.subr.mxu0 0.0
    %2644 = vmatpush1.msra.mxu0 0.0
    %2645 = vmatprep.subr.mxu0 0.0
    %2646 = vmatpush1.msra.mxu0 0.0
    %2647 = vmatprep.subr.mxu0 0.0
    %2648 = vmatpush1.msra.mxu0 0.0
    %2649 = vmatprep.subr.mxu0 0.0
    %2650 = vmatpush1.msra.mxu0 0.0
    %2651 = vmatprep.subr.mxu0 0.0
    %2652 = vmatpush1.msra.mxu0 0.0
    %2653 = vmatprep.subr.mxu0 0.0
    %2654 = vmatpush1.msra.mxu0 0.0
    %2655 = vmatprep.subr.mxu0 0.0
    %2656 = vmatpush1.msra.mxu0 0.0
    %2657 = vmatprep.subr.mxu0 0.0
    %2658 = vmatpush1.msra.mxu0 0.0
    %2659 = vmatprep.subr.mxu0 0.0
    %2660 = vmatpush1.msra.mxu0 0.0
    %2661 = vmatprep.mubr.f32.mxu0 0.0
    %2662 = vmatmul.mubr.f32.gmra.mrb[0].mxu0 %v2524
    %v2663 = vpop.f32.mrb[0].mxu0
    %v2664 = vadd.f32 0.0, %v2663
    %v2665 = vpop.f32.mrb[0].mxu0
    %v2666 = vadd.f32 0.0, %v2665
    %2667 = vdwg.mxu0
    %v2669 = vsel %vm277, %v2522, 0
    %2671 = vmatprep.subr.mxu0 %v465
    %2672 = vmatpush1.msra.mxu0 %v464
    %2673 = vmatprep.subr.mxu0 %v641
    %2674 = vmatpush1.msra.mxu0 %v638
    %2675 = vmatprep.subr.mxu0 0.0
    %2676 = vmatpush1.msra.mxu0 0.0
    %2677 = vmatprep.subr.mxu0 0.0
    %2678 = vmatpush1.msra.mxu0 0.0
    %2679 = vmatprep.subr.mxu0 0.0
    %2680 = vmatpush1.msra.mxu0 0.0
    %2681 = vmatprep.subr.mxu0 0.0
    %2682 = vmatpush1.msra.mxu0 0.0
    %2683 = vmatprep.subr.mxu0 0.0
    %2684 = vmatpush1.msra.mxu0 0.0
    %2685 = vmatprep.subr.mxu0 0.0
    %2686 = vmatpush1.msra.mxu0 0.0
    %2687 = vmatprep.subr.mxu0 0.0
    %2688 = vmatpush1.msra.mxu0 0.0
    %2689 = vmatprep.subr.mxu0 0.0
    %2690 = vmatpush1.msra.mxu0 0.0
    %2691 = vmatprep.subr.mxu0 0.0
    %2692 = vmatpush1.msra.mxu0 0.0
    %2693 = vmatprep.subr.mxu0 0.0
    %2694 = vmatpush1.msra.mxu0 0.0
    %2695 = vmatprep.subr.mxu0 0.0
    %2696 = vmatpush1.msra.mxu0 0.0
    %2697 = vmatprep.subr.mxu0 0.0
    %2698 = vmatpush1.msra.mxu0 0.0
    %2699 = vmatprep.subr.mxu0 0.0
    %2700 = vmatpush1.msra.mxu0 0.0
    %2701 = vmatprep.subr.mxu0 0.0
    %2702 = vmatpush1.msra.mxu0 0.0
    %2703 = vmatprep.subr.mxu0 0.0
    %2704 = vmatpush1.msra.mxu0 0.0
    %2705 = vmatprep.subr.mxu0 0.0
    %2706 = vmatpush1.msra.mxu0 0.0
    %2707 = vmatprep.subr.mxu0 0.0
    %2708 = vmatpush1.msra.mxu0 0.0
    %2709 = vmatprep.subr.mxu0 0.0
    %2710 = vmatpush1.msra.mxu0 0.0
    %2711 = vmatprep.subr.mxu0 0.0
    %2712 = vmatpush1.msra.mxu0 0.0
    %2713 = vmatprep.subr.mxu0 0.0
    %2714 = vmatpush1.msra.mxu0 0.0
    %2715 = vmatprep.subr.mxu0 0.0
    %2716 = vmatpush1.msra.mxu0 0.0
    %2717 = vmatprep.subr.mxu0 0.0
    %2718 = vmatpush1.msra.mxu0 0.0
    %2719 = vmatprep.subr.mxu0 0.0
    %2720 = vmatpush1.msra.mxu0 0.0
    %2721 = vmatprep.subr.mxu0 0.0
    %2722 = vmatpush1.msra.mxu0 0.0
    %2723 = vmatprep.subr.mxu0 0.0
    %2724 = vmatpush1.msra.mxu0 0.0
    %2725 = vmatprep.subr.mxu0 0.0
    %2726 = vmatpush1.msra.mxu0 0.0
    %2727 = vmatprep.subr.mxu0 0.0
    %2728 = vmatpush1.msra.mxu0 0.0
    %2729 = vmatprep.subr.mxu0 0.0
    %2730 = vmatpush1.msra.mxu0 0.0
    %2731 = vmatprep.subr.mxu0 0.0
    %2732 = vmatpush1.msra.mxu0 0.0
    %2733 = vmatprep.subr.mxu0 0.0
    %2734 = vmatpush1.msra.mxu0 0.0
    %2735 = vmatprep.mubr.f32.mxu0 0.0
    %2736 = vmatmul.mubr.f32.gmra.mrb[0].mxu0 %v2669
    %v2737 = vpop.f32.mrb[0].mxu0
    %v2738 = vadd.f32 %v2593, %v2737
    %v2739 = vpop.f32.mrb[0].mxu0
    %v2740 = vadd.f32 %v2595, %v2739
    %2741 = vdwg.mxu0
    %2742 = vmatprep.subr.mxu0 %v467
    %2743 = vmatpush1.msra.mxu0 %v466
    %2744 = vmatprep.subr.mxu0 %v647
    %2745 = vmatpush1.msra.mxu0 %v644
    %2746 = vmatprep.subr.mxu0 0.0
    %2747 = vmatpush1.msra.mxu0 0.0
    %2748 = vmatprep.subr.mxu0 0.0
    %2749 = vmatpush1.msra.mxu0 0.0
    %2750 = vmatprep.subr.mxu0 0.0
    %2751 = vmatpush1.msra.mxu0 0.0
    %2752 = vmatprep.subr.mxu0 0.0
    %2753 = vmatpush1.msra.mxu0 0.0
    %2754 = vmatprep.subr.mxu0 0.0
    %2755 = vmatpush1.msra.mxu0 0.0
    %2756 = vmatprep.subr.mxu0 0.0
    %2757 = vmatpush1.msra.mxu0 0.0
    %2758 = vmatprep.subr.mxu0 0.0
    %2759 = vmatpush1.msra.mxu0 0.0
    %2760 = vmatprep.subr.mxu0 0.0
    %2761 = vmatpush1.msra.mxu0 0.0
    %2762 = vmatprep.subr.mxu0 0.0
    %2763 = vmatpush1.msra.mxu0 0.0
    %2764 = vmatprep.subr.mxu0 0.0
    %2765 = vmatpush1.msra.mxu0 0.0
    %2766 = vmatprep.subr.mxu0 0.0
    %2767 = vmatpush1.msra.mxu0 0.0
    %2768 = vmatprep.subr.mxu0 0.0
    %2769 = vmatpush1.msra.mxu0 0.0
    %2770 = vmatprep.subr.mxu0 0.0
    %2771 = vmatpush1.msra.mxu0 0.0
    %2772 = vmatprep.subr.mxu0 0.0
    %2773 = vmatpush1.msra.mxu0 0.0
    %2774 = vmatprep.subr.mxu0 0.0
    %2775 = vmatpush1.msra.mxu0 0.0
    %2776 = vmatprep.subr.mxu0 0.0
    %2777 = vmatpush1.msra.mxu0 0.0
    %2778 = vmatprep.subr.mxu0 0.0
    %2779 = vmatpush1.msra.mxu0 0.0
    %2780 = vmatprep.subr.mxu0 0.0
    %2781 = vmatpush1.msra.mxu0 0.0
    %2782 = vmatprep.subr.mxu0 0.0
    %2783 = vmatpush1.msra.mxu0 0.0
    %2784 = vmatprep.subr.mxu0 0.0
    %2785 = vmatpush1.msra.mxu0 0.0
    %2786 = vmatprep.subr.mxu0 0.0
    %2787 = vmatpush1.msra.mxu0 0.0
    %2788 = vmatprep.subr.mxu0 0.0
    %2789 = vmatpush1.msra.mxu0 0.0
    %2790 = vmatprep.subr.mxu0 0.0
    %2791 = vmatpush1.msra.mxu0 0.0
    %2792 = vmatprep.subr.mxu0 0.0
    %2793 = vmatpush1.msra.mxu0 0.0
    %2794 = vmatprep.subr.mxu0 0.0
    %2795 = vmatpush1.msra.mxu0 0.0
    %2796 = vmatprep.subr.mxu0 0.0
    %2797 = vmatpush1.msra.mxu0 0.0
    %2798 = vmatprep.subr.mxu0 0.0
    %2799 = vmatpush1.msra.mxu0 0.0
    %2800 = vmatprep.subr.mxu0 0.0
    %2801 = vmatpush1.msra.mxu0 0.0
    %2802 = vmatprep.subr.mxu0 0.0
    %2803 = vmatpush1.msra.mxu0 0.0
    %2804 = vmatprep.subr.mxu0 0.0
    %2805 = vmatpush1.msra.mxu0 0.0
    %2806 = vmatprep.mubr.f32.mxu0 0.0
    %2807 = vmatmul.mubr.f32.gmra.mrb[0].mxu0 %v2669
    %v2808 = vpop.f32.mrb[0].mxu0
    %v2809 = vadd.f32 %v2664, %v2808
    %v2810 = vpop.f32.mrb[0].mxu0
    %v2811 = vadd.f32 %v2666, %v2810
    %2812 = vdwg.mxu0
    %v2813 = vadd.f32 %v2738, %v796
    %v2814 = vadd.f32 %v2740, %v800
    %v2815 = vadd.f32 %v2809, %v804
    %v2816 = vadd.f32 %v2811, %v808
    %v2817 = vxor.u32 %v2813, 2147483648
    %v2818 = vmul.f32 %v2817, 1.442695
    %v2819 = vpow.pop %v2818
    %v2820 = vadd.f32 %v2819, 1.0
    %v2821 = vrcp.pop %v2820
    %v2822 = vmul.f32 1.0, %v2821
    %v2823 = vxor.u32 %v2814, 2147483648
    %v2824 = vmul.f32 %v2823, 1.442695
    %v2825 = vpow.pop %v2824
    %v2826 = vadd.f32 %v2825, 1.0
    %v2827 = vrcp.pop %v2826
    %v2828 = vmul.f32 1.0, %v2827
    %v2829 = vtanh.pop %v2815
    %v2830 = vxor.u32 %v2816, 2147483648
    %v2831 = vmul.f32 %v2830, 1.442695
    %v2832 = vpow.pop %v2831
    %v2833 = vadd.f32 %v2832, 1.0
    %v2834 = vrcp.pop %v2833
    %v2835 = vmul.f32 1.0, %v2834
    %v2836 = vmul.f32 %v2828, %v2338
    %v2837 = vmul.f32 %v2822, %v2829
    %v2838 = vadd.f32 %v2836, %v2837
    %v2839 = vtanh.pop %v2838
    %v2840 = vmul.f32 %v2835, %v2839
    %2841 = vset.pattern.permute.xlu0 5
    %2842 = vperm.xlu0 %2841, %v211
    %v2843 = vpop.permute.xlu0 %2842
    %v2845 = vmul.f32 %v2843, %v223
    %v2846 = vmul.f32 %v2843, %v227
    %v2847 = vmul.f32 %v2843, %v231
    %v2848 = vmul.f32 %v2843, %v235
    %v2849 = vadd.f32 %v2845, %v248
    %v2850 = vadd.f32 %v2846, %v252
    %v2851 = vadd.f32 %v2847, %v256
    %v2852 = vadd.f32 %v2848, %v260
    %2853 = vmatprep.subr.mxu0 %v270
    %2854 = vmatpush1.msra.mxu0 %v269
    %2855 = vmatprep.subr.mxu0 %v286
    %2856 = vmatpush1.msra.mxu0 %v283
    %2857 = vmatprep.subr.mxu0 0.0
    %2858 = vmatpush1.msra.mxu0 0.0
    %2859 = vmatprep.subr.mxu0 0.0
    %2860 = vmatpush1.msra.mxu0 0.0
    %2861 = vmatprep.subr.mxu0 0.0
    %2862 = vmatpush1.msra.mxu0 0.0
    %2863 = vmatprep.subr.mxu0 0.0
    %2864 = vmatpush1.msra.mxu0 0.0
    %2865 = vmatprep.subr.mxu0 0.0
    %2866 = vmatpush1.msra.mxu0 0.0
    %2867 = vmatprep.subr.mxu0 0.0
    %2868 = vmatpush1.msra.mxu0 0.0
    %2869 = vmatprep.subr.mxu0 0.0
    %2870 = vmatpush1.msra.mxu0 0.0
    %2871 = vmatprep.subr.mxu0 0.0
    %2872 = vmatpush1.msra.mxu0 0.0
    %2873 = vmatprep.subr.mxu0 0.0
    %2874 = vmatpush1.msra.mxu0 0.0
    %2875 = vmatprep.subr.mxu0 0.0
    %2876 = vmatpush1.msra.mxu0 0.0
    %2877 = vmatprep.subr.mxu0 0.0
    %2878 = vmatpush1.msra.mxu0 0.0
    %2879 = vmatprep.subr.mxu0 0.0
    %2880 = vmatpush1.msra.mxu0 0.0
    %2881 = vmatprep.subr.mxu0 0.0
    %2882 = vmatpush1.msra.mxu0 0.0
    %2883 = vmatprep.subr.mxu0 0.0
    %2884 = vmatpush1.msra.mxu0 0.0
    %2885 = vmatprep.subr.mxu0 0.0
    %2886 = vmatpush1.msra.mxu0 0.0
    %2887 = vmatprep.subr.mxu0 0.0
    %2888 = vmatpush1.msra.mxu0 0.0
    %2889 = vmatprep.subr.mxu0 0.0
    %2890 = vmatpush1.msra.mxu0 0.0
    %2891 = vmatprep.subr.mxu0 0.0
    %2892 = vmatpush1.msra.mxu0 0.0
    %2893 = vmatprep.subr.mxu0 0.0
    %2894 = vmatpush1.msra.mxu0 0.0
    %2895 = vmatprep.subr.mxu0 0.0
    %2896 = vmatpush1.msra.mxu0 0.0
    %2897 = vmatprep.subr.mxu0 0.0
    %2898 = vmatpush1.msra.mxu0 0.0
    %2899 = vmatprep.subr.mxu0 0.0
    %2900 = vmatpush1.msra.mxu0 0.0
    %2901 = vmatprep.subr.mxu0 0.0
    %2902 = vmatpush1.msra.mxu0 0.0
    %2903 = vmatprep.subr.mxu0 0.0
    %2904 = vmatpush1.msra.mxu0 0.0
    %2905 = vmatprep.subr.mxu0 0.0
    %2906 = vmatpush1.msra.mxu0 0.0
    %2907 = vmatprep.subr.mxu0 0.0
    %2908 = vmatpush1.msra.mxu0 0.0
    %2909 = vmatprep.subr.mxu0 0.0
    %2910 = vmatpush1.msra.mxu0 0.0
    %2911 = vmatprep.subr.mxu0 0.0
    %2912 = vmatpush1.msra.mxu0 0.0
    %2913 = vmatprep.subr.mxu0 0.0
    %2914 = vmatpush1.msra.mxu0 0.0
    %2915 = vmatprep.subr.mxu0 0.0
    %2916 = vmatpush1.msra.mxu0 0.0
    %2917 = vmatprep.mubr.f32.mxu0 0.0
    %2918 = vmatmul.mubr.f32.gmra.mrb[0].mxu0 %v2669
    %v2919 = vpop.f32.mrb[0].mxu0
    %v2920 = vadd.f32 0.0, %v2919
    %v2921 = vpop.f32.mrb[0].mxu0
    %v2922 = vadd.f32 0.0, %v2921
    %2923 = vdwg.mxu0
    %2924 = vmatprep.subr.mxu0 %v272
    %2925 = vmatpush1.msra.mxu0 %v271
    %2926 = vmatprep.subr.mxu0 %v292
    %2927 = vmatpush1.msra.mxu0 %v289
    %2928 = vmatprep.subr.mxu0 0.0
    %2929 = vmatpush1.msra.mxu0 0.0
    %2930 = vmatprep.subr.mxu0 0.0
    %2931 = vmatpush1.msra.mxu0 0.0
    %2932 = vmatprep.subr.mxu0 0.0
    %2933 = vmatpush1.msra.mxu0 0.0
    %2934 = vmatprep.subr.mxu0 0.0
    %2935 = vmatpush1.msra.mxu0 0.0
    %2936 = vmatprep.subr.mxu0 0.0
    %2937 = vmatpush1.msra.mxu0 0.0
    %2938 = vmatprep.subr.mxu0 0.0
    %2939 = vmatpush1.msra.mxu0 0.0
    %2940 = vmatprep.subr.mxu0 0.0
    %2941 = vmatpush1.msra.mxu0 0.0
    %2942 = vmatprep.subr.mxu0 0.0
    %2943 = vmatpush1.msra.mxu0 0.0
    %2944 = vmatprep.subr.mxu0 0.0
    %2945 = vmatpush1.msra.mxu0 0.0
    %2946 = vmatprep.subr.mxu0 0.0
    %2947 = vmatpush1.msra.mxu0 0.0
    %2948 = vmatprep.subr.mxu0 0.0
    %2949 = vmatpush1.msra.mxu0 0.0
    %2950 = vmatprep.subr.mxu0 0.0
    %2951 = vmatpush1.msra.mxu0 0.0
    %2952 = vmatprep.subr.mxu0 0.0
    %2953 = vmatpush1.msra.mxu0 0.0
    %2954 = vmatprep.subr.mxu0 0.0
    %2955 = vmatpush1.msra.mxu0 0.0
    %2956 = vmatprep.subr.mxu0 0.0
    %2957 = vmatpush1.msra.mxu0 0.0
    %2958 = vmatprep.subr.mxu0 0.0
    %2959 = vmatpush1.msra.mxu0 0.0
    %2960 = vmatprep.subr.mxu0 0.0
    %2961 = vmatpush1.msra.mxu0 0.0
    %2962 = vmatprep.subr.mxu0 0.0
    %2963 = vmatpush1.msra.mxu0 0.0
    %2964 = vmatprep.subr.mxu0 0.0
    %2965 = vmatpush1.msra.mxu0 0.0
    %2966 = vmatprep.subr.mxu0 0.0
    %2967 = vmatpush1.msra.mxu0 0.0
    %2968 = vmatprep.subr.mxu0 0.0
    %2969 = vmatpush1.msra.mxu0 0.0
    %2970 = vmatprep.subr.mxu0 0.0
    %2971 = vmatpush1.msra.mxu0 0.0
    %2972 = vmatprep.subr.mxu0 0.0
    %2973 = vmatpush1.msra.mxu0 0.0
    %2974 = vmatprep.subr.mxu0 0.0
    %2975 = vmatpush1.msra.mxu0 0.0
    %2976 = vmatprep.subr.mxu0 0.0
    %2977 = vmatpush1.msra.mxu0 0.0
    %2978 = vmatprep.subr.mxu0 0.0
    %2979 = vmatpush1.msra.mxu0 0.0
    %2980 = vmatprep.subr.mxu0 0.0
    %2981 = vmatpush1.msra.mxu0 0.0
    %2982 = vmatprep.subr.mxu0 0.0
    %2983 = vmatpush1.msra.mxu0 0.0
    %2984 = vmatprep.subr.mxu0 0.0
    %2985 = vmatpush1.msra.mxu0 0.0
    %2986 = vmatprep.subr.mxu0 0.0
    %2987 = vmatpush1.msra.mxu0 0.0
    %2988 = vmatprep.mubr.f32.mxu0 0.0
    %2989 = vmatmul.mubr.f32.gmra.mrb[0].mxu0 %v2669
    %v2990 = vpop.f32.mrb[0].mxu0
    %v2991 = vadd.f32 0.0, %v2990
    %v2992 = vpop.f32.mrb[0].mxu0
    %v2993 = vadd.f32 0.0, %v2992
    %2994 = vdwg.mxu0
    %v2995 = vadd.f32 %v2849, %v2920
    %v2996 = vadd.f32 %v2850, %v2922
    %v2997 = vadd.f32 %v2851, %v2991
    %v2998 = vadd.f32 %v2852, %v2993
    %v2999 = vxor.u32 %v2995, 2147483648
    %v3000 = vmul.f32 %v2999, 1.442695
    %v3001 = vpow.pop %v3000
    %v3002 = vadd.f32 %v3001, 1.0
    %v3003 = vrcp.pop %v3002
    %v3004 = vmul.f32 1.0, %v3003
    %v3005 = vxor.u32 %v2996, 2147483648
    %v3006 = vmul.f32 %v3005, 1.442695
    %v3007 = vpow.pop %v3006
    %v3008 = vadd.f32 %v3007, 1.0
    %v3009 = vrcp.pop %v3008
    %v3010 = vmul.f32 1.0, %v3009
    %v3011 = vtanh.pop %v2997
    %v3012 = vxor.u32 %v2998, 2147483648
    %v3013 = vmul.f32 %v3012, 1.442695
    %v3014 = vpow.pop %v3013
    %v3015 = vadd.f32 %v3014, 1.0
    %v3016 = vrcp.pop %v3015
    %v3017 = vmul.f32 1.0, %v3016
    %v3018 = vmul.f32 %v3010, %v2520
    %v3019 = vmul.f32 %v3004, %v3011
    %v3020 = vadd.f32 %v3018, %v3019
    %v3021 = vtanh.pop %v3020
    %v3022 = vmul.f32 %v3017, %v3021
    %v3024 = vsel %vm277, %v2840, 0
    %3026 = vmatprep.subr.mxu0 %v473
    %3027 = vmatpush1.msra.mxu0 %v472
    %3028 = vmatprep.subr.mxu0 %v484
    %3029 = vmatpush1.msra.mxu0 %v481
    %3030 = vmatprep.subr.mxu0 0.0
    %3031 = vmatpush1.msra.mxu0 0.0
    %3032 = vmatprep.subr.mxu0 0.0
    %3033 = vmatpush1.msra.mxu0 0.0
    %3034 = vmatprep.subr.mxu0 0.0
    %3035 = vmatpush1.msra.mxu0 0.0
    %3036 = vmatprep.subr.mxu0 0.0
    %3037 = vmatpush1.msra.mxu0 0.0
    %3038 = vmatprep.subr.mxu0 0.0
    %3039 = vmatpush1.msra.mxu0 0.0
    %3040 = vmatprep.subr.mxu0 0.0
    %3041 = vmatpush1.msra.mxu0 0.0
    %3042 = vmatprep.subr.mxu0 0.0
    %3043 = vmatpush1.msra.mxu0 0.0
    %3044 = vmatprep.subr.mxu0 0.0
    %3045 = vmatpush1.msra.mxu0 0.0
    %3046 = vmatprep.subr.mxu0 0.0
    %3047 = vmatpush1.msra.mxu0 0.0
    %3048 = vmatprep.subr.mxu0 0.0
    %3049 = vmatpush1.msra.mxu0 0.0
    %3050 = vmatprep.subr.mxu0 0.0
    %3051 = vmatpush1.msra.mxu0 0.0
    %3052 = vmatprep.subr.mxu0 0.0
    %3053 = vmatpush1.msra.mxu0 0.0
    %3054 = vmatprep.subr.mxu0 0.0
    %3055 = vmatpush1.msra.mxu0 0.0
    %3056 = vmatprep.subr.mxu0 0.0
    %3057 = vmatpush1.msra.mxu0 0.0
    %3058 = vmatprep.subr.mxu0 0.0
    %3059 = vmatpush1.msra.mxu0 0.0
    %3060 = vmatprep.subr.mxu0 0.0
    %3061 = vmatpush1.msra.mxu0 0.0
    %3062 = vmatprep.subr.mxu0 0.0
    %3063 = vmatpush1.msra.mxu0 0.0
    %3064 = vmatprep.subr.mxu0 0.0
    %3065 = vmatpush1.msra.mxu0 0.0
    %3066 = vmatprep.subr.mxu0 0.0
    %3067 = vmatpush1.msra.mxu0 0.0
    %3068 = vmatprep.subr.mxu0 0.0
    %3069 = vmatpush1.msra.mxu0 0.0
    %3070 = vmatprep.subr.mxu0 0.0
    %3071 = vmatpush1.msra.mxu0 0.0
    %3072 = vmatprep.subr.mxu0 0.0
    %3073 = vmatpush1.msra.mxu0 0.0
    %3074 = vmatprep.subr.mxu0 0.0
    %3075 = vmatpush1.msra.mxu0 0.0
    %3076 = vmatprep.subr.mxu0 0.0
    %3077 = vmatpush1.msra.mxu0 0.0
    %3078 = vmatprep.subr.mxu0 0.0
    %3079 = vmatpush1.msra.mxu0 0.0
    %3080 = vmatprep.subr.mxu0 0.0
    %3081 = vmatpush1.msra.mxu0 0.0
    %3082 = vmatprep.subr.mxu0 0.0
    %3083 = vmatpush1.msra.mxu0 0.0
    %3084 = vmatprep.subr.mxu0 0.0
    %3085 = vmatpush1.msra.mxu0 0.0
    %3086 = vmatprep.subr.mxu0 0.0
    %3087 = vmatpush1.msra.mxu0 0.0
    %3088 = vmatprep.subr.mxu0 0.0
    %3089 = vmatpush1.msra.mxu0 0.0
    %3090 = vmatprep.mubr.f32.mxu0 0.0
    %3091 = vmatmul.mubr.f32.gmra.mrb[0].mxu0 %v3024
    %v3092 = vpop.f32.mrb[0].mxu0
    %v3093 = vadd.f32 0.0, %v3092
    %v3094 = vpop.f32.mrb[0].mxu0
    %v3095 = vadd.f32 0.0, %v3094
    %3096 = vdwg.mxu0
    %3097 = vmatprep.subr.mxu0 %v475
    %3098 = vmatpush1.msra.mxu0 %v474
    %3099 = vmatprep.subr.mxu0 %v490
    %3100 = vmatpush1.msra.mxu0 %v487
    %3101 = vmatprep.subr.mxu0 0.0
    %3102 = vmatpush1.msra.mxu0 0.0
    %3103 = vmatprep.subr.mxu0 0.0
    %3104 = vmatpush1.msra.mxu0 0.0
    %3105 = vmatprep.subr.mxu0 0.0
    %3106 = vmatpush1.msra.mxu0 0.0
    %3107 = vmatprep.subr.mxu0 0.0
    %3108 = vmatpush1.msra.mxu0 0.0
    %3109 = vmatprep.subr.mxu0 0.0
    %3110 = vmatpush1.msra.mxu0 0.0
    %3111 = vmatprep.subr.mxu0 0.0
    %3112 = vmatpush1.msra.mxu0 0.0
    %3113 = vmatprep.subr.mxu0 0.0
    %3114 = vmatpush1.msra.mxu0 0.0
    %3115 = vmatprep.subr.mxu0 0.0
    %3116 = vmatpush1.msra.mxu0 0.0
    %3117 = vmatprep.subr.mxu0 0.0
    %3118 = vmatpush1.msra.mxu0 0.0
    %3119 = vmatprep.subr.mxu0 0.0
    %3120 = vmatpush1.msra.mxu0 0.0
    %3121 = vmatprep.subr.mxu0 0.0
    %3122 = vmatpush1.msra.mxu0 0.0
    %3123 = vmatprep.subr.mxu0 0.0
    %3124 = vmatpush1.msra.mxu0 0.0
    %3125 = vmatprep.subr.mxu0 0.0
    %3126 = vmatpush1.msra.mxu0 0.0
    %3127 = vmatprep.subr.mxu0 0.0
    %3128 = vmatpush1.msra.mxu0 0.0
    %3129 = vmatprep.subr.mxu0 0.0
    %3130 = vmatpush1.msra.mxu0 0.0
    %3131 = vmatprep.subr.mxu0 0.0
    %3132 = vmatpush1.msra.mxu0 0.0
    %3133 = vmatprep.subr.mxu0 0.0
    %3134 = vmatpush1.msra.mxu0 0.0
    %3135 = vmatprep.subr.mxu0 0.0
    %3136 = vmatpush1.msra.mxu0 0.0
    %3137 = vmatprep.subr.mxu0 0.0
    %3138 = vmatpush1.msra.mxu0 0.0
    %3139 = vmatprep.subr.mxu0 0.0
    %3140 = vmatpush1.msra.mxu0 0.0
    %3141 = vmatprep.subr.mxu0 0.0
    %3142 = vmatpush1.msra.mxu0 0.0
    %3143 = vmatprep.subr.mxu0 0.0
    %3144 = vmatpush1.msra.mxu0 0.0
    %3145 = vmatprep.subr.mxu0 0.0
    %3146 = vmatpush1.msra.mxu0 0.0
    %3147 = vmatprep.subr.mxu0 0.0
    %3148 = vmatpush1.msra.mxu0 0.0
    %3149 = vmatprep.subr.mxu0 0.0
    %3150 = vmatpush1.msra.mxu0 0.0
    %3151 = vmatprep.subr.mxu0 0.0
    %3152 = vmatpush1.msra.mxu0 0.0
    %3153 = vmatprep.subr.mxu0 0.0
    %3154 = vmatpush1.msra.mxu0 0.0
    %3155 = vmatprep.subr.mxu0 0.0
    %3156 = vmatpush1.msra.mxu0 0.0
    %3157 = vmatprep.subr.mxu0 0.0
    %3158 = vmatpush1.msra.mxu0 0.0
    %3159 = vmatprep.subr.mxu0 0.0
    %3160 = vmatpush1.msra.mxu0 0.0
    %3161 = vmatprep.mubr.f32.mxu0 0.0
    %3162 = vmatmul.mubr.f32.gmra.mrb[0].mxu0 %v3024
    %v3163 = vpop.f32.mrb[0].mxu0
    %v3164 = vadd.f32 0.0, %v3163
    %v3165 = vpop.f32.mrb[0].mxu0
    %v3166 = vadd.f32 0.0, %v3165
    %3167 = vdwg.mxu0
    %v3169 = vsel %vm277, %v3022, 0
    %3171 = vmatprep.subr.mxu0 %v465
    %3172 = vmatpush1.msra.mxu0 %v464
    %3173 = vmatprep.subr.mxu0 %v641
    %3174 = vmatpush1.msra.mxu0 %v638
    %3175 = vmatprep.subr.mxu0 0.0
    %3176 = vmatpush1.msra.mxu0 0.0
    %3177 = vmatprep.subr.mxu0 0.0
    %3178 = vmatpush1.msra.mxu0 0.0
    %3179 = vmatprep.subr.mxu0 0.0
    %3180 = vmatpush1.msra.mxu0 0.0
    %3181 = vmatprep.subr.mxu0 0.0
    %3182 = vmatpush1.msra.mxu0 0.0
    %3183 = vmatprep.subr.mxu0 0.0
    %3184 = vmatpush1.msra.mxu0 0.0
    %3185 = vmatprep.subr.mxu0 0.0
    %3186 = vmatpush1.msra.mxu0 0.0
    %3187 = vmatprep.subr.mxu0 0.0
    %3188 = vmatpush1.msra.mxu0 0.0
    %3189 = vmatprep.subr.mxu0 0.0
    %3190 = vmatpush1.msra.mxu0 0.0
    %3191 = vmatprep.subr.mxu0 0.0
    %3192 = vmatpush1.msra.mxu0 0.0
    %3193 = vmatprep.subr.mxu0 0.0
    %3194 = vmatpush1.msra.mxu0 0.0
    %3195 = vmatprep.subr.mxu0 0.0
    %3196 = vmatpush1.msra.mxu0 0.0
    %3197 = vmatprep.subr.mxu0 0.0
    %3198 = vmatpush1.msra.mxu0 0.0
    %3199 = vmatprep.subr.mxu0 0.0
    %3200 = vmatpush1.msra.mxu0 0.0
    %3201 = vmatprep.subr.mxu0 0.0
    %3202 = vmatpush1.msra.mxu0 0.0
    %3203 = vmatprep.subr.mxu0 0.0
    %3204 = vmatpush1.msra.mxu0 0.0
    %3205 = vmatprep.subr.mxu0 0.0
    %3206 = vmatpush1.msra.mxu0 0.0
    %3207 = vmatprep.subr.mxu0 0.0
    %3208 = vmatpush1.msra.mxu0 0.0
    %3209 = vmatprep.subr.mxu0 0.0
    %3210 = vmatpush1.msra.mxu0 0.0
    %3211 = vmatprep.subr.mxu0 0.0
    %3212 = vmatpush1.msra.mxu0 0.0
    %3213 = vmatprep.subr.mxu0 0.0
    %3214 = vmatpush1.msra.mxu0 0.0
    %3215 = vmatprep.subr.mxu0 0.0
    %3216 = vmatpush1.msra.mxu0 0.0
    %3217 = vmatprep.subr.mxu0 0.0
    %3218 = vmatpush1.msra.mxu0 0.0
    %3219 = vmatprep.subr.mxu0 0.0
    %3220 = vmatpush1.msra.mxu0 0.0
    %3221 = vmatprep.subr.mxu0 0.0
    %3222 = vmatpush1.msra.mxu0 0.0
    %3223 = vmatprep.subr.mxu0 0.0
    %3224 = vmatpush1.msra.mxu0 0.0
    %3225 = vmatprep.subr.mxu0 0.0
    %3226 = vmatpush1.msra.mxu0 0.0
    %3227 = vmatprep.subr.mxu0 0.0
    %3228 = vmatpush1.msra.mxu0 0.0
    %3229 = vmatprep.subr.mxu0 0.0
    %3230 = vmatpush1.msra.mxu0 0.0
    %3231 = vmatprep.subr.mxu0 0.0
    %3232 = vmatpush1.msra.mxu0 0.0
    %3233 = vmatprep.subr.mxu0 0.0
    %3234 = vmatpush1.msra.mxu0 0.0
    %3235 = vmatprep.mubr.f32.mxu0 0.0
    %3236 = vmatmul.mubr.f32.gmra.mrb[0].mxu0 %v3169
    %v3237 = vpop.f32.mrb[0].mxu0
    %v3238 = vadd.f32 %v3093, %v3237
    %v3239 = vpop.f32.mrb[0].mxu0
    %v3240 = vadd.f32 %v3095, %v3239
    %3241 = vdwg.mxu0
    %3242 = vmatprep.subr.mxu0 %v467
    %3243 = vmatpush1.msra.mxu0 %v466
    %3244 = vmatprep.subr.mxu0 %v647
    %3245 = vmatpush1.msra.mxu0 %v644
    %3246 = vmatprep.subr.mxu0 0.0
    %3247 = vmatpush1.msra.mxu0 0.0
    %3248 = vmatprep.subr.mxu0 0.0
    %3249 = vmatpush1.msra.mxu0 0.0
    %3250 = vmatprep.subr.mxu0 0.0
    %3251 = vmatpush1.msra.mxu0 0.0
    %3252 = vmatprep.subr.mxu0 0.0
    %3253 = vmatpush1.msra.mxu0 0.0
    %3254 = vmatprep.subr.mxu0 0.0
    %3255 = vmatpush1.msra.mxu0 0.0
    %3256 = vmatprep.subr.mxu0 0.0
    %3257 = vmatpush1.msra.mxu0 0.0
    %3258 = vmatprep.subr.mxu0 0.0
    %3259 = vmatpush1.msra.mxu0 0.0
    %3260 = vmatprep.subr.mxu0 0.0
    %3261 = vmatpush1.msra.mxu0 0.0
    %3262 = vmatprep.subr.mxu0 0.0
    %3263 = vmatpush1.msra.mxu0 0.0
    %3264 = vmatprep.subr.mxu0 0.0
    %3265 = vmatpush1.msra.mxu0 0.0
    %3266 = vmatprep.subr.mxu0 0.0
    %3267 = vmatpush1.msra.mxu0 0.0
    %3268 = vmatprep.subr.mxu0 0.0
    %3269 = vmatpush1.msra.mxu0 0.0
    %3270 = vmatprep.subr.mxu0 0.0
    %3271 = vmatpush1.msra.mxu0 0.0
    %3272 = vmatprep.subr.mxu0 0.0
    %3273 = vmatpush1.msra.mxu0 0.0
    %3274 = vmatprep.subr.mxu0 0.0
    %3275 = vmatpush1.msra.mxu0 0.0
    %3276 = vmatprep.subr.mxu0 0.0
    %3277 = vmatpush1.msra.mxu0 0.0
    %3278 = vmatprep.subr.mxu0 0.0
    %3279 = vmatpush1.msra.mxu0 0.0
    %3280 = vmatprep.subr.mxu0 0.0
    %3281 = vmatpush1.msra.mxu0 0.0
    %3282 = vmatprep.subr.mxu0 0.0
    %3283 = vmatpush1.msra.mxu0 0.0
    %3284 = vmatprep.subr.mxu0 0.0
    %3285 = vmatpush1.msra.mxu0 0.0
    %3286 = vmatprep.subr.mxu0 0.0
    %3287 = vmatpush1.msra.mxu0 0.0
    %3288 = vmatprep.subr.mxu0 0.0
    %3289 = vmatpush1.msra.mxu0 0.0
    %3290 = vmatprep.subr.mxu0 0.0
    %3291 = vmatpush1.msra.mxu0 0.0
    %3292 = vmatprep.subr.mxu0 0.0
    %3293 = vmatpush1.msra.mxu0 0.0
    %3294 = vmatprep.subr.mxu0 0.0
    %3295 = vmatpush1.msra.mxu0 0.0
    %3296 = vmatprep.subr.mxu0 0.0
    %3297 = vmatpush1.msra.mxu0 0.0
    %3298 = vmatprep.subr.mxu0 0.0
    %3299 = vmatpush1.msra.mxu0 0.0
    %3300 = vmatprep.subr.mxu0 0.0
    %3301 = vmatpush1.msra.mxu0 0.0
    %3302 = vmatprep.subr.mxu0 0.0
    %3303 = vmatpush1.msra.mxu0 0.0
    %3304 = vmatprep.subr.mxu0 0.0
    %3305 = vmatpush1.msra.mxu0 0.0
    %3306 = vmatprep.mubr.f32.mxu0 0.0
    %3307 = vmatmul.mubr.f32.gmra.mrb[0].mxu0 %v3169
    %v3308 = vpop.f32.mrb[0].mxu0
    %v3309 = vadd.f32 %v3164, %v3308
    %v3310 = vpop.f32.mrb[0].mxu0
    %v3311 = vadd.f32 %v3166, %v3310
    %3312 = vdwg.mxu0
    %v3313 = vadd.f32 %v3238, %v796
    %v3314 = vadd.f32 %v3240, %v800
    %v3315 = vadd.f32 %v3309, %v804
    %v3316 = vadd.f32 %v3311, %v808
    %v3317 = vxor.u32 %v3313, 2147483648
    %v3318 = vmul.f32 %v3317, 1.442695
    %v3319 = vpow.pop %v3318
    %v3320 = vadd.f32 %v3319, 1.0
    %v3321 = vrcp.pop %v3320
    %v3322 = vmul.f32 1.0, %v3321
    %v3323 = vxor.u32 %v3314, 2147483648
    %v3324 = vmul.f32 %v3323, 1.442695
    %v3325 = vpow.pop %v3324
    %v3326 = vadd.f32 %v3325, 1.0
    %v3327 = vrcp.pop %v3326
    %v3328 = vmul.f32 1.0, %v3327
    %v3329 = vtanh.pop %v3315
    %v3330 = vxor.u32 %v3316, 2147483648
    %v3331 = vmul.f32 %v3330, 1.442695
    %v3332 = vpow.pop %v3331
    %v3333 = vadd.f32 %v3332, 1.0
    %v3334 = vrcp.pop %v3333
    %v3335 = vmul.f32 1.0, %v3334
    %v3336 = vmul.f32 %v3328, %v2838
    %v3337 = vmul.f32 %v3322, %v3329
    %v3338 = vadd.f32 %v3336, %v3337
    %v3339 = vtanh.pop %v3338
    %v3340 = vmul.f32 %v3335, %v3339
    %3341 = vset.pattern.permute.xlu0 6
    %3342 = vperm.xlu0 %3341, %v211
    %v3343 = vpop.permute.xlu0 %3342
    %v3345 = vmul.f32 %v3343, %v223
    %v3346 = vmul.f32 %v3343, %v227
    %v3347 = vmul.f32 %v3343, %v231
    %v3348 = vmul.f32 %v3343, %v235
    %v3349 = vadd.f32 %v3345, %v248
    %v3350 = vadd.f32 %v3346, %v252
    %v3351 = vadd.f32 %v3347, %v256
    %v3352 = vadd.f32 %v3348, %v260
    %3353 = vmatprep.subr.mxu0 %v270
    %3354 = vmatpush1.msra.mxu0 %v269
    %3355 = vmatprep.subr.mxu0 %v286
    %3356 = vmatpush1.msra.mxu0 %v283
    %3357 = vmatprep.subr.mxu0 0.0
    %3358 = vmatpush1.msra.mxu0 0.0
    %3359 = vmatprep.subr.mxu0 0.0
    %3360 = vmatpush1.msra.mxu0 0.0
    %3361 = vmatprep.subr.mxu0 0.0
    %3362 = vmatpush1.msra.mxu0 0.0
    %3363 = vmatprep.subr.mxu0 0.0
    %3364 = vmatpush1.msra.mxu0 0.0
    %3365 = vmatprep.subr.mxu0 0.0
    %3366 = vmatpush1.msra.mxu0 0.0
    %3367 = vmatprep.subr.mxu0 0.0
    %3368 = vmatpush1.msra.mxu0 0.0
    %3369 = vmatprep.subr.mxu0 0.0
    %3370 = vmatpush1.msra.mxu0 0.0
    %3371 = vmatprep.subr.mxu0 0.0
    %3372 = vmatpush1.msra.mxu0 0.0
    %3373 = vmatprep.subr.mxu0 0.0
    %3374 = vmatpush1.msra.mxu0 0.0
    %3375 = vmatprep.subr.mxu0 0.0
    %3376 = vmatpush1.msra.mxu0 0.0
    %3377 = vmatprep.subr.mxu0 0.0
    %3378 = vmatpush1.msra.mxu0 0.0
    %3379 = vmatprep.subr.mxu0 0.0
    %3380 = vmatpush1.msra.mxu0 0.0
    %3381 = vmatprep.subr.mxu0 0.0
    %3382 = vmatpush1.msra.mxu0 0.0
    %3383 = vmatprep.subr.mxu0 0.0
    %3384 = vmatpush1.msra.mxu0 0.0
    %3385 = vmatprep.subr.mxu0 0.0
    %3386 = vmatpush1.msra.mxu0 0.0
    %3387 = vmatprep.subr.mxu0 0.0
    %3388 = vmatpush1.msra.mxu0 0.0
    %3389 = vmatprep.subr.mxu0 0.0
    %3390 = vmatpush1.msra.mxu0 0.0
    %3391 = vmatprep.subr.mxu0 0.0
    %3392 = vmatpush1.msra.mxu0 0.0
    %3393 = vmatprep.subr.mxu0 0.0
    %3394 = vmatpush1.msra.mxu0 0.0
    %3395 = vmatprep.subr.mxu0 0.0
    %3396 = vmatpush1.msra.mxu0 0.0
    %3397 = vmatprep.subr.mxu0 0.0
    %3398 = vmatpush1.msra.mxu0 0.0
    %3399 = vmatprep.subr.mxu0 0.0
    %3400 = vmatpush1.msra.mxu0 0.0
    %3401 = vmatprep.subr.mxu0 0.0
    %3402 = vmatpush1.msra.mxu0 0.0
    %3403 = vmatprep.subr.mxu0 0.0
    %3404 = vmatpush1.msra.mxu0 0.0
    %3405 = vmatprep.subr.mxu0 0.0
    %3406 = vmatpush1.msra.mxu0 0.0
    %3407 = vmatprep.subr.mxu0 0.0
    %3408 = vmatpush1.msra.mxu0 0.0
    %3409 = vmatprep.subr.mxu0 0.0
    %3410 = vmatpush1.msra.mxu0 0.0
    %3411 = vmatprep.subr.mxu0 0.0
    %3412 = vmatpush1.msra.mxu0 0.0
    %3413 = vmatprep.subr.mxu0 0.0
    %3414 = vmatpush1.msra.mxu0 0.0
    %3415 = vmatprep.subr.mxu0 0.0
    %3416 = vmatpush1.msra.mxu0 0.0
    %3417 = vmatprep.mubr.f32.mxu0 0.0
    %3418 = vmatmul.mubr.f32.gmra.mrb[0].mxu0 %v3169
    %v3419 = vpop.f32.mrb[0].mxu0
    %v3420 = vadd.f32 0.0, %v3419
    %v3421 = vpop.f32.mrb[0].mxu0
    %v3422 = vadd.f32 0.0, %v3421
    %3423 = vdwg.mxu0
    %3424 = vmatprep.subr.mxu0 %v272
    %3425 = vmatpush1.msra.mxu0 %v271
    %3426 = vmatprep.subr.mxu0 %v292
    %3427 = vmatpush1.msra.mxu0 %v289
    %3428 = vmatprep.subr.mxu0 0.0
    %3429 = vmatpush1.msra.mxu0 0.0
    %3430 = vmatprep.subr.mxu0 0.0
    %3431 = vmatpush1.msra.mxu0 0.0
    %3432 = vmatprep.subr.mxu0 0.0
    %3433 = vmatpush1.msra.mxu0 0.0
    %3434 = vmatprep.subr.mxu0 0.0
    %3435 = vmatpush1.msra.mxu0 0.0
    %3436 = vmatprep.subr.mxu0 0.0
    %3437 = vmatpush1.msra.mxu0 0.0
    %3438 = vmatprep.subr.mxu0 0.0
    %3439 = vmatpush1.msra.mxu0 0.0
    %3440 = vmatprep.subr.mxu0 0.0
    %3441 = vmatpush1.msra.mxu0 0.0
    %3442 = vmatprep.subr.mxu0 0.0
    %3443 = vmatpush1.msra.mxu0 0.0
    %3444 = vmatprep.subr.mxu0 0.0
    %3445 = vmatpush1.msra.mxu0 0.0
    %3446 = vmatprep.subr.mxu0 0.0
    %3447 = vmatpush1.msra.mxu0 0.0
    %3448 = vmatprep.subr.mxu0 0.0
    %3449 = vmatpush1.msra.mxu0 0.0
    %3450 = vmatprep.subr.mxu0 0.0
    %3451 = vmatpush1.msra.mxu0 0.0
    %3452 = vmatprep.subr.mxu0 0.0
    %3453 = vmatpush1.msra.mxu0 0.0
    %3454 = vmatprep.subr.mxu0 0.0
    %3455 = vmatpush1.msra.mxu0 0.0
    %3456 = vmatprep.subr.mxu0 0.0
    %3457 = vmatpush1.msra.mxu0 0.0
    %3458 = vmatprep.subr.mxu0 0.0
    %3459 = vmatpush1.msra.mxu0 0.0
    %3460 = vmatprep.subr.mxu0 0.0
    %3461 = vmatpush1.msra.mxu0 0.0
    %3462 = vmatprep.subr.mxu0 0.0
    %3463 = vmatpush1.msra.mxu0 0.0
    %3464 = vmatprep.subr.mxu0 0.0
    %3465 = vmatpush1.msra.mxu0 0.0
    %3466 = vmatprep.subr.mxu0 0.0
    %3467 = vmatpush1.msra.mxu0 0.0
    %3468 = vmatprep.subr.mxu0 0.0
    %3469 = vmatpush1.msra.mxu0 0.0
    %3470 = vmatprep.subr.mxu0 0.0
    %3471 = vmatpush1.msra.mxu0 0.0
    %3472 = vmatprep.subr.mxu0 0.0
    %3473 = vmatpush1.msra.mxu0 0.0
    %3474 = vmatprep.subr.mxu0 0.0
    %3475 = vmatpush1.msra.mxu0 0.0
    %3476 = vmatprep.subr.mxu0 0.0
    %3477 = vmatpush1.msra.mxu0 0.0
    %3478 = vmatprep.subr.mxu0 0.0
    %3479 = vmatpush1.msra.mxu0 0.0
    %3480 = vmatprep.subr.mxu0 0.0
    %3481 = vmatpush1.msra.mxu0 0.0
    %3482 = vmatprep.subr.mxu0 0.0
    %3483 = vmatpush1.msra.mxu0 0.0
    %3484 = vmatprep.subr.mxu0 0.0
    %3485 = vmatpush1.msra.mxu0 0.0
    %3486 = vmatprep.subr.mxu0 0.0
    %3487 = vmatpush1.msra.mxu0 0.0
    %3488 = vmatprep.mubr.f32.mxu0 0.0
    %3489 = vmatmul.mubr.f32.gmra.mrb[0].mxu0 %v3169
    %v3490 = vpop.f32.mrb[0].mxu0
    %v3491 = vadd.f32 0.0, %v3490
    %v3492 = vpop.f32.mrb[0].mxu0
    %v3493 = vadd.f32 0.0, %v3492
    %3494 = vdwg.mxu0
    %v3495 = vadd.f32 %v3349, %v3420
    %v3496 = vadd.f32 %v3350, %v3422
    %v3497 = vadd.f32 %v3351, %v3491
    %v3498 = vadd.f32 %v3352, %v3493
    %v3499 = vxor.u32 %v3495, 2147483648
    %v3500 = vmul.f32 %v3499, 1.442695
    %v3501 = vpow.pop %v3500
    %v3502 = vadd.f32 %v3501, 1.0
    %v3503 = vrcp.pop %v3502
    %v3504 = vmul.f32 1.0, %v3503
    %v3505 = vxor.u32 %v3496, 2147483648
    %v3506 = vmul.f32 %v3505, 1.442695
    %v3507 = vpow.pop %v3506
    %v3508 = vadd.f32 %v3507, 1.0
    %v3509 = vrcp.pop %v3508
    %v3510 = vmul.f32 1.0, %v3509
    %v3511 = vtanh.pop %v3497
    %v3512 = vxor.u32 %v3498, 2147483648
    %v3513 = vmul.f32 %v3512, 1.442695
    %v3514 = vpow.pop %v3513
    %v3515 = vadd.f32 %v3514, 1.0
    %v3516 = vrcp.pop %v3515
    %v3517 = vmul.f32 1.0, %v3516
    %v3518 = vmul.f32 %v3510, %v3020
    %v3519 = vmul.f32 %v3504, %v3511
    %v3520 = vadd.f32 %v3518, %v3519
    %v3521 = vtanh.pop %v3520
    %v3522 = vmul.f32 %v3517, %v3521
    %v3524 = vsel %vm277, %v3340, 0
    %3526 = vmatprep.subr.mxu0 %v473
    %3527 = vmatpush1.msra.mxu0 %v472
    %3528 = vmatprep.subr.mxu0 %v484
    %3529 = vmatpush1.msra.mxu0 %v481
    %3530 = vmatprep.subr.mxu0 0.0
    %3531 = vmatpush1.msra.mxu0 0.0
    %3532 = vmatprep.subr.mxu0 0.0
    %3533 = vmatpush1.msra.mxu0 0.0
    %3534 = vmatprep.subr.mxu0 0.0
    %3535 = vmatpush1.msra.mxu0 0.0
    %3536 = vmatprep.subr.mxu0 0.0
    %3537 = vmatpush1.msra.mxu0 0.0
    %3538 = vmatprep.subr.mxu0 0.0
    %3539 = vmatpush1.msra.mxu0 0.0
    %3540 = vmatprep.subr.mxu0 0.0
    %3541 = vmatpush1.msra.mxu0 0.0
    %3542 = vmatprep.subr.mxu0 0.0
    %3543 = vmatpush1.msra.mxu0 0.0
    %3544 = vmatprep.subr.mxu0 0.0
    %3545 = vmatpush1.msra.mxu0 0.0
    %3546 = vmatprep.subr.mxu0 0.0
    %3547 = vmatpush1.msra.mxu0 0.0
    %3548 = vmatprep.subr.mxu0 0.0
    %3549 = vmatpush1.msra.mxu0 0.0
    %3550 = vmatprep.subr.mxu0 0.0
    %3551 = vmatpush1.msra.mxu0 0.0
    %3552 = vmatprep.subr.mxu0 0.0
    %3553 = vmatpush1.msra.mxu0 0.0
    %3554 = vmatprep.subr.mxu0 0.0
    %3555 = vmatpush1.msra.mxu0 0.0
    %3556 = vmatprep.subr.mxu0 0.0
    %3557 = vmatpush1.msra.mxu0 0.0
    %3558 = vmatprep.subr.mxu0 0.0
    %3559 = vmatpush1.msra.mxu0 0.0
    %3560 = vmatprep.subr.mxu0 0.0
    %3561 = vmatpush1.msra.mxu0 0.0
    %3562 = vmatprep.subr.mxu0 0.0
    %3563 = vmatpush1.msra.mxu0 0.0
    %3564 = vmatprep.subr.mxu0 0.0
    %3565 = vmatpush1.msra.mxu0 0.0
    %3566 = vmatprep.subr.mxu0 0.0
    %3567 = vmatpush1.msra.mxu0 0.0
    %3568 = vmatprep.subr.mxu0 0.0
    %3569 = vmatpush1.msra.mxu0 0.0
    %3570 = vmatprep.subr.mxu0 0.0
    %3571 = vmatpush1.msra.mxu0 0.0
    %3572 = vmatprep.subr.mxu0 0.0
    %3573 = vmatpush1.msra.mxu0 0.0
    %3574 = vmatprep.subr.mxu0 0.0
    %3575 = vmatpush1.msra.mxu0 0.0
    %3576 = vmatprep.subr.mxu0 0.0
    %3577 = vmatpush1.msra.mxu0 0.0
    %3578 = vmatprep.subr.mxu0 0.0
    %3579 = vmatpush1.msra.mxu0 0.0
    %3580 = vmatprep.subr.mxu0 0.0
    %3581 = vmatpush1.msra.mxu0 0.0
    %3582 = vmatprep.subr.mxu0 0.0
    %3583 = vmatpush1.msra.mxu0 0.0
    %3584 = vmatprep.subr.mxu0 0.0
    %3585 = vmatpush1.msra.mxu0 0.0
    %3586 = vmatprep.subr.mxu0 0.0
    %3587 = vmatpush1.msra.mxu0 0.0
    %3588 = vmatprep.subr.mxu0 0.0
    %3589 = vmatpush1.msra.mxu0 0.0
    %3590 = vmatprep.mubr.f32.mxu0 0.0
    %3591 = vmatmul.mubr.f32.gmra.mrb[0].mxu0 %v3524
    %v3592 = vpop.f32.mrb[0].mxu0
    %v3593 = vadd.f32 0.0, %v3592
    %v3594 = vpop.f32.mrb[0].mxu0
    %v3595 = vadd.f32 0.0, %v3594
    %3596 = vdwg.mxu0
    %3597 = vmatprep.subr.mxu0 %v475
    %3598 = vmatpush1.msra.mxu0 %v474
    %3599 = vmatprep.subr.mxu0 %v490
    %3600 = vmatpush1.msra.mxu0 %v487
    %3601 = vmatprep.subr.mxu0 0.0
    %3602 = vmatpush1.msra.mxu0 0.0
    %3603 = vmatprep.subr.mxu0 0.0
    %3604 = vmatpush1.msra.mxu0 0.0
    %3605 = vmatprep.subr.mxu0 0.0
    %3606 = vmatpush1.msra.mxu0 0.0
    %3607 = vmatprep.subr.mxu0 0.0
    %3608 = vmatpush1.msra.mxu0 0.0
    %3609 = vmatprep.subr.mxu0 0.0
    %3610 = vmatpush1.msra.mxu0 0.0
    %3611 = vmatprep.subr.mxu0 0.0
    %3612 = vmatpush1.msra.mxu0 0.0
    %3613 = vmatprep.subr.mxu0 0.0
    %3614 = vmatpush1.msra.mxu0 0.0
    %3615 = vmatprep.subr.mxu0 0.0
    %3616 = vmatpush1.msra.mxu0 0.0
    %3617 = vmatprep.subr.mxu0 0.0
    %3618 = vmatpush1.msra.mxu0 0.0
    %3619 = vmatprep.subr.mxu0 0.0
    %3620 = vmatpush1.msra.mxu0 0.0
    %3621 = vmatprep.subr.mxu0 0.0
    %3622 = vmatpush1.msra.mxu0 0.0
    %3623 = vmatprep.subr.mxu0 0.0
    %3624 = vmatpush1.msra.mxu0 0.0
    %3625 = vmatprep.subr.mxu0 0.0
    %3626 = vmatpush1.msra.mxu0 0.0
    %3627 = vmatprep.subr.mxu0 0.0
    %3628 = vmatpush1.msra.mxu0 0.0
    %3629 = vmatprep.subr.mxu0 0.0
    %3630 = vmatpush1.msra.mxu0 0.0
    %3631 = vmatprep.subr.mxu0 0.0
    %3632 = vmatpush1.msra.mxu0 0.0
    %3633 = vmatprep.subr.mxu0 0.0
    %3634 = vmatpush1.msra.mxu0 0.0
    %3635 = vmatprep.subr.mxu0 0.0
    %3636 = vmatpush1.msra.mxu0 0.0
    %3637 = vmatprep.subr.mxu0 0.0
    %3638 = vmatpush1.msra.mxu0 0.0
    %3639 = vmatprep.subr.mxu0 0.0
    %3640 = vmatpush1.msra.mxu0 0.0
    %3641 = vmatprep.subr.mxu0 0.0
    %3642 = vmatpush1.msra.mxu0 0.0
    %3643 = vmatprep.subr.mxu0 0.0
    %3644 = vmatpush1.msra.mxu0 0.0
    %3645 = vmatprep.subr.mxu0 0.0
    %3646 = vmatpush1.msra.mxu0 0.0
    %3647 = vmatprep.subr.mxu0 0.0
    %3648 = vmatpush1.msra.mxu0 0.0
    %3649 = vmatprep.subr.mxu0 0.0
    %3650 = vmatpush1.msra.mxu0 0.0
    %3651 = vmatprep.subr.mxu0 0.0
    %3652 = vmatpush1.msra.mxu0 0.0
    %3653 = vmatprep.subr.mxu0 0.0
    %3654 = vmatpush1.msra.mxu0 0.0
    %3655 = vmatprep.subr.mxu0 0.0
    %3656 = vmatpush1.msra.mxu0 0.0
    %3657 = vmatprep.subr.mxu0 0.0
    %3658 = vmatpush1.msra.mxu0 0.0
    %3659 = vmatprep.subr.mxu0 0.0
    %3660 = vmatpush1.msra.mxu0 0.0
    %3661 = vmatprep.mubr.f32.mxu0 0.0
    %3662 = vmatmul.mubr.f32.gmra.mrb[0].mxu0 %v3524
    %v3663 = vpop.f32.mrb[0].mxu0
    %v3664 = vadd.f32 0.0, %v3663
    %v3665 = vpop.f32.mrb[0].mxu0
    %v3666 = vadd.f32 0.0, %v3665
    %3667 = vdwg.mxu0
    %v3669 = vsel %vm277, %v3522, 0
    %3671 = vmatprep.subr.mxu0 %v465
    %3672 = vmatpush1.msra.mxu0 %v464
    %3673 = vmatprep.subr.mxu0 %v641
    %3674 = vmatpush1.msra.mxu0 %v638
    %3675 = vmatprep.subr.mxu0 0.0
    %3676 = vmatpush1.msra.mxu0 0.0
    %3677 = vmatprep.subr.mxu0 0.0
    %3678 = vmatpush1.msra.mxu0 0.0
    %3679 = vmatprep.subr.mxu0 0.0
    %3680 = vmatpush1.msra.mxu0 0.0
    %3681 = vmatprep.subr.mxu0 0.0
    %3682 = vmatpush1.msra.mxu0 0.0
    %3683 = vmatprep.subr.mxu0 0.0
    %3684 = vmatpush1.msra.mxu0 0.0
    %3685 = vmatprep.subr.mxu0 0.0
    %3686 = vmatpush1.msra.mxu0 0.0
    %3687 = vmatprep.subr.mxu0 0.0
    %3688 = vmatpush1.msra.mxu0 0.0
    %3689 = vmatprep.subr.mxu0 0.0
    %3690 = vmatpush1.msra.mxu0 0.0
    %3691 = vmatprep.subr.mxu0 0.0
    %3692 = vmatpush1.msra.mxu0 0.0
    %3693 = vmatprep.subr.mxu0 0.0
    %3694 = vmatpush1.msra.mxu0 0.0
    %3695 = vmatprep.subr.mxu0 0.0
    %3696 = vmatpush1.msra.mxu0 0.0
    %3697 = vmatprep.subr.mxu0 0.0
    %3698 = vmatpush1.msra.mxu0 0.0
    %3699 = vmatprep.subr.mxu0 0.0
    %3700 = vmatpush1.msra.mxu0 0.0
    %3701 = vmatprep.subr.mxu0 0.0
    %3702 = vmatpush1.msra.mxu0 0.0
    %3703 = vmatprep.subr.mxu0 0.0
    %3704 = vmatpush1.msra.mxu0 0.0
    %3705 = vmatprep.subr.mxu0 0.0
    %3706 = vmatpush1.msra.mxu0 0.0
    %3707 = vmatprep.subr.mxu0 0.0
    %3708 = vmatpush1.msra.mxu0 0.0
    %3709 = vmatprep.subr.mxu0 0.0
    %3710 = vmatpush1.msra.mxu0 0.0
    %3711 = vmatprep.subr.mxu0 0.0
    %3712 = vmatpush1.msra.mxu0 0.0
    %3713 = vmatprep.subr.mxu0 0.0
    %3714 = vmatpush1.msra.mxu0 0.0
    %3715 = vmatprep.subr.mxu0 0.0
    %3716 = vmatpush1.msra.mxu0 0.0
    %3717 = vmatprep.subr.mxu0 0.0
    %3718 = vmatpush1.msra.mxu0 0.0
    %3719 = vmatprep.subr.mxu0 0.0
    %3720 = vmatpush1.msra.mxu0 0.0
    %3721 = vmatprep.subr.mxu0 0.0
    %3722 = vmatpush1.msra.mxu0 0.0
    %3723 = vmatprep.subr.mxu0 0.0
    %3724 = vmatpush1.msra.mxu0 0.0
    %3725 = vmatprep.subr.mxu0 0.0
    %3726 = vmatpush1.msra.mxu0 0.0
    %3727 = vmatprep.subr.mxu0 0.0
    %3728 = vmatpush1.msra.mxu0 0.0
    %3729 = vmatprep.subr.mxu0 0.0
    %3730 = vmatpush1.msra.mxu0 0.0
    %3731 = vmatprep.subr.mxu0 0.0
    %3732 = vmatpush1.msra.mxu0 0.0
    %3733 = vmatprep.subr.mxu0 0.0
    %3734 = vmatpush1.msra.mxu0 0.0
    %3735 = vmatprep.mubr.f32.mxu0 0.0
    %3736 = vmatmul.mubr.f32.gmra.mrb[0].mxu0 %v3669
    %v3737 = vpop.f32.mrb[0].mxu0
    %v3738 = vadd.f32 %v3593, %v3737
    %v3739 = vpop.f32.mrb[0].mxu0
    %v3740 = vadd.f32 %v3595, %v3739
    %3741 = vdwg.mxu0
    %3742 = vmatprep.subr.mxu0 %v467
    %3743 = vmatpush1.msra.mxu0 %v466
    %3744 = vmatprep.subr.mxu0 %v647
    %3745 = vmatpush1.msra.mxu0 %v644
    %3746 = vmatprep.subr.mxu0 0.0
    %3747 = vmatpush1.msra.mxu0 0.0
    %3748 = vmatprep.subr.mxu0 0.0
    %3749 = vmatpush1.msra.mxu0 0.0
    %3750 = vmatprep.subr.mxu0 0.0
    %3751 = vmatpush1.msra.mxu0 0.0
    %3752 = vmatprep.subr.mxu0 0.0
    %3753 = vmatpush1.msra.mxu0 0.0
    %3754 = vmatprep.subr.mxu0 0.0
    %3755 = vmatpush1.msra.mxu0 0.0
    %3756 = vmatprep.subr.mxu0 0.0
    %3757 = vmatpush1.msra.mxu0 0.0
    %3758 = vmatprep.subr.mxu0 0.0
    %3759 = vmatpush1.msra.mxu0 0.0
    %3760 = vmatprep.subr.mxu0 0.0
    %3761 = vmatpush1.msra.mxu0 0.0
    %3762 = vmatprep.subr.mxu0 0.0
    %3763 = vmatpush1.msra.mxu0 0.0
    %3764 = vmatprep.subr.mxu0 0.0
    %3765 = vmatpush1.msra.mxu0 0.0
    %3766 = vmatprep.subr.mxu0 0.0
    %3767 = vmatpush1.msra.mxu0 0.0
    %3768 = vmatprep.subr.mxu0 0.0
    %3769 = vmatpush1.msra.mxu0 0.0
    %3770 = vmatprep.subr.mxu0 0.0
    %3771 = vmatpush1.msra.mxu0 0.0
    %3772 = vmatprep.subr.mxu0 0.0
    %3773 = vmatpush1.msra.mxu0 0.0
    %3774 = vmatprep.subr.mxu0 0.0
    %3775 = vmatpush1.msra.mxu0 0.0
    %3776 = vmatprep.subr.mxu0 0.0
    %3777 = vmatpush1.msra.mxu0 0.0
    %3778 = vmatprep.subr.mxu0 0.0
    %3779 = vmatpush1.msra.mxu0 0.0
    %3780 = vmatprep.subr.mxu0 0.0
    %3781 = vmatpush1.msra.mxu0 0.0
    %3782 = vmatprep.subr.mxu0 0.0
    %3783 = vmatpush1.msra.mxu0 0.0
    %3784 = vmatprep.subr.mxu0 0.0
    %3785 = vmatpush1.msra.mxu0 0.0
    %3786 = vmatprep.subr.mxu0 0.0
    %3787 = vmatpush1.msra.mxu0 0.0
    %3788 = vmatprep.subr.mxu0 0.0
    %3789 = vmatpush1.msra.mxu0 0.0
    %3790 = vmatprep.subr.mxu0 0.0
    %3791 = vmatpush1.msra.mxu0 0.0
    %3792 = vmatprep.subr.mxu0 0.0
    %3793 = vmatpush1.msra.mxu0 0.0
    %3794 = vmatprep.subr.mxu0 0.0
    %3795 = vmatpush1.msra.mxu0 0.0
    %3796 = vmatprep.subr.mxu0 0.0
    %3797 = vmatpush1.msra.mxu0 0.0
    %3798 = vmatprep.subr.mxu0 0.0
    %3799 = vmatpush1.msra.mxu0 0.0
    %3800 = vmatprep.subr.mxu0 0.0
    %3801 = vmatpush1.msra.mxu0 0.0
    %3802 = vmatprep.subr.mxu0 0.0
    %3803 = vmatpush1.msra.mxu0 0.0
    %3804 = vmatprep.subr.mxu0 0.0
    %3805 = vmatpush1.msra.mxu0 0.0
    %3806 = vmatprep.mubr.f32.mxu0 0.0
    %3807 = vmatmul.mubr.f32.gmra.mrb[0].mxu0 %v3669
    %v3808 = vpop.f32.mrb[0].mxu0
    %v3809 = vadd.f32 %v3664, %v3808
    %v3810 = vpop.f32.mrb[0].mxu0
    %v3811 = vadd.f32 %v3666, %v3810
    %3812 = vdwg.mxu0
    %v3813 = vadd.f32 %v3738, %v796
    %v3814 = vadd.f32 %v3740, %v800
    %v3815 = vadd.f32 %v3809, %v804
    %v3816 = vadd.f32 %v3811, %v808
    %v3817 = vxor.u32 %v3813, 2147483648
    %v3818 = vmul.f32 %v3817, 1.442695
    %v3819 = vpow.pop %v3818
    %v3820 = vadd.f32 %v3819, 1.0
    %v3821 = vrcp.pop %v3820
    %v3822 = vmul.f32 1.0, %v3821
    %v3823 = vxor.u32 %v3814, 2147483648
    %v3824 = vmul.f32 %v3823, 1.442695
    %v3825 = vpow.pop %v3824
    %v3826 = vadd.f32 %v3825, 1.0
    %v3827 = vrcp.pop %v3826
    %v3828 = vmul.f32 1.0, %v3827
    %v3829 = vtanh.pop %v3815
    %v3830 = vxor.u32 %v3816, 2147483648
    %v3831 = vmul.f32 %v3830, 1.442695
    %v3832 = vpow.pop %v3831
    %v3833 = vadd.f32 %v3832, 1.0
    %v3834 = vrcp.pop %v3833
    %v3835 = vmul.f32 1.0, %v3834
    %v3836 = vmul.f32 %v3828, %v3338
    %v3837 = vmul.f32 %v3822, %v3829
    %v3838 = vadd.f32 %v3836, %v3837
    %v3839 = vtanh.pop %v3838
    %v3840 = vmul.f32 %v3835, %v3839
    %3841 = vset.pattern.permute.xlu0 7
    %3842 = vperm.xlu0 %3841, %v211
    %v3843 = vpop.permute.xlu0 %3842
    %v3845 = vmul.f32 %v3843, %v223
    %v3846 = vmul.f32 %v3843, %v227
    %v3847 = vmul.f32 %v3843, %v231
    %v3848 = vmul.f32 %v3843, %v235
    %v3849 = vadd.f32 %v3845, %v248
    %v3850 = vadd.f32 %v3846, %v252
    %v3851 = vadd.f32 %v3847, %v256
    %v3852 = vadd.f32 %v3848, %v260
    %3853 = vmatprep.subr.mxu0 %v270
    %3854 = vmatpush1.msra.mxu0 %v269
    %3855 = vmatprep.subr.mxu0 %v286
    %3856 = vmatpush1.msra.mxu0 %v283
    %3857 = vmatprep.subr.mxu0 0.0
    %3858 = vmatpush1.msra.mxu0 0.0
    %3859 = vmatprep.subr.mxu0 0.0
    %3860 = vmatpush1.msra.mxu0 0.0
    %3861 = vmatprep.subr.mxu0 0.0
    %3862 = vmatpush1.msra.mxu0 0.0
    %3863 = vmatprep.subr.mxu0 0.0
    %3864 = vmatpush1.msra.mxu0 0.0
    %3865 = vmatprep.subr.mxu0 0.0
    %3866 = vmatpush1.msra.mxu0 0.0
    %3867 = vmatprep.subr.mxu0 0.0
    %3868 = vmatpush1.msra.mxu0 0.0
    %3869 = vmatprep.subr.mxu0 0.0
    %3870 = vmatpush1.msra.mxu0 0.0
    %3871 = vmatprep.subr.mxu0 0.0
    %3872 = vmatpush1.msra.mxu0 0.0
    %3873 = vmatprep.subr.mxu0 0.0
    %3874 = vmatpush1.msra.mxu0 0.0
    %3875 = vmatprep.subr.mxu0 0.0
    %3876 = vmatpush1.msra.mxu0 0.0
    %3877 = vmatprep.subr.mxu0 0.0
    %3878 = vmatpush1.msra.mxu0 0.0
    %3879 = vmatprep.subr.mxu0 0.0
    %3880 = vmatpush1.msra.mxu0 0.0
    %3881 = vmatprep.subr.mxu0 0.0
    %3882 = vmatpush1.msra.mxu0 0.0
    %3883 = vmatprep.subr.mxu0 0.0
    %3884 = vmatpush1.msra.mxu0 0.0
    %3885 = vmatprep.subr.mxu0 0.0
    %3886 = vmatpush1.msra.mxu0 0.0
    %3887 = vmatprep.subr.mxu0 0.0
    %3888 = vmatpush1.msra.mxu0 0.0
    %3889 = vmatprep.subr.mxu0 0.0
    %3890 = vmatpush1.msra.mxu0 0.0
    %3891 = vmatprep.subr.mxu0 0.0
    %3892 = vmatpush1.msra.mxu0 0.0
    %3893 = vmatprep.subr.mxu0 0.0
    %3894 = vmatpush1.msra.mxu0 0.0
    %3895 = vmatprep.subr.mxu0 0.0
    %3896 = vmatpush1.msra.mxu0 0.0
    %3897 = vmatprep.subr.mxu0 0.0
    %3898 = vmatpush1.msra.mxu0 0.0
    %3899 = vmatprep.subr.mxu0 0.0
    %3900 = vmatpush1.msra.mxu0 0.0
    %3901 = vmatprep.subr.mxu0 0.0
    %3902 = vmatpush1.msra.mxu0 0.0
    %3903 = vmatprep.subr.mxu0 0.0
    %3904 = vmatpush1.msra.mxu0 0.0
    %3905 = vmatprep.subr.mxu0 0.0
    %3906 = vmatpush1.msra.mxu0 0.0
    %3907 = vmatprep.subr.mxu0 0.0
    %3908 = vmatpush1.msra.mxu0 0.0
    %3909 = vmatprep.subr.mxu0 0.0
    %3910 = vmatpush1.msra.mxu0 0.0
    %3911 = vmatprep.subr.mxu0 0.0
    %3912 = vmatpush1.msra.mxu0 0.0
    %3913 = vmatprep.subr.mxu0 0.0
    %3914 = vmatpush1.msra.mxu0 0.0
    %3915 = vmatprep.subr.mxu0 0.0
    %3916 = vmatpush1.msra.mxu0 0.0
    %3917 = vmatprep.mubr.f32.mxu0 0.0
    %3918 = vmatmul.mubr.f32.gmra.mrb[0].mxu0 %v3669
    %v3919 = vpop.f32.mrb[0].mxu0
    %v3920 = vadd.f32 0.0, %v3919
    %v3921 = vpop.f32.mrb[0].mxu0
    %v3922 = vadd.f32 0.0, %v3921
    %3923 = vdwg.mxu0
    %3924 = vmatprep.subr.mxu0 %v272
    %3925 = vmatpush1.msra.mxu0 %v271
    %3926 = vmatprep.subr.mxu0 %v292
    %3927 = vmatpush1.msra.mxu0 %v289
    %3928 = vmatprep.subr.mxu0 0.0
    %3929 = vmatpush1.msra.mxu0 0.0
    %3930 = vmatprep.subr.mxu0 0.0
    %3931 = vmatpush1.msra.mxu0 0.0
    %3932 = vmatprep.subr.mxu0 0.0
    %3933 = vmatpush1.msra.mxu0 0.0
    %3934 = vmatprep.subr.mxu0 0.0
    %3935 = vmatpush1.msra.mxu0 0.0
    %3936 = vmatprep.subr.mxu0 0.0
    %3937 = vmatpush1.msra.mxu0 0.0
    %3938 = vmatprep.subr.mxu0 0.0
    %3939 = vmatpush1.msra.mxu0 0.0
    %3940 = vmatprep.subr.mxu0 0.0
    %3941 = vmatpush1.msra.mxu0 0.0
    %3942 = vmatprep.subr.mxu0 0.0
    %3943 = vmatpush1.msra.mxu0 0.0
    %3944 = vmatprep.subr.mxu0 0.0
    %3945 = vmatpush1.msra.mxu0 0.0
    %3946 = vmatprep.subr.mxu0 0.0
    %3947 = vmatpush1.msra.mxu0 0.0
    %3948 = vmatprep.subr.mxu0 0.0
    %3949 = vmatpush1.msra.mxu0 0.0
    %3950 = vmatprep.subr.mxu0 0.0
    %3951 = vmatpush1.msra.mxu0 0.0
    %3952 = vmatprep.subr.mxu0 0.0
    %3953 = vmatpush1.msra.mxu0 0.0
    %3954 = vmatprep.subr.mxu0 0.0
    %3955 = vmatpush1.msra.mxu0 0.0
    %3956 = vmatprep.subr.mxu0 0.0
    %3957 = vmatpush1.msra.mxu0 0.0
    %3958 = vmatprep.subr.mxu0 0.0
    %3959 = vmatpush1.msra.mxu0 0.0
    %3960 = vmatprep.subr.mxu0 0.0
    %3961 = vmatpush1.msra.mxu0 0.0
    %3962 = vmatprep.subr.mxu0 0.0
    %3963 = vmatpush1.msra.mxu0 0.0
    %3964 = vmatprep.subr.mxu0 0.0
    %3965 = vmatpush1.msra.mxu0 0.0
    %3966 = vmatprep.subr.mxu0 0.0
    %3967 = vmatpush1.msra.mxu0 0.0
    %3968 = vmatprep.subr.mxu0 0.0
    %3969 = vmatpush1.msra.mxu0 0.0
    %3970 = vmatprep.subr.mxu0 0.0
    %3971 = vmatpush1.msra.mxu0 0.0
    %3972 = vmatprep.subr.mxu0 0.0
    %3973 = vmatpush1.msra.mxu0 0.0
    %3974 = vmatprep.subr.mxu0 0.0
    %3975 = vmatpush1.msra.mxu0 0.0
    %3976 = vmatprep.subr.mxu0 0.0
    %3977 = vmatpush1.msra.mxu0 0.0
    %3978 = vmatprep.subr.mxu0 0.0
    %3979 = vmatpush1.msra.mxu0 0.0
    %3980 = vmatprep.subr.mxu0 0.0
    %3981 = vmatpush1.msra.mxu0 0.0
    %3982 = vmatprep.subr.mxu0 0.0
    %3983 = vmatpush1.msra.mxu0 0.0
    %3984 = vmatprep.subr.mxu0 0.0
    %3985 = vmatpush1.msra.mxu0 0.0
    %3986 = vmatprep.subr.mxu0 0.0
    %3987 = vmatpush1.msra.mxu0 0.0
    %3988 = vmatprep.mubr.f32.mxu0 0.0
    %3989 = vmatmul.mubr.f32.gmra.mrb[0].mxu0 %v3669
    %v3990 = vpop.f32.mrb[0].mxu0
    %v3991 = vadd.f32 0.0, %v3990
    %v3992 = vpop.f32.mrb[0].mxu0
    %v3993 = vadd.f32 0.0, %v3992
    %3994 = vdwg.mxu0
    %v3995 = vadd.f32 %v3849, %v3920
    %v3996 = vadd.f32 %v3850, %v3922
    %v3997 = vadd.f32 %v3851, %v3991
    %v3998 = vadd.f32 %v3852, %v3993
    %v3999 = vxor.u32 %v3995, 2147483648
    %v4000 = vmul.f32 %v3999, 1.442695
    %v4001 = vpow.pop %v4000
    %v4002 = vadd.f32 %v4001, 1.0
    %v4003 = vrcp.pop %v4002
    %v4004 = vmul.f32 1.0, %v4003
    %v4005 = vxor.u32 %v3996, 2147483648
    %v4006 = vmul.f32 %v4005, 1.442695
    %v4007 = vpow.pop %v4006
    %v4008 = vadd.f32 %v4007, 1.0
    %v4009 = vrcp.pop %v4008
    %v4010 = vmul.f32 1.0, %v4009
    %v4011 = vtanh.pop %v3997
    %v4012 = vxor.u32 %v3998, 2147483648
    %v4013 = vmul.f32 %v4012, 1.442695
    %v4014 = vpow.pop %v4013
    %v4015 = vadd.f32 %v4014, 1.0
    %v4016 = vrcp.pop %v4015
    %v4017 = vmul.f32 1.0, %v4016
    %v4018 = vmul.f32 %v4010, %v3520
    %v4019 = vmul.f32 %v4004, %v4011
    %v4020 = vadd.f32 %v4018, %v4019
    %v4021 = vtanh.pop %v4020
    %v4022 = vmul.f32 %v4017, %v4021
    %v4024 = vsel %vm277, %v3840, 0
    %4026 = vmatprep.subr.mxu0 %v473
    %4027 = vmatpush1.msra.mxu0 %v472
    %4028 = vmatprep.subr.mxu0 %v484
    %4029 = vmatpush1.msra.mxu0 %v481
    %4030 = vmatprep.subr.mxu0 0.0
    %4031 = vmatpush1.msra.mxu0 0.0
    %4032 = vmatprep.subr.mxu0 0.0
    %4033 = vmatpush1.msra.mxu0 0.0
    %4034 = vmatprep.subr.mxu0 0.0
    %4035 = vmatpush1.msra.mxu0 0.0
    %4036 = vmatprep.subr.mxu0 0.0
    %4037 = vmatpush1.msra.mxu0 0.0
    %4038 = vmatprep.subr.mxu0 0.0
    %4039 = vmatpush1.msra.mxu0 0.0
    %4040 = vmatprep.subr.mxu0 0.0
    %4041 = vmatpush1.msra.mxu0 0.0
    %4042 = vmatprep.subr.mxu0 0.0
    %4043 = vmatpush1.msra.mxu0 0.0
    %4044 = vmatprep.subr.mxu0 0.0
    %4045 = vmatpush1.msra.mxu0 0.0
    %4046 = vmatprep.subr.mxu0 0.0
    %4047 = vmatpush1.msra.mxu0 0.0
    %4048 = vmatprep.subr.mxu0 0.0
    %4049 = vmatpush1.msra.mxu0 0.0
    %4050 = vmatprep.subr.mxu0 0.0
    %4051 = vmatpush1.msra.mxu0 0.0
    %4052 = vmatprep.subr.mxu0 0.0
    %4053 = vmatpush1.msra.mxu0 0.0
    %4054 = vmatprep.subr.mxu0 0.0
    %4055 = vmatpush1.msra.mxu0 0.0
    %4056 = vmatprep.subr.mxu0 0.0
    %4057 = vmatpush1.msra.mxu0 0.0
    %4058 = vmatprep.subr.mxu0 0.0
    %4059 = vmatpush1.msra.mxu0 0.0
    %4060 = vmatprep.subr.mxu0 0.0
    %4061 = vmatpush1.msra.mxu0 0.0
    %4062 = vmatprep.subr.mxu0 0.0
    %4063 = vmatpush1.msra.mxu0 0.0
    %4064 = vmatprep.subr.mxu0 0.0
    %4065 = vmatpush1.msra.mxu0 0.0
    %4066 = vmatprep.subr.mxu0 0.0
    %4067 = vmatpush1.msra.mxu0 0.0
    %4068 = vmatprep.subr.mxu0 0.0
    %4069 = vmatpush1.msra.mxu0 0.0
    %4070 = vmatprep.subr.mxu0 0.0
    %4071 = vmatpush1.msra.mxu0 0.0
    %4072 = vmatprep.subr.mxu0 0.0
    %4073 = vmatpush1.msra.mxu0 0.0
    %4074 = vmatprep.subr.mxu0 0.0
    %4075 = vmatpush1.msra.mxu0 0.0
    %4076 = vmatprep.subr.mxu0 0.0
    %4077 = vmatpush1.msra.mxu0 0.0
    %4078 = vmatprep.subr.mxu0 0.0
    %4079 = vmatpush1.msra.mxu0 0.0
    %4080 = vmatprep.subr.mxu0 0.0
    %4081 = vmatpush1.msra.mxu0 0.0
    %4082 = vmatprep.subr.mxu0 0.0
    %4083 = vmatpush1.msra.mxu0 0.0
    %4084 = vmatprep.subr.mxu0 0.0
    %4085 = vmatpush1.msra.mxu0 0.0
    %4086 = vmatprep.subr.mxu0 0.0
    %4087 = vmatpush1.msra.mxu0 0.0
    %4088 = vmatprep.subr.mxu0 0.0
    %4089 = vmatpush1.msra.mxu0 0.0
    %4090 = vmatprep.mubr.f32.mxu0 0.0
    %4091 = vmatmul.mubr.f32.gmra.mrb[0].mxu0 %v4024
    %v4092 = vpop.f32.mrb[0].mxu0
    %v4093 = vadd.f32 0.0, %v4092
    %v4094 = vpop.f32.mrb[0].mxu0
    %v4095 = vadd.f32 0.0, %v4094
    %4096 = vdwg.mxu0
    %4097 = vmatprep.subr.mxu0 %v475
    %4098 = vmatpush1.msra.mxu0 %v474
    %4099 = vmatprep.subr.mxu0 %v490
    %4100 = vmatpush1.msra.mxu0 %v487
    %4101 = vmatprep.subr.mxu0 0.0
    %4102 = vmatpush1.msra.mxu0 0.0
    %4103 = vmatprep.subr.mxu0 0.0
    %4104 = vmatpush1.msra.mxu0 0.0
    %4105 = vmatprep.subr.mxu0 0.0
    %4106 = vmatpush1.msra.mxu0 0.0
    %4107 = vmatprep.subr.mxu0 0.0
    %4108 = vmatpush1.msra.mxu0 0.0
    %4109 = vmatprep.subr.mxu0 0.0
    %4110 = vmatpush1.msra.mxu0 0.0
    %4111 = vmatprep.subr.mxu0 0.0
    %4112 = vmatpush1.msra.mxu0 0.0
    %4113 = vmatprep.subr.mxu0 0.0
    %4114 = vmatpush1.msra.mxu0 0.0
    %4115 = vmatprep.subr.mxu0 0.0
    %4116 = vmatpush1.msra.mxu0 0.0
    %4117 = vmatprep.subr.mxu0 0.0
    %4118 = vmatpush1.msra.mxu0 0.0
    %4119 = vmatprep.subr.mxu0 0.0
    %4120 = vmatpush1.msra.mxu0 0.0
    %4121 = vmatprep.subr.mxu0 0.0
    %4122 = vmatpush1.msra.mxu0 0.0
    %4123 = vmatprep.subr.mxu0 0.0
    %4124 = vmatpush1.msra.mxu0 0.0
    %4125 = vmatprep.subr.mxu0 0.0
    %4126 = vmatpush1.msra.mxu0 0.0
    %4127 = vmatprep.subr.mxu0 0.0
    %4128 = vmatpush1.msra.mxu0 0.0
    %4129 = vmatprep.subr.mxu0 0.0
    %4130 = vmatpush1.msra.mxu0 0.0
    %4131 = vmatprep.subr.mxu0 0.0
    %4132 = vmatpush1.msra.mxu0 0.0
    %4133 = vmatprep.subr.mxu0 0.0
    %4134 = vmatpush1.msra.mxu0 0.0
    %4135 = vmatprep.subr.mxu0 0.0
    %4136 = vmatpush1.msra.mxu0 0.0
    %4137 = vmatprep.subr.mxu0 0.0
    %4138 = vmatpush1.msra.mxu0 0.0
    %4139 = vmatprep.subr.mxu0 0.0
    %4140 = vmatpush1.msra.mxu0 0.0
    %4141 = vmatprep.subr.mxu0 0.0
    %4142 = vmatpush1.msra.mxu0 0.0
    %4143 = vmatprep.subr.mxu0 0.0
    %4144 = vmatpush1.msra.mxu0 0.0
    %4145 = vmatprep.subr.mxu0 0.0
    %4146 = vmatpush1.msra.mxu0 0.0
    %4147 = vmatprep.subr.mxu0 0.0
    %4148 = vmatpush1.msra.mxu0 0.0
    %4149 = vmatprep.subr.mxu0 0.0
    %4150 = vmatpush1.msra.mxu0 0.0
    %4151 = vmatprep.subr.mxu0 0.0
    %4152 = vmatpush1.msra.mxu0 0.0
    %4153 = vmatprep.subr.mxu0 0.0
    %4154 = vmatpush1.msra.mxu0 0.0
    %4155 = vmatprep.subr.mxu0 0.0
    %4156 = vmatpush1.msra.mxu0 0.0
    %4157 = vmatprep.subr.mxu0 0.0
    %4158 = vmatpush1.msra.mxu0 0.0
    %4159 = vmatprep.subr.mxu0 0.0
    %4160 = vmatpush1.msra.mxu0 0.0
    %4161 = vmatprep.mubr.f32.mxu0 0.0
    %4162 = vmatmul.mubr.f32.gmra.mrb[0].mxu0 %v4024
    %v4163 = vpop.f32.mrb[0].mxu0
    %v4164 = vadd.f32 0.0, %v4163
    %v4165 = vpop.f32.mrb[0].mxu0
    %v4166 = vadd.f32 0.0, %v4165
    %4167 = vdwg.mxu0
    %v4169 = vsel %vm277, %v4022, 0
    %4171 = vmatprep.subr.mxu0 %v465
    %4172 = vmatpush1.msra.mxu0 %v464
    %4173 = vmatprep.subr.mxu0 %v641
    %4174 = vmatpush1.msra.mxu0 %v638
    %4175 = vmatprep.subr.mxu0 0.0
    %4176 = vmatpush1.msra.mxu0 0.0
    %4177 = vmatprep.subr.mxu0 0.0
    %4178 = vmatpush1.msra.mxu0 0.0
    %4179 = vmatprep.subr.mxu0 0.0
    %4180 = vmatpush1.msra.mxu0 0.0
    %4181 = vmatprep.subr.mxu0 0.0
    %4182 = vmatpush1.msra.mxu0 0.0
    %4183 = vmatprep.subr.mxu0 0.0
    %4184 = vmatpush1.msra.mxu0 0.0
    %4185 = vmatprep.subr.mxu0 0.0
    %4186 = vmatpush1.msra.mxu0 0.0
    %4187 = vmatprep.subr.mxu0 0.0
    %4188 = vmatpush1.msra.mxu0 0.0
    %4189 = vmatprep.subr.mxu0 0.0
    %4190 = vmatpush1.msra.mxu0 0.0
    %4191 = vmatprep.subr.mxu0 0.0
    %4192 = vmatpush1.msra.mxu0 0.0
    %4193 = vmatprep.subr.mxu0 0.0
    %4194 = vmatpush1.msra.mxu0 0.0
    %4195 = vmatprep.subr.mxu0 0.0
    %4196 = vmatpush1.msra.mxu0 0.0
    %4197 = vmatprep.subr.mxu0 0.0
    %4198 = vmatpush1.msra.mxu0 0.0
    %4199 = vmatprep.subr.mxu0 0.0
    %4200 = vmatpush1.msra.mxu0 0.0
    %4201 = vmatprep.subr.mxu0 0.0
    %4202 = vmatpush1.msra.mxu0 0.0
    %4203 = vmatprep.subr.mxu0 0.0
    %4204 = vmatpush1.msra.mxu0 0.0
    %4205 = vmatprep.subr.mxu0 0.0
    %4206 = vmatpush1.msra.mxu0 0.0
    %4207 = vmatprep.subr.mxu0 0.0
    %4208 = vmatpush1.msra.mxu0 0.0
    %4209 = vmatprep.subr.mxu0 0.0
    %4210 = vmatpush1.msra.mxu0 0.0
    %4211 = vmatprep.subr.mxu0 0.0
    %4212 = vmatpush1.msra.mxu0 0.0
    %4213 = vmatprep.subr.mxu0 0.0
    %4214 = vmatpush1.msra.mxu0 0.0
    %4215 = vmatprep.subr.mxu0 0.0
    %4216 = vmatpush1.msra.mxu0 0.0
    %4217 = vmatprep.subr.mxu0 0.0
    %4218 = vmatpush1.msra.mxu0 0.0
    %4219 = vmatprep.subr.mxu0 0.0
    %4220 = vmatpush1.msra.mxu0 0.0
    %4221 = vmatprep.subr.mxu0 0.0
    %4222 = vmatpush1.msra.mxu0 0.0
    %4223 = vmatprep.subr.mxu0 0.0
    %4224 = vmatpush1.msra.mxu0 0.0
    %4225 = vmatprep.subr.mxu0 0.0
    %4226 = vmatpush1.msra.mxu0 0.0
    %4227 = vmatprep.subr.mxu0 0.0
    %4228 = vmatpush1.msra.mxu0 0.0
    %4229 = vmatprep.subr.mxu0 0.0
    %4230 = vmatpush1.msra.mxu0 0.0
    %4231 = vmatprep.subr.mxu0 0.0
    %4232 = vmatpush1.msra.mxu0 0.0
    %4233 = vmatprep.subr.mxu0 0.0
    %4234 = vmatpush1.msra.mxu0 0.0
    %4235 = vmatprep.mubr.f32.mxu0 0.0
    %4236 = vmatmul.mubr.f32.gmra.mrb[0].mxu0 %v4169
    %v4237 = vpop.f32.mrb[0].mxu0
    %v4238 = vadd.f32 %v4093, %v4237
    %v4239 = vpop.f32.mrb[0].mxu0
    %v4240 = vadd.f32 %v4095, %v4239
    %4241 = vdwg.mxu0
    %4242 = vmatprep.subr.mxu0 %v467
    %4243 = vmatpush1.msra.mxu0 %v466
    %4244 = vmatprep.subr.mxu0 %v647
    %4245 = vmatpush1.msra.mxu0 %v644
    %4246 = vmatprep.subr.mxu0 0.0
    %4247 = vmatpush1.msra.mxu0 0.0
    %4248 = vmatprep.subr.mxu0 0.0
    %4249 = vmatpush1.msra.mxu0 0.0
    %4250 = vmatprep.subr.mxu0 0.0
    %4251 = vmatpush1.msra.mxu0 0.0
    %4252 = vmatprep.subr.mxu0 0.0
    %4253 = vmatpush1.msra.mxu0 0.0
    %4254 = vmatprep.subr.mxu0 0.0
    %4255 = vmatpush1.msra.mxu0 0.0
    %4256 = vmatprep.subr.mxu0 0.0
    %4257 = vmatpush1.msra.mxu0 0.0
    %4258 = vmatprep.subr.mxu0 0.0
    %4259 = vmatpush1.msra.mxu0 0.0
    %4260 = vmatprep.subr.mxu0 0.0
    %4261 = vmatpush1.msra.mxu0 0.0
    %4262 = vmatprep.subr.mxu0 0.0
    %4263 = vmatpush1.msra.mxu0 0.0
    %4264 = vmatprep.subr.mxu0 0.0
    %4265 = vmatpush1.msra.mxu0 0.0
    %4266 = vmatprep.subr.mxu0 0.0
    %4267 = vmatpush1.msra.mxu0 0.0
    %4268 = vmatprep.subr.mxu0 0.0
    %4269 = vmatpush1.msra.mxu0 0.0
    %4270 = vmatprep.subr.mxu0 0.0
    %4271 = vmatpush1.msra.mxu0 0.0
    %4272 = vmatprep.subr.mxu0 0.0
    %4273 = vmatpush1.msra.mxu0 0.0
    %4274 = vmatprep.subr.mxu0 0.0
    %4275 = vmatpush1.msra.mxu0 0.0
    %4276 = vmatprep.subr.mxu0 0.0
    %4277 = vmatpush1.msra.mxu0 0.0
    %4278 = vmatprep.subr.mxu0 0.0
    %4279 = vmatpush1.msra.mxu0 0.0
    %4280 = vmatprep.subr.mxu0 0.0
    %4281 = vmatpush1.msra.mxu0 0.0
    %4282 = vmatprep.subr.mxu0 0.0
    %4283 = vmatpush1.msra.mxu0 0.0
    %4284 = vmatprep.subr.mxu0 0.0
    %4285 = vmatpush1.msra.mxu0 0.0
    %4286 = vmatprep.subr.mxu0 0.0
    %4287 = vmatpush1.msra.mxu0 0.0
    %4288 = vmatprep.subr.mxu0 0.0
    %4289 = vmatpush1.msra.mxu0 0.0
    %4290 = vmatprep.subr.mxu0 0.0
    %4291 = vmatpush1.msra.mxu0 0.0
    %4292 = vmatprep.subr.mxu0 0.0
    %4293 = vmatpush1.msra.mxu0 0.0
    %4294 = vmatprep.subr.mxu0 0.0
    %4295 = vmatpush1.msra.mxu0 0.0
    %4296 = vmatprep.subr.mxu0 0.0
    %4297 = vmatpush1.msra.mxu0 0.0
    %4298 = vmatprep.subr.mxu0 0.0
    %4299 = vmatpush1.msra.mxu0 0.0
    %4300 = vmatprep.subr.mxu0 0.0
    %4301 = vmatpush1.msra.mxu0 0.0
    %4302 = vmatprep.subr.mxu0 0.0
    %4303 = vmatpush1.msra.mxu0 0.0
    %4304 = vmatprep.subr.mxu0 0.0
    %4305 = vmatpush1.msra.mxu0 0.0
    %4306 = vmatprep.mubr.f32.mxu0 0.0
    %4307 = vmatmul.mubr.f32.gmra.mrb[0].mxu0 %v4169
    %v4308 = vpop.f32.mrb[0].mxu0
    %v4309 = vadd.f32 %v4164, %v4308
    %v4310 = vpop.f32.mrb[0].mxu0
    %v4311 = vadd.f32 %v4166, %v4310
    %4312 = vdwg.mxu0
    %v4313 = vadd.f32 %v4238, %v796
    %v4314 = vadd.f32 %v4240, %v800
    %v4315 = vadd.f32 %v4309, %v804
    %v4316 = vadd.f32 %v4311, %v808
    %v4317 = vxor.u32 %v4313, 2147483648
    %v4318 = vmul.f32 %v4317, 1.442695
    %v4319 = vpow.pop %v4318
    %v4320 = vadd.f32 %v4319, 1.0
    %v4321 = vrcp.pop %v4320
    %v4322 = vmul.f32 1.0, %v4321
    %v4323 = vxor.u32 %v4314, 2147483648
    %v4324 = vmul.f32 %v4323, 1.442695
    %v4325 = vpow.pop %v4324
    %v4326 = vadd.f32 %v4325, 1.0
    %v4327 = vrcp.pop %v4326
    %v4328 = vmul.f32 1.0, %v4327
    %v4329 = vtanh.pop %v4315
    %v4330 = vxor.u32 %v4316, 2147483648
    %v4331 = vmul.f32 %v4330, 1.442695
    %v4332 = vpow.pop %v4331
    %v4333 = vadd.f32 %v4332, 1.0
    %v4334 = vrcp.pop %v4333
    %v4335 = vmul.f32 1.0, %v4334
    %v4336 = vmul.f32 %v4328, %v3838
    %v4337 = vmul.f32 %v4322, %v4329
    %v4338 = vadd.f32 %v4336, %v4337
    %v4339 = vtanh.pop %v4338
    %v4340 = vmul.f32 %v4335, %v4339
    %v4341 = vld [vmem:[%s7] sm:$0xff]
    %v4342 = vld [vmem:[%s7 + $0x8] sm:$0x3]
    %v4343 = vld [vmem:[#allocation9] sm:$0x1]
    %v4345 = vlaneseq
    %v4346 = vshrl.u32 %v4345, 7
    %v4347 = vsub.s32 0, %v4346
    %v4348 = vrot.slane %v4343, %v4347
    %v4351 = vsel %vm277, %v4340, 0
    %v4354 = vsel %vm281, %v4342, 0
    %4356 = vmatprep.subr.mxu0 0.0
    %4357 = vmatpush1.msra.mxu0 %v4341
    %4358 = vmatprep.subr.mxu0 0.0
    %4359 = vmatpush1.msra.mxu0 %v4354
    %4360 = vmatprep.subr.mxu0 0.0
    %4361 = vmatpush1.msra.mxu0 0.0
    %4362 = vmatprep.subr.mxu0 0.0
    %4363 = vmatpush1.msra.mxu0 0.0
    %4364 = vmatprep.subr.mxu0 0.0
    %4365 = vmatpush1.msra.mxu0 0.0
    %4366 = vmatprep.subr.mxu0 0.0
    %4367 = vmatpush1.msra.mxu0 0.0
    %4368 = vmatprep.subr.mxu0 0.0
    %4369 = vmatpush1.msra.mxu0 0.0
    %4370 = vmatprep.subr.mxu0 0.0
    %4371 = vmatpush1.msra.mxu0 0.0
    %4372 = vmatprep.subr.mxu0 0.0
    %4373 = vmatpush1.msra.mxu0 0.0
    %4374 = vmatprep.subr.mxu0 0.0
    %4375 = vmatpush1.msra.mxu0 0.0
    %4376 = vmatprep.subr.mxu0 0.0
    %4377 = vmatpush1.msra.mxu0 0.0
    %4378 = vmatprep.subr.mxu0 0.0
    %4379 = vmatpush1.msra.mxu0 0.0
    %4380 = vmatprep.subr.mxu0 0.0
    %4381 = vmatpush1.msra.mxu0 0.0
    %4382 = vmatprep.subr.mxu0 0.0
    %4383 = vmatpush1.msra.mxu0 0.0
    %4384 = vmatprep.subr.mxu0 0.0
    %4385 = vmatpush1.msra.mxu0 0.0
    %4386 = vmatprep.subr.mxu0 0.0
    %4387 = vmatpush1.msra.mxu0 0.0
    %4388 = vmatprep.subr.mxu0 0.0
    %4389 = vmatpush1.msra.mxu0 0.0
    %4390 = vmatprep.subr.mxu0 0.0
    %4391 = vmatpush1.msra.mxu0 0.0
    %4392 = vmatprep.subr.mxu0 0.0
    %4393 = vmatpush1.msra.mxu0 0.0
    %4394 = vmatprep.subr.mxu0 0.0
    %4395 = vmatpush1.msra.mxu0 0.0
    %4396 = vmatprep.subr.mxu0 0.0
    %4397 = vmatpush1.msra.mxu0 0.0
    %4398 = vmatprep.subr.mxu0 0.0
    %4399 = vmatpush1.msra.mxu0 0.0
    %4400 = vmatprep.subr.mxu0 0.0
    %4401 = vmatpush1.msra.mxu0 0.0
    %4402 = vmatprep.subr.mxu0 0.0
    %4403 = vmatpush1.msra.mxu0 0.0
    %4404 = vmatprep.subr.mxu0 0.0
    %4405 = vmatpush1.msra.mxu0 0.0
    %4406 = vmatprep.subr.mxu0 0.0
    %4407 = vmatpush1.msra.mxu0 0.0
    %4408 = vmatprep.subr.mxu0 0.0
    %4409 = vmatpush1.msra.mxu0 0.0
    %4410 = vmatprep.subr.mxu0 0.0
    %4411 = vmatpush1.msra.mxu0 0.0
    %4412 = vmatprep.subr.mxu0 0.0
    %4413 = vmatpush1.msra.mxu0 0.0
    %4414 = vmatprep.subr.mxu0 0.0
    %4415 = vmatpush1.msra.mxu0 0.0
    %4416 = vmatprep.subr.mxu0 0.0
    %4417 = vmatpush1.msra.mxu0 0.0
    %4418 = vmatprep.subr.mxu0 0.0
    %4419 = vmatpush1.msra.mxu0 0.0
    %4420 = vmatprep.mubr.f32.mxu0 0.0
    %4421 = vmatmul.mubr.f32.gmra.mrb[0].mxu0 %v4351
    %v4422 = vpop.f32.mrb[0].mxu0
    %v4423 = vadd.f32 %v4348, %v4422
    %v4424 = vpop.f32.mrb[0].mxu0
    %4425 = vdwg.mxu0
    %4426 = vst [vmem:[%s21] sm:$0xff] %v4423
    %v4427 = vld [vmem:[%s9] sm:$0xff]
    %v4428 = vld [vmem:[%s9 + $0x8] sm:$0xff]
    %v4429 = vld [vmem:[%s9 + $0x10] sm:$0xff]
    %v4430 = vld [vmem:[%s9 + $0x18] sm:$0xff]
    %v4431 = vld [vmem:[%s9 + $0x20] sm:$0xff]
    %v4432 = vld [vmem:[%s9 + $0x28] sm:$0xff]
    %v4433 = vld [vmem:[%s9 + $0x30] sm:$0xff]
    %v4434 = vld [vmem:[%s9 + $0x38] sm:$0xff]
    %v4435 = vld [vmem:[%s9 + $0x40] sm:$0xff]
    %v4436 = vld [vmem:[%s9 + $0x48] sm:$0xff]
    %v4437 = vld [vmem:[%s9 + $0x50] sm:$0xff]
    %v4438 = vld [vmem:[%s9 + $0x58] sm:$0xff]
    %v4439 = vld [vmem:[%s9 + $0x60] sm:$0xff]
    %v4440 = vld [vmem:[%s9 + $0x68] sm:$0xff]
    %v4441 = vld [vmem:[%s9 + $0x70] sm:$0xff]
    %v4442 = vld [vmem:[%s9 + $0x78] sm:$0xff]
    %v4443 = vld [vmem:[#allocation10] sm:$0x1]
    %v4445 = vlaneseq
    %v4446 = vshrl.u32 %v4445, 7
    %v4447 = vsub.s32 0, %v4446
    %v4448 = vrot.slane %v4443, %v4447
    %4450 = vmatprep.subr.mxu0 0.0
    %4451 = vmatpush1.msra.mxu0 %v4427
    %4452 = vmatprep.subr.mxu0 0.0
    %4453 = vmatpush1.msra.mxu0 %v4428
    %4454 = vmatprep.subr.mxu0 0.0
    %4455 = vmatpush1.msra.mxu0 %v4429
    %4456 = vmatprep.subr.mxu0 0.0
    %4457 = vmatpush1.msra.mxu0 %v4430
    %4458 = vmatprep.subr.mxu0 0.0
    %4459 = vmatpush1.msra.mxu0 %v4431
    %4460 = vmatprep.subr.mxu0 0.0
    %4461 = vmatpush1.msra.mxu0 %v4432
    %4462 = vmatprep.subr.mxu0 0.0
    %4463 = vmatpush1.msra.mxu0 %v4433
    %4464 = vmatprep.subr.mxu0 0.0
    %4465 = vmatpush1.msra.mxu0 %v4434
    %4466 = vmatprep.subr.mxu0 0.0
    %4467 = vmatpush1.msra.mxu0 %v4435
    %4468 = vmatprep.subr.mxu0 0.0
    %4469 = vmatpush1.msra.mxu0 %v4436
    %4470 = vmatprep.subr.mxu0 0.0
    %4471 = vmatpush1.msra.mxu0 %v4437
    %4472 = vmatprep.subr.mxu0 0.0
    %4473 = vmatpush1.msra.mxu0 %v4438
    %4474 = vmatprep.subr.mxu0 0.0
    %4475 = vmatpush1.msra.mxu0 %v4439
    %4476 = vmatprep.subr.mxu0 0.0
    %4477 = vmatpush1.msra.mxu0 %v4440
    %4478 = vmatprep.subr.mxu0 0.0
    %4479 = vmatpush1.msra.mxu0 %v4441
    %4480 = vmatprep.subr.mxu0 0.0
    %4481 = vmatpush1.msra.mxu0 %v4442
    %4482 = vmatprep.subr.mxu0 0.0
    %4483 = vmatpush1.msra.mxu0 0.0
    %4484 = vmatprep.subr.mxu0 0.0
    %4485 = vmatpush1.msra.mxu0 0.0
    %4486 = vmatprep.subr.mxu0 0.0
    %4487 = vmatpush1.msra.mxu0 0.0
    %4488 = vmatprep.subr.mxu0 0.0
    %4489 = vmatpush1.msra.mxu0 0.0
    %4490 = vmatprep.subr.mxu0 0.0
    %4491 = vmatpush1.msra.mxu0 0.0
    %4492 = vmatprep.subr.mxu0 0.0
    %4493 = vmatpush1.msra.mxu0 0.0
    %4494 = vmatprep.subr.mxu0 0.0
    %4495 = vmatpush1.msra.mxu0 0.0
    %4496 = vmatprep.subr.mxu0 0.0
    %4497 = vmatpush1.msra.mxu0 0.0
    %4498 = vmatprep.subr.mxu0 0.0
    %4499 = vmatpush1.msra.mxu0 0.0
    %4500 = vmatprep.subr.mxu0 0.0
    %4501 = vmatpush1.msra.mxu0 0.0
    %4502 = vmatprep.subr.mxu0 0.0
    %4503 = vmatpush1.msra.mxu0 0.0
    %4504 = vmatprep.subr.mxu0 0.0
    %4505 = vmatpush1.msra.mxu0 0.0
    %4506 = vmatprep.subr.mxu0 0.0
    %4507 = vmatpush1.msra.mxu0 0.0
    %4508 = vmatprep.subr.mxu0 0.0
    %4509 = vmatpush1.msra.mxu0 0.0
    %4510 = vmatprep.subr.mxu0 0.0
    %4511 = vmatpush1.msra.mxu0 0.0
    %4512 = vmatprep.subr.mxu0 0.0
    %4513 = vmatpush1.msra.mxu0 0.0
    %4514 = vmatprep.mubr.f32.mxu0 0.0
    %4515 = vmatmul.mubr.f32.gmra.mrb[0].mxu0 %v4423
    %v4516 = vpop.f32.mrb[0].mxu0
    %v4517 = vadd.f32 %v4448, %v4516
    %v4518 = vpop.f32.mrb[0].mxu0
    %4519 = vdwg.mxu0
    %v4520 = vmax.f32 %v4517, 0.0
    %v4521 = vld [vmem:[#allocation12] sm:$0xff]
    %v4522 = vld [vmem:[#allocation12 + $0x8] sm:$0xff]
    %v4523 = vld [vmem:[#allocation12 + $0x10] sm:$0xff]
    %v4524 = vld [vmem:[#allocation12 + $0x18] sm:$0xff]
    %v4525 = vld [vmem:[#allocation13] sm:$0x1]
    %v4527 = vlaneseq
    %v4528 = vshrl.u32 %v4527, 7
    %v4529 = vsub.s32 0, %v4528
    %v4530 = vrot.slane %v4525, %v4529
    %vm4532 = vcmask 261120
    %v4534 = vsel %vm4532, %v4520, 0
    %4536 = vmatprep.subr.mxu0 0.0
    %4537 = vmatpush1.msra.mxu0 %v4521
    %4538 = vmatprep.subr.mxu0 0.0
    %4539 = vmatpush1.msra.mxu0 %v4522
    %4540 = vmatprep.subr.mxu0 0.0
    %4541 = vmatpush1.msra.mxu0 %v4523
    %4542 = vmatprep.subr.mxu0 0.0
    %4543 = vmatpush1.msra.mxu0 %v4524
    %4544 = vmatprep.subr.mxu0 0.0
    %4545 = vmatpush1.msra.mxu0 0.0
    %4546 = vmatprep.subr.mxu0 0.0
    %4547 = vmatpush1.msra.mxu0 0.0
    %4548 = vmatprep.subr.mxu0 0.0
    %4549 = vmatpush1.msra.mxu0 0.0
    %4550 = vmatprep.subr.mxu0 0.0
    %4551 = vmatpush1.msra.mxu0 0.0
    %4552 = vmatprep.subr.mxu0 0.0
    %4553 = vmatpush1.msra.mxu0 0.0
    %4554 = vmatprep.subr.mxu0 0.0
    %4555 = vmatpush1.msra.mxu0 0.0
    %4556 = vmatprep.subr.mxu0 0.0
    %4557 = vmatpush1.msra.mxu0 0.0
    %4558 = vmatprep.subr.mxu0 0.0
    %4559 = vmatpush1.msra.mxu0 0.0
    %4560 = vmatprep.subr.mxu0 0.0
    %4561 = vmatpush1.msra.mxu0 0.0
    %4562 = vmatprep.subr.mxu0 0.0
    %4563 = vmatpush1.msra.mxu0 0.0
    %4564 = vmatprep.subr.mxu0 0.0
    %4565 = vmatpush1.msra.mxu0 0.0
    %4566 = vmatprep.subr.mxu0 0.0
    %4567 = vmatpush1.msra.mxu0 0.0
    %4568 = vmatprep.subr.mxu0 0.0
    %4569 = vmatpush1.msra.mxu0 0.0
    %4570 = vmatprep.subr.mxu0 0.0
    %4571 = vmatpush1.msra.mxu0 0.0
    %4572 = vmatprep.subr.mxu0 0.0
    %4573 = vmatpush1.msra.mxu0 0.0
    %4574 = vmatprep.subr.mxu0 0.0
    %4575 = vmatpush1.msra.mxu0 0.0
    %4576 = vmatprep.subr.mxu0 0.0
    %4577 = vmatpush1.msra.mxu0 0.0
    %4578 = vmatprep.subr.mxu0 0.0
    %4579 = vmatpush1.msra.mxu0 0.0
    %4580 = vmatprep.subr.mxu0 0.0
    %4581 = vmatpush1.msra.mxu0 0.0
    %4582 = vmatprep.subr.mxu0 0.0
    %4583 = vmatpush1.msra.mxu0 0.0
    %4584 = vmatprep.subr.mxu0 0.0
    %4585 = vmatpush1.msra.mxu0 0.0
    %4586 = vmatprep.subr.mxu0 0.0
    %4587 = vmatpush1.msra.mxu0 0.0
    %4588 = vmatprep.subr.mxu0 0.0
    %4589 = vmatpush1.msra.mxu0 0.0
    %4590 = vmatprep.subr.mxu0 0.0
    %4591 = vmatpush1.msra.mxu0 0.0
    %4592 = vmatprep.subr.mxu0 0.0
    %4593 = vmatpush1.msra.mxu0 0.0
    %4594 = vmatprep.subr.mxu0 0.0
    %4595 = vmatpush1.msra.mxu0 0.0
    %4596 = vmatprep.subr.mxu0 0.0
    %4597 = vmatpush1.msra.mxu0 0.0
    %4598 = vmatprep.subr.mxu0 0.0
    %4599 = vmatpush1.msra.mxu0 0.0
    %4600 = vmatprep.mubr.f32.mxu0 0.0
    %4601 = vmatmul.mubr.f32.gmra.mrb[0].mxu0 %v4534
    %v4602 = vpop.f32.mrb[0].mxu0
    %v4603 = vadd.f32 %v4530, %v4602
    %v4604 = vpop.f32.mrb[0].mxu0
    %4605 = vdwg.mxu0
    %v4606 = vmax.f32 %v4603, 0.0
    %v4607 = vld [vmem:[#allocation15] sm:$0xff]
    %v4608 = vld [vmem:[#allocation15 + $0x8] sm:$0xff]
    %v4609 = vld [vmem:[#allocation15 + $0x10] sm:$0xff]
    %v4610 = vld [vmem:[#allocation15 + $0x18] sm:$0xff]
    %v4611 = vld [vmem:[#allocation16] sm:$0x1]
    %v4613 = vlaneseq
    %v4614 = vshrl.u32 %v4613, 7
    %v4615 = vsub.s32 0, %v4614
    %v4616 = vrot.slane %v4611, %v4615
    %v4619 = vsel %vm4532, %v4606, 0
    %4621 = vmatprep.subr.mxu0 0.0
    %4622 = vmatpush1.msra.mxu0 %v4607
    %4623 = vmatprep.subr.mxu0 0.0
    %4624 = vmatpush1.msra.mxu0 %v4608
    %4625 = vmatprep.subr.mxu0 0.0
    %4626 = vmatpush1.msra.mxu0 %v4609
    %4627 = vmatprep.subr.mxu0 0.0
    %4628 = vmatpush1.msra.mxu0 %v4610
    %4629 = vmatprep.subr.mxu0 0.0
    %4630 = vmatpush1.msra.mxu0 0.0
    %4631 = vmatprep.subr.mxu0 0.0
    %4632 = vmatpush1.msra.mxu0 0.0
    %4633 = vmatprep.subr.mxu0 0.0
    %4634 = vmatpush1.msra.mxu0 0.0
    %4635 = vmatprep.subr.mxu0 0.0
    %4636 = vmatpush1.msra.mxu0 0.0
    %4637 = vmatprep.subr.mxu0 0.0
    %4638 = vmatpush1.msra.mxu0 0.0
    %4639 = vmatprep.subr.mxu0 0.0
    %4640 = vmatpush1.msra.mxu0 0.0
    %4641 = vmatprep.subr.mxu0 0.0
    %4642 = vmatpush1.msra.mxu0 0.0
    %4643 = vmatprep.subr.mxu0 0.0
    %4644 = vmatpush1.msra.mxu0 0.0
    %4645 = vmatprep.subr.mxu0 0.0
    %4646 = vmatpush1.msra.mxu0 0.0
    %4647 = vmatprep.subr.mxu0 0.0
    %4648 = vmatpush1.msra.mxu0 0.0
    %4649 = vmatprep.subr.mxu0 0.0
    %4650 = vmatpush1.msra.mxu0 0.0
    %4651 = vmatprep.subr.mxu0 0.0
    %4652 = vmatpush1.msra.mxu0 0.0
    %4653 = vmatprep.subr.mxu0 0.0
    %4654 = vmatpush1.msra.mxu0 0.0
    %4655 = vmatprep.subr.mxu0 0.0
    %4656 = vmatpush1.msra.mxu0 0.0
    %4657 = vmatprep.subr.mxu0 0.0
    %4658 = vmatpush1.msra.mxu0 0.0
    %4659 = vmatprep.subr.mxu0 0.0
    %4660 = vmatpush1.msra.mxu0 0.0
    %4661 = vmatprep.subr.mxu0 0.0
    %4662 = vmatpush1.msra.mxu0 0.0
    %4663 = vmatprep.subr.mxu0 0.0
    %4664 = vmatpush1.msra.mxu0 0.0
    %4665 = vmatprep.subr.mxu0 0.0
    %4666 = vmatpush1.msra.mxu0 0.0
    %4667 = vmatprep.subr.mxu0 0.0
    %4668 = vmatpush1.msra.mxu0 0.0
    %4669 = vmatprep.subr.mxu0 0.0
    %4670 = vmatpush1.msra.mxu0 0.0
    %4671 = vmatprep.subr.mxu0 0.0
    %4672 = vmatpush1.msra.mxu0 0.0
    %4673 = vmatprep.subr.mxu0 0.0
    %4674 = vmatpush1.msra.mxu0 0.0
    %4675 = vmatprep.subr.mxu0 0.0
    %4676 = vmatpush1.msra.mxu0 0.0
    %4677 = vmatprep.subr.mxu0 0.0
    %4678 = vmatpush1.msra.mxu0 0.0
    %4679 = vmatprep.subr.mxu0 0.0
    %4680 = vmatpush1.msra.mxu0 0.0
    %4681 = vmatprep.subr.mxu0 0.0
    %4682 = vmatpush1.msra.mxu0 0.0
    %4683 = vmatprep.subr.mxu0 0.0
    %4684 = vmatpush1.msra.mxu0 0.0
    %4685 = vmatprep.mubr.f32.mxu0 0.0
    %4686 = vmatmul.mubr.f32.gmra.mrb[0].mxu0 %v4619
    %v4687 = vpop.f32.mrb[0].mxu0
    %v4688 = vadd.f32 %v4616, %v4687
    %v4689 = vpop.f32.mrb[0].mxu0
    %4690 = vdwg.mxu0
    %v4691 = vmax.f32 %v4688, 0.0
    %v4692 = vld [vmem:[#allocation18] sm:$0xff]
    %v4693 = vld [vmem:[#allocation18 + $0x8] sm:$0xff]
    %v4694 = vld [vmem:[#allocation18 + $0x10] sm:$0xff]
    %v4695 = vld [vmem:[#allocation18 + $0x18] sm:$0xff]
    %v4696 = vld [vmem:[#allocation18 + $0x20] sm:$0xff]
    %v4697 = vld [vmem:[#allocation18 + $0x28] sm:$0xff]
    %v4698 = vld [vmem:[#allocation18 + $0x30] sm:$0xff]
    %v4699 = vld [vmem:[#allocation18 + $0x38] sm:$0xff]
    %v4700 = vld [vmem:[#allocation19] sm:$0x1]
    %v4702 = vlaneseq
    %v4703 = vshrl.u32 %v4702, 7
    %v4704 = vsub.s32 0, %v4703
    %v4705 = vrot.slane %v4700, %v4704
    %vm4707 = vcmask 523264
    %v4709 = vsel %vm4707, %v4691, 0
    %4711 = vmatprep.subr.mxu0 0.0
    %4712 = vmatpush1.msra.mxu0 %v4692
    %4713 = vmatprep.subr.mxu0 0.0
    %4714 = vmatpush1.msra.mxu0 %v4693
    %4715 = vmatprep.subr.mxu0 0.0
    %4716 = vmatpush1.msra.mxu0 %v4694
    %4717 = vmatprep.subr.mxu0 0.0
    %4718 = vmatpush1.msra.mxu0 %v4695
    %4719 = vmatprep.subr.mxu0 0.0
    %4720 = vmatpush1.msra.mxu0 %v4696
    %4721 = vmatprep.subr.mxu0 0.0
    %4722 = vmatpush1.msra.mxu0 %v4697
    %4723 = vmatprep.subr.mxu0 0.0
    %4724 = vmatpush1.msra.mxu0 %v4698
    %4725 = vmatprep.subr.mxu0 0.0
    %4726 = vmatpush1.msra.mxu0 %v4699
    %4727 = vmatprep.subr.mxu0 0.0
    %4728 = vmatpush1.msra.mxu0 0.0
    %4729 = vmatprep.subr.mxu0 0.0
    %4730 = vmatpush1.msra.mxu0 0.0
    %4731 = vmatprep.subr.mxu0 0.0
    %4732 = vmatpush1.msra.mxu0 0.0
    %4733 = vmatprep.subr.mxu0 0.0
    %4734 = vmatpush1.msra.mxu0 0.0
    %4735 = vmatprep.subr.mxu0 0.0
    %4736 = vmatpush1.msra.mxu0 0.0
    %4737 = vmatprep.subr.mxu0 0.0
    %4738 = vmatpush1.msra.mxu0 0.0
    %4739 = vmatprep.subr.mxu0 0.0
    %4740 = vmatpush1.msra.mxu0 0.0
    %4741 = vmatprep.subr.mxu0 0.0
    %4742 = vmatpush1.msra.mxu0 0.0
    %4743 = vmatprep.subr.mxu0 0.0
    %4744 = vmatpush1.msra.mxu0 0.0
    %4745 = vmatprep.subr.mxu0 0.0
    %4746 = vmatpush1.msra.mxu0 0.0
    %4747 = vmatprep.subr.mxu0 0.0
    %4748 = vmatpush1.msra.mxu0 0.0
    %4749 = vmatprep.subr.mxu0 0.0
    %4750 = vmatpush1.msra.mxu0 0.0
    %4751 = vmatprep.subr.mxu0 0.0
    %4752 = vmatpush1.msra.mxu0 0.0
    %4753 = vmatprep.subr.mxu0 0.0
    %4754 = vmatpush1.msra.mxu0 0.0
    %4755 = vmatprep.subr.mxu0 0.0
    %4756 = vmatpush1.msra.mxu0 0.0
    %4757 = vmatprep.subr.mxu0 0.0
    %4758 = vmatpush1.msra.mxu0 0.0
    %4759 = vmatprep.subr.mxu0 0.0
    %4760 = vmatpush1.msra.mxu0 0.0
    %4761 = vmatprep.subr.mxu0 0.0
    %4762 = vmatpush1.msra.mxu0 0.0
    %4763 = vmatprep.subr.mxu0 0.0
    %4764 = vmatpush1.msra.mxu0 0.0
    %4765 = vmatprep.subr.mxu0 0.0
    %4766 = vmatpush1.msra.mxu0 0.0
    %4767 = vmatprep.subr.mxu0 0.0
    %4768 = vmatpush1.msra.mxu0 0.0
    %4769 = vmatprep.subr.mxu0 0.0
    %4770 = vmatpush1.msra.mxu0 0.0
    %4771 = vmatprep.subr.mxu0 0.0
    %4772 = vmatpush1.msra.mxu0 0.0
    %4773 = vmatprep.subr.mxu0 0.0
    %4774 = vmatpush1.msra.mxu0 0.0
    %4775 = vmatprep.mubr.f32.mxu0 0.0
    %4776 = vmatmul.mubr.f32.gmra.mrb[0].mxu0 %v4709
    %v4777 = vpop.f32.mrb[0].mxu0
    %v4778 = vadd.f32 %v4705, %v4777
    %v4779 = vpop.f32.mrb[0].mxu0
    %4780 = vdwg.mxu0
    %v4781 = vmax.f32 %v4778, 0.0
    %s4782 = smul.u32 8, 16
    %s4783 = smul.u32 %s4782, 2
    %s4784 = sshll.u32 %s4783, 4
    %4785 = dma.done [#allocation4], %s4784
    %v4786 = vld [vmem:[#allocation2] sm:$0xff]
    %v4787 = vld [vmem:[#allocation2 + $0x8] sm:$0xff]
    %v4788 = vld [vmem:[#allocation2 + $0x10] sm:$0xff]
    %v4789 = vld [vmem:[#allocation2 + $0x18] sm:$0xff]
    %v4790 = vld [vmem:[#allocation2 + $0x20] sm:$0xff]
    %v4791 = vld [vmem:[#allocation2 + $0x28] sm:$0xff]
    %v4792 = vld [vmem:[#allocation2 + $0x30] sm:$0xff]
    %v4793 = vld [vmem:[#allocation2 + $0x38] sm:$0xff]
    %v4794 = vld [vmem:[#allocation2 + $0x40] sm:$0xff]
    %v4795 = vld [vmem:[#allocation2 + $0x48] sm:$0xff]
    %v4796 = vld [vmem:[#allocation2 + $0x50] sm:$0xff]
    %v4797 = vld [vmem:[#allocation2 + $0x58] sm:$0xff]
    %v4798 = vld [vmem:[#allocation2 + $0x60] sm:$0xff]
    %v4799 = vld [vmem:[#allocation2 + $0x68] sm:$0xff]
    %v4800 = vld [vmem:[#allocation2 + $0x70] sm:$0xff]
    %v4801 = vld [vmem:[#allocation2 + $0x78] sm:$0xff]
    %v4802 = vld [vmem:[#allocation2 + $0x80] sm:$0xff]
    %v4803 = vld [vmem:[#allocation2 + $0x88] sm:$0xff]
    %v4804 = vld [vmem:[#allocation2 + $0x90] sm:$0xff]
    %v4805 = vld [vmem:[#allocation2 + $0x98] sm:$0xff]
    %v4806 = vld [vmem:[#allocation2 + $0xa0] sm:$0xff]
    %v4807 = vld [vmem:[#allocation2 + $0xa8] sm:$0xff]
    %v4808 = vld [vmem:[#allocation2 + $0xb0] sm:$0xff]
    %v4809 = vld [vmem:[#allocation2 + $0xb8] sm:$0xff]
    %v4810 = vld [vmem:[#allocation2 + $0xc0] sm:$0xff]
    %v4811 = vld [vmem:[#allocation2 + $0xc8] sm:$0xff]
    %v4812 = vld [vmem:[#allocation2 + $0xd0] sm:$0xff]
    %v4813 = vld [vmem:[#allocation2 + $0xd8] sm:$0xff]
    %v4814 = vld [vmem:[#allocation2 + $0xe0] sm:$0xff]
    %v4815 = vld [vmem:[#allocation2 + $0xe8] sm:$0xff]
    %v4816 = vld [vmem:[#allocation2 + $0xf0] sm:$0xff]
    %v4817 = vld [vmem:[#allocation2 + $0xf8] sm:$0xff]
    %v4818 = vld [vmem:[%s18] sm:$0x3]
    %v4820 = vlaneseq
    %v4821 = vshrl.u32 %v4820, 7
    %v4822 = vsub.s32 0, %v4821
    %v4823 = vrot.slane %v4818, %v4822
    %v4824 = vlaneseq
    %v4825 = vshrl.u32 %v4824, 7
    %v4826 = vsub.s32 1, %v4825
    %v4827 = vrot.slane %v4818, %v4826
    %4830 = vmatprep.subr.mxu0 %v4787
    %4831 = vmatpush1.msra.mxu0 %v4786
    %4832 = vmatprep.subr.mxu0 %v4789
    %4833 = vmatpush1.msra.mxu0 %v4788
    %4834 = vmatprep.subr.mxu0 %v4791
    %4835 = vmatpush1.msra.mxu0 %v4790
    %4836 = vmatprep.subr.mxu0 %v4793
    %4837 = vmatpush1.msra.mxu0 %v4792
    %4838 = vmatprep.subr.mxu0 %v4795
    %4839 = vmatpush1.msra.mxu0 %v4794
    %4840 = vmatprep.subr.mxu0 %v4797
    %4841 = vmatpush1.msra.mxu0 %v4796
    %4842 = vmatprep.subr.mxu0 %v4799
    %4843 = vmatpush1.msra.mxu0 %v4798
    %4844 = vmatprep.subr.mxu0 %v4801
    %4845 = vmatpush1.msra.mxu0 %v4800
    %4846 = vmatprep.subr.mxu0 %v4803
    %4847 = vmatpush1.msra.mxu0 %v4802
    %4848 = vmatprep.subr.mxu0 %v4805
    %4849 = vmatpush1.msra.mxu0 %v4804
    %4850 = vmatprep.subr.mxu0 %v4807
    %4851 = vmatpush1.msra.mxu0 %v4806
    %4852 = vmatprep.subr.mxu0 %v4809
    %4853 = vmatpush1.msra.mxu0 %v4808
    %4854 = vmatprep.subr.mxu0 %v4811
    %4855 = vmatpush1.msra.mxu0 %v4810
    %4856 = vmatprep.subr.mxu0 %v4813
    %4857 = vmatpush1.msra.mxu0 %v4812
    %4858 = vmatprep.subr.mxu0 %v4815
    %4859 = vmatpush1.msra.mxu0 %v4814
    %4860 = vmatprep.subr.mxu0 %v4817
    %4861 = vmatpush1.msra.mxu0 %v4816
    %4862 = vmatprep.subr.mxu0 0.0
    %4863 = vmatpush1.msra.mxu0 0.0
    %4864 = vmatprep.subr.mxu0 0.0
    %4865 = vmatpush1.msra.mxu0 0.0
    %4866 = vmatprep.subr.mxu0 0.0
    %4867 = vmatpush1.msra.mxu0 0.0
    %4868 = vmatprep.subr.mxu0 0.0
    %4869 = vmatpush1.msra.mxu0 0.0
    %4870 = vmatprep.subr.mxu0 0.0
    %4871 = vmatpush1.msra.mxu0 0.0
    %4872 = vmatprep.subr.mxu0 0.0
    %4873 = vmatpush1.msra.mxu0 0.0
    %4874 = vmatprep.subr.mxu0 0.0
    %4875 = vmatpush1.msra.mxu0 0.0
    %4876 = vmatprep.subr.mxu0 0.0
    %4877 = vmatpush1.msra.mxu0 0.0
    %4878 = vmatprep.subr.mxu0 0.0
    %4879 = vmatpush1.msra.mxu0 0.0
    %4880 = vmatprep.subr.mxu0 0.0
    %4881 = vmatpush1.msra.mxu0 0.0
    %4882 = vmatprep.subr.mxu0 0.0
    %4883 = vmatpush1.msra.mxu0 0.0
    %4884 = vmatprep.subr.mxu0 0.0
    %4885 = vmatpush1.msra.mxu0 0.0
    %4886 = vmatprep.subr.mxu0 0.0
    %4887 = vmatpush1.msra.mxu0 0.0
    %4888 = vmatprep.subr.mxu0 0.0
    %4889 = vmatpush1.msra.mxu0 0.0
    %4890 = vmatprep.subr.mxu0 0.0
    %4891 = vmatpush1.msra.mxu0 0.0
    %4892 = vmatprep.subr.mxu0 0.0
    %4893 = vmatpush1.msra.mxu0 0.0
    %4894 = vmatprep.mubr.f32.mxu0 0.0
    %4895 = vmatmul.mubr.f32.gmra.mrb[0].mxu0 %v4781
    %v4896 = vpop.f32.mrb[0].mxu0
    %v4897 = vadd.f32 %v4823, %v4896
    %v4898 = vpop.f32.mrb[0].mxu0
    %v4899 = vadd.f32 %v4827, %v4898
    %4900 = vdwg.mxu0
    %v4901 = vmax.f32 %v4897, 0.0
    %v4902 = vmax.f32 %v4899, 0.0
    %s4903 = smul.u32 8, 32
    %s4904 = smul.u32 %s4903, 4
    %s4905 = sshll.u32 %s4904, 4
    %4906 = dma.done %s199, %s4905
    %v4907 = vld [vmem:[#allocation3] sm:$0xff]
    %v4908 = vld [vmem:[#allocation3 + $0x8] sm:$0xff]
    %v4909 = vld [vmem:[#allocation3 + $0x10] sm:$0xff]
    %v4910 = vld [vmem:[#allocation3 + $0x18] sm:$0xff]
    %v4911 = vld [vmem:[#allocation3 + $0x20] sm:$0xff]
    %v4912 = vld [vmem:[#allocation3 + $0x28] sm:$0xff]
    %v4913 = vld [vmem:[#allocation3 + $0x30] sm:$0xff]
    %v4914 = vld [vmem:[#allocation3 + $0x38] sm:$0xff]
    %v4915 = vld [vmem:[#allocation3 + $0x40] sm:$0xff]
    %v4916 = vld [vmem:[#allocation3 + $0x48] sm:$0xff]
    %v4917 = vld [vmem:[#allocation3 + $0x50] sm:$0xff]
    %v4918 = vld [vmem:[#allocation3 + $0x58] sm:$0xff]
    %v4919 = vld [vmem:[#allocation3 + $0x60] sm:$0xff]
    %v4920 = vld [vmem:[#allocation3 + $0x68] sm:$0xff]
    %v4921 = vld [vmem:[#allocation3 + $0x70] sm:$0xff]
    %v4922 = vld [vmem:[#allocation3 + $0x78] sm:$0xff]
    %v4923 = vld [vmem:[#allocation3 + $0x80] sm:$0xff]
    %v4924 = vld [vmem:[#allocation3 + $0x88] sm:$0xff]
    %v4925 = vld [vmem:[#allocation3 + $0x90] sm:$0xff]
    %v4926 = vld [vmem:[#allocation3 + $0x98] sm:$0xff]
    %v4927 = vld [vmem:[#allocation3 + $0xa0] sm:$0xff]
    %v4928 = vld [vmem:[#allocation3 + $0xa8] sm:$0xff]
    %v4929 = vld [vmem:[#allocation3 + $0xb0] sm:$0xff]
    %v4930 = vld [vmem:[#allocation3 + $0xb8] sm:$0xff]
    %v4931 = vld [vmem:[#allocation3 + $0xc0] sm:$0xff]
    %v4932 = vld [vmem:[#allocation3 + $0xc8] sm:$0xff]
    %v4933 = vld [vmem:[#allocation3 + $0xd0] sm:$0xff]
    %v4934 = vld [vmem:[#allocation3 + $0xd8] sm:$0xff]
    %v4935 = vld [vmem:[#allocation3 + $0xe0] sm:$0xff]
    %v4936 = vld [vmem:[#allocation3 + $0xe8] sm:$0xff]
    %v4937 = vld [vmem:[#allocation3 + $0xf0] sm:$0xff]
    %v4938 = vld [vmem:[#allocation3 + $0xf8] sm:$0xff]
    %v4939 = vld [vmem:[#allocation3 + $0x100] sm:$0xff]
    %v4940 = vld [vmem:[#allocation3 + $0x108] sm:$0xff]
    %v4941 = vld [vmem:[#allocation3 + $0x110] sm:$0xff]
    %v4942 = vld [vmem:[#allocation3 + $0x118] sm:$0xff]
    %v4943 = vld [vmem:[#allocation3 + $0x120] sm:$0xff]
    %v4944 = vld [vmem:[#allocation3 + $0x128] sm:$0xff]
    %v4945 = vld [vmem:[#allocation3 + $0x130] sm:$0xff]
    %v4946 = vld [vmem:[#allocation3 + $0x138] sm:$0xff]
    %v4947 = vld [vmem:[#allocation3 + $0x140] sm:$0xff]
    %v4948 = vld [vmem:[#allocation3 + $0x148] sm:$0xff]
    %v4949 = vld [vmem:[#allocation3 + $0x150] sm:$0xff]
    %v4950 = vld [vmem:[#allocation3 + $0x158] sm:$0xff]
    %v4951 = vld [vmem:[#allocation3 + $0x160] sm:$0xff]
    %v4952 = vld [vmem:[#allocation3 + $0x168] sm:$0xff]
    %v4953 = vld [vmem:[#allocation3 + $0x170] sm:$0xff]
    %v4954 = vld [vmem:[#allocation3 + $0x178] sm:$0xff]
    %v4955 = vld [vmem:[#allocation3 + $0x180] sm:$0xff]
    %v4956 = vld [vmem:[#allocation3 + $0x188] sm:$0xff]
    %v4957 = vld [vmem:[#allocation3 + $0x190] sm:$0xff]
    %v4958 = vld [vmem:[#allocation3 + $0x198] sm:$0xff]
    %v4959 = vld [vmem:[#allocation3 + $0x1a0] sm:$0xff]
    %v4960 = vld [vmem:[#allocation3 + $0x1a8] sm:$0xff]
    %v4961 = vld [vmem:[#allocation3 + $0x1b0] sm:$0xff]
    %v4962 = vld [vmem:[#allocation3 + $0x1b8] sm:$0xff]
    %v4963 = vld [vmem:[#allocation3 + $0x1c0] sm:$0xff]
    %v4964 = vld [vmem:[#allocation3 + $0x1c8] sm:$0xff]
    %v4965 = vld [vmem:[#allocation3 + $0x1d0] sm:$0xff]
    %v4966 = vld [vmem:[#allocation3 + $0x1d8] sm:$0xff]
    %v4967 = vld [vmem:[#allocation3 + $0x1e0] sm:$0xff]
    %v4968 = vld [vmem:[#allocation3 + $0x1e8] sm:$0xff]
    %v4969 = vld [vmem:[#allocation3 + $0x1f0] sm:$0xff]
    %v4970 = vld [vmem:[#allocation3 + $0x1f8] sm:$0xff]
    %v4971 = vld [vmem:[#allocation3 + $0x200] sm:$0xff]
    %v4972 = vld [vmem:[#allocation3 + $0x208] sm:$0xff]
    %v4973 = vld [vmem:[#allocation3 + $0x210] sm:$0xff]
    %v4974 = vld [vmem:[#allocation3 + $0x218] sm:$0xff]
    %v4975 = vld [vmem:[#allocation3 + $0x220] sm:$0xff]
    %v4976 = vld [vmem:[#allocation3 + $0x228] sm:$0xff]
    %v4977 = vld [vmem:[#allocation3 + $0x230] sm:$0xff]
    %v4978 = vld [vmem:[#allocation3 + $0x238] sm:$0xff]
    %v4979 = vld [vmem:[#allocation3 + $0x240] sm:$0xff]
    %v4980 = vld [vmem:[#allocation3 + $0x248] sm:$0xff]
    %v4981 = vld [vmem:[#allocation3 + $0x250] sm:$0xff]
    %v4982 = vld [vmem:[#allocation3 + $0x258] sm:$0xff]
    %v4983 = vld [vmem:[#allocation3 + $0x260] sm:$0xff]
    %v4984 = vld [vmem:[#allocation3 + $0x268] sm:$0xff]
    %v4985 = vld [vmem:[#allocation3 + $0x270] sm:$0xff]
    %v4986 = vld [vmem:[#allocation3 + $0x278] sm:$0xff]
    %v4987 = vld [vmem:[#allocation3 + $0x280] sm:$0xff]
    %v4988 = vld [vmem:[#allocation3 + $0x288] sm:$0xff]
    %v4989 = vld [vmem:[#allocation3 + $0x290] sm:$0xff]
    %v4990 = vld [vmem:[#allocation3 + $0x298] sm:$0xff]
    %v4991 = vld [vmem:[#allocation3 + $0x2a0] sm:$0xff]
    %v4992 = vld [vmem:[#allocation3 + $0x2a8] sm:$0xff]
    %v4993 = vld [vmem:[#allocation3 + $0x2b0] sm:$0xff]
    %v4994 = vld [vmem:[#allocation3 + $0x2b8] sm:$0xff]
    %v4995 = vld [vmem:[#allocation3 + $0x2c0] sm:$0xff]
    %v4996 = vld [vmem:[#allocation3 + $0x2c8] sm:$0xff]
    %v4997 = vld [vmem:[#allocation3 + $0x2d0] sm:$0xff]
    %v4998 = vld [vmem:[#allocation3 + $0x2d8] sm:$0xff]
    %v4999 = vld [vmem:[#allocation3 + $0x2e0] sm:$0xff]
    %v5000 = vld [vmem:[#allocation3 + $0x2e8] sm:$0xff]
    %v5001 = vld [vmem:[#allocation3 + $0x2f0] sm:$0xff]
    %v5002 = vld [vmem:[#allocation3 + $0x2f8] sm:$0xff]
    %v5003 = vld [vmem:[#allocation3 + $0x300] sm:$0xff]
    %v5004 = vld [vmem:[#allocation3 + $0x308] sm:$0xff]
    %v5005 = vld [vmem:[#allocation3 + $0x310] sm:$0xff]
    %v5006 = vld [vmem:[#allocation3 + $0x318] sm:$0xff]
    %v5007 = vld [vmem:[#allocation3 + $0x320] sm:$0xff]
    %v5008 = vld [vmem:[#allocation3 + $0x328] sm:$0xff]
    %v5009 = vld [vmem:[#allocation3 + $0x330] sm:$0xff]
    %v5010 = vld [vmem:[#allocation3 + $0x338] sm:$0xff]
    %v5011 = vld [vmem:[#allocation3 + $0x340] sm:$0xff]
    %v5012 = vld [vmem:[#allocation3 + $0x348] sm:$0xff]
    %v5013 = vld [vmem:[#allocation3 + $0x350] sm:$0xff]
    %v5014 = vld [vmem:[#allocation3 + $0x358] sm:$0xff]
    %v5015 = vld [vmem:[#allocation3 + $0x360] sm:$0xff]
    %v5016 = vld [vmem:[#allocation3 + $0x368] sm:$0xff]
    %v5017 = vld [vmem:[#allocation3 + $0x370] sm:$0xff]
    %v5018 = vld [vmem:[#allocation3 + $0x378] sm:$0xff]
    %v5019 = vld [vmem:[#allocation3 + $0x380] sm:$0xff]
    %v5020 = vld [vmem:[#allocation3 + $0x388] sm:$0xff]
    %v5021 = vld [vmem:[#allocation3 + $0x390] sm:$0xff]
    %v5022 = vld [vmem:[#allocation3 + $0x398] sm:$0xff]
    %v5023 = vld [vmem:[#allocation3 + $0x3a0] sm:$0xff]
    %v5024 = vld [vmem:[#allocation3 + $0x3a8] sm:$0xff]
    %v5025 = vld [vmem:[#allocation3 + $0x3b0] sm:$0xff]
    %v5026 = vld [vmem:[#allocation3 + $0x3b8] sm:$0xff]
    %v5027 = vld [vmem:[#allocation3 + $0x3c0] sm:$0xff]
    %v5028 = vld [vmem:[#allocation3 + $0x3c8] sm:$0xff]
    %v5029 = vld [vmem:[#allocation3 + $0x3d0] sm:$0xff]
    %v5030 = vld [vmem:[#allocation3 + $0x3d8] sm:$0xff]
    %v5031 = vld [vmem:[#allocation3 + $0x3e0] sm:$0xff]
    %v5032 = vld [vmem:[#allocation3 + $0x3e8] sm:$0xff]
    %v5033 = vld [vmem:[#allocation3 + $0x3f0] sm:$0xff]
    %v5034 = vld [vmem:[#allocation3 + $0x3f8] sm:$0xff]
    %v5035 = vld [vmem:[%s20] sm:$0xf]
    %v5037 = vlaneseq
    %v5038 = vshrl.u32 %v5037, 7
    %v5039 = vsub.s32 0, %v5038
    %v5040 = vrot.slane %v5035, %v5039
    %v5041 = vlaneseq
    %v5042 = vshrl.u32 %v5041, 7
    %v5043 = vsub.s32 1, %v5042
    %v5044 = vrot.slane %v5035, %v5043
    %v5045 = vlaneseq
    %v5046 = vshrl.u32 %v5045, 7
    %v5047 = vsub.s32 2, %v5046
    %v5048 = vrot.slane %v5035, %v5047
    %v5049 = vlaneseq
    %v5050 = vshrl.u32 %v5049, 7
    %v5051 = vsub.s32 3, %v5050
    %v5052 = vrot.slane %v5035, %v5051
    %5057 = vmatprep.subr.mxu0 %v4908
    %5058 = vmatpush1.msra.mxu0 %v4907
    %5059 = vmatprep.subr.mxu0 %v4912
    %5060 = vmatpush1.msra.mxu0 %v4911
    %5061 = vmatprep.subr.mxu0 %v4916
    %5062 = vmatpush1.msra.mxu0 %v4915
    %5063 = vmatprep.subr.mxu0 %v4920
    %5064 = vmatpush1.msra.mxu0 %v4919
    %5065 = vmatprep.subr.mxu0 %v4924
    %5066 = vmatpush1.msra.mxu0 %v4923
    %5067 = vmatprep.subr.mxu0 %v4928
    %5068 = vmatpush1.msra.mxu0 %v4927
    %5069 = vmatprep.subr.mxu0 %v4932
    %5070 = vmatpush1.msra.mxu0 %v4931
    %5071 = vmatprep.subr.mxu0 %v4936
    %5072 = vmatpush1.msra.mxu0 %v4935
    %5073 = vmatprep.subr.mxu0 %v4940
    %5074 = vmatpush1.msra.mxu0 %v4939
    %5075 = vmatprep.subr.mxu0 %v4944
    %5076 = vmatpush1.msra.mxu0 %v4943
    %5077 = vmatprep.subr.mxu0 %v4948
    %5078 = vmatpush1.msra.mxu0 %v4947
    %5079 = vmatprep.subr.mxu0 %v4952
    %5080 = vmatpush1.msra.mxu0 %v4951
    %5081 = vmatprep.subr.mxu0 %v4956
    %5082 = vmatpush1.msra.mxu0 %v4955
    %5083 = vmatprep.subr.mxu0 %v4960
    %5084 = vmatpush1.msra.mxu0 %v4959
    %5085 = vmatprep.subr.mxu0 %v4964
    %5086 = vmatpush1.msra.mxu0 %v4963
    %5087 = vmatprep.subr.mxu0 %v4968
    %5088 = vmatpush1.msra.mxu0 %v4967
    %5089 = vmatprep.subr.mxu0 %v4972
    %5090 = vmatpush1.msra.mxu0 %v4971
    %5091 = vmatprep.subr.mxu0 %v4976
    %5092 = vmatpush1.msra.mxu0 %v4975
    %5093 = vmatprep.subr.mxu0 %v4980
    %5094 = vmatpush1.msra.mxu0 %v4979
    %5095 = vmatprep.subr.mxu0 %v4984
    %5096 = vmatpush1.msra.mxu0 %v4983
    %5097 = vmatprep.subr.mxu0 %v4988
    %5098 = vmatpush1.msra.mxu0 %v4987
    %5099 = vmatprep.subr.mxu0 %v4992
    %5100 = vmatpush1.msra.mxu0 %v4991
    %5101 = vmatprep.subr.mxu0 %v4996
    %5102 = vmatpush1.msra.mxu0 %v4995
    %5103 = vmatprep.subr.mxu0 %v5000
    %5104 = vmatpush1.msra.mxu0 %v4999
    %5105 = vmatprep.subr.mxu0 %v5004
    %5106 = vmatpush1.msra.mxu0 %v5003
    %5107 = vmatprep.subr.mxu0 %v5008
    %5108 = vmatpush1.msra.mxu0 %v5007
    %5109 = vmatprep.subr.mxu0 %v5012
    %5110 = vmatpush1.msra.mxu0 %v5011
    %5111 = vmatprep.subr.mxu0 %v5016
    %5112 = vmatpush1.msra.mxu0 %v5015
    %5113 = vmatprep.subr.mxu0 %v5020
    %5114 = vmatpush1.msra.mxu0 %v5019
    %5115 = vmatprep.subr.mxu0 %v5024
    %5116 = vmatpush1.msra.mxu0 %v5023
    %5117 = vmatprep.subr.mxu0 %v5028
    %5118 = vmatpush1.msra.mxu0 %v5027
    %5119 = vmatprep.subr.mxu0 %v5032
    %5120 = vmatpush1.msra.mxu0 %v5031
    %5121 = vmatprep.mubr.f32.mxu0 %v4902
    %5122 = vmatmul.mubr.f32.gmra.mrb[0].mxu0 %v4901
    %v5123 = vpop.f32.mrb[0].mxu0
    %v5124 = vadd.f32 %v5040, %v5123
    %v5125 = vpop.f32.mrb[0].mxu0
    %v5126 = vadd.f32 %v5044, %v5125
    %5127 = vdwg.mxu0
    %5128 = vmatprep.subr.mxu0 %v4910
    %5129 = vmatpush1.msra.mxu0 %v4909
    %5130 = vmatprep.subr.mxu0 %v4914
    %5131 = vmatpush1.msra.mxu0 %v4913
    %5132 = vmatprep.subr.mxu0 %v4918
    %5133 = vmatpush1.msra.mxu0 %v4917
    %5134 = vmatprep.subr.mxu0 %v4922
    %5135 = vmatpush1.msra.mxu0 %v4921
    %5136 = vmatprep.subr.mxu0 %v4926
    %5137 = vmatpush1.msra.mxu0 %v4925
    %5138 = vmatprep.subr.mxu0 %v4930
    %5139 = vmatpush1.msra.mxu0 %v4929
    %5140 = vmatprep.subr.mxu0 %v4934
    %5141 = vmatpush1.msra.mxu0 %v4933
    %5142 = vmatprep.subr.mxu0 %v4938
    %5143 = vmatpush1.msra.mxu0 %v4937
    %5144 = vmatprep.subr.mxu0 %v4942
    %5145 = vmatpush1.msra.mxu0 %v4941
    %5146 = vmatprep.subr.mxu0 %v4946
    %5147 = vmatpush1.msra.mxu0 %v4945
    %5148 = vmatprep.subr.mxu0 %v4950
    %5149 = vmatpush1.msra.mxu0 %v4949
    %5150 = vmatprep.subr.mxu0 %v4954
    %5151 = vmatpush1.msra.mxu0 %v4953
    %5152 = vmatprep.subr.mxu0 %v4958
    %5153 = vmatpush1.msra.mxu0 %v4957
    %5154 = vmatprep.subr.mxu0 %v4962
    %5155 = vmatpush1.msra.mxu0 %v4961
    %5156 = vmatprep.subr.mxu0 %v4966
    %5157 = vmatpush1.msra.mxu0 %v4965
    %5158 = vmatprep.subr.mxu0 %v4970
    %5159 = vmatpush1.msra.mxu0 %v4969
    %5160 = vmatprep.subr.mxu0 %v4974
    %5161 = vmatpush1.msra.mxu0 %v4973
    %5162 = vmatprep.subr.mxu0 %v4978
    %5163 = vmatpush1.msra.mxu0 %v4977
    %5164 = vmatprep.subr.mxu0 %v4982
    %5165 = vmatpush1.msra.mxu0 %v4981
    %5166 = vmatprep.subr.mxu0 %v4986
    %5167 = vmatpush1.msra.mxu0 %v4985
    %5168 = vmatprep.subr.mxu0 %v4990
    %5169 = vmatpush1.msra.mxu0 %v4989
    %5170 = vmatprep.subr.mxu0 %v4994
    %5171 = vmatpush1.msra.mxu0 %v4993
    %5172 = vmatprep.subr.mxu0 %v4998
    %5173 = vmatpush1.msra.mxu0 %v4997
    %5174 = vmatprep.subr.mxu0 %v5002
    %5175 = vmatpush1.msra.mxu0 %v5001
    %5176 = vmatprep.subr.mxu0 %v5006
    %5177 = vmatpush1.msra.mxu0 %v5005
    %5178 = vmatprep.subr.mxu0 %v5010
    %5179 = vmatpush1.msra.mxu0 %v5009
    %5180 = vmatprep.subr.mxu0 %v5014
    %5181 = vmatpush1.msra.mxu0 %v5013
    %5182 = vmatprep.subr.mxu0 %v5018
    %5183 = vmatpush1.msra.mxu0 %v5017
    %5184 = vmatprep.subr.mxu0 %v5022
    %5185 = vmatpush1.msra.mxu0 %v5021
    %5186 = vmatprep.subr.mxu0 %v5026
    %5187 = vmatpush1.msra.mxu0 %v5025
    %5188 = vmatprep.subr.mxu0 %v5030
    %5189 = vmatpush1.msra.mxu0 %v5029
    %5190 = vmatprep.subr.mxu0 %v5034
    %5191 = vmatpush1.msra.mxu0 %v5033
    %5192 = vmatprep.mubr.f32.mxu0 %v4902
    %5193 = vmatmul.mubr.f32.gmra.mrb[0].mxu0 %v4901
    %v5194 = vpop.f32.mrb[0].mxu0
    %v5195 = vadd.f32 %v5048, %v5194
    %v5196 = vpop.f32.mrb[0].mxu0
    %v5197 = vadd.f32 %v5052, %v5196
    %5198 = vdwg.mxu0
    %5199 = vst [vmem:[%s22] sm:$0xff] %v5124
    %5200 = vst [vmem:[%s22 + $0x8] sm:$0xff] %v5126
    %5201 = vst [vmem:[%s22 + $0x10] sm:$0xff] %v5195
    %5202 = vst [vmem:[%s22 + $0x18] sm:$0xff] %v5197
    // Predicated region
    $region126: #{autoencoder_lstm_forward.1} parent=1 // pred_check
      _
    $region127: #{autoencoder_lstm_forward.1} parent=1 // pred_check_branch
      %5204 = sbr.rel (0) target = $region129
    $region128: #{autoencoder_lstm_forward.1} parent=1 // pred_region
      _
    $region129: #{autoencoder_lstm_forward.1} parent=1 // pred_fallthru
      _
    // Predicated region
    $region130: #{autoencoder_lstm_forward.1} parent=1 // pred_check
      _
    $region131: #{autoencoder_lstm_forward.1} parent=1 // pred_check_branch
      %5206 = sbr.rel (0) target = $region133
    $region132: #{autoencoder_lstm_forward.1} parent=1 // pred_region
      _
    $region133: #{autoencoder_lstm_forward.1} parent=1 // pred_fallthru
      _
    // Predicated region
    $region134: #{autoencoder_lstm_forward.1} parent=1 // pred_check
      _
    $region135: #{autoencoder_lstm_forward.1} parent=1 // pred_check_branch
      %5208 = sbr.rel (0) target = $region137
    $region136: #{autoencoder_lstm_forward.1} parent=1 // pred_region
      _
    $region137: #{autoencoder_lstm_forward.1} parent=1 // pred_fallthru
      _
    // Predicated region
    $region138: #{autoencoder_lstm_forward.1} parent=1 // pred_check
      _
    $region139: #{autoencoder_lstm_forward.1} parent=1 // pred_check_branch
      %5210 = sbr.rel (0) target = $region141
    $region140: #{autoencoder_lstm_forward.1} parent=1 // pred_region
      _
    $region141: #{autoencoder_lstm_forward.1} parent=1 // pred_fallthru
      _
    %5211 = vsyncpa [#allocation6], 1
    %5212 = vsyncpa [#allocation8], 1
    %5213 = vsyncpa [#allocation11], 1
    %5214 = vsyncpa [#allocation14], 1
    %5215 = vsyncpa [#allocation17], 1
    %5216 = vsyncpa [#allocation20], 1
  %5217 = vsyncmov [#allocation4]
  %s5218 = vpop.sfrf %5217
  %p5219 = scmp.eq.s32.totalorder %s5218, 0
  %p5220 = pneg %p5219
  %5222 = shalt.err (%p5220)
  %s5223 = scalar_lea.sflag [#allocation4], 1
  %5224 = vsyncmov %s5223
  %s5225 = vpop.sfrf %5224
  %p5226 = scmp.eq.s32.totalorder %s5225, 0
  %p5227 = pneg %p5226
  %5229 = shalt.err (%p5227)

</llo_original>
